<compile_context>
chip_gen: v6e
topology: v6e:2x2x1
jax: 0.10.0
libtpu: 0.0.40
codegen_flags: <defaults>
</compile_context>

<pallas_src>
import jax
import jax.numpy as jnp
from jax.experimental import pallas as pl
from jax.experimental.pallas import tpu as pltpu

NODE_DIM = 6          # node feature dim expected by PathCon (node_dim=6)
NODE_DIM_PAD = 8      # sublane-aligned pad of the node feature dim
LATENT_DIM = (128, 128, 128)

VMEM_SPEC = pl.BlockSpec(memory_space=pltpu.MemorySpace.VMEM)


def _round_up(v, m):
    return (v + m - 1) // m * m


# ----------------------------------------------------------------------------
# Fused kernel: 3 x (PathCon layer + ReLU) + final scatter-mean + max-pool.
#   per layer:
#     agg      = scatter_sum(edge_attr*mask, col) / (scatter_sum(mask,col)+1)
#     node_rep = cat([agg, x], 1)                  (handled via weight concat)
#     edge     = ReLU(Linear(cat([node_rep[row], node_rep[col], edge_attr])))
#   readout:
#     node_rep = scatter-mean of final edge_attr ; pooled = per-graph max
# scatter/gather are one-hot matmuls on the MXU (bf16 operands, f32 accum).
# ----------------------------------------------------------------------------
def _make_fused_kernel(num_layers, num_graphs):
    def kernel(edge_ref, mask_ref, row_ref, col_col_ref, col_row_ref,
               x_ref, inv_denom_ref, batch_ref, *rest):
        w_all = rest[:3 * num_layers]
        edge_out_ref, node_out_ref, pooled_ref = rest[3 * num_layers:]

        E = edge_ref.shape[0]          # padded edge count (mult of 128)
        Np = x_ref.shape[0]            # padded node count (mult of 128)

        # ---- loop-invariant gather operators (edges x nodes, bf16 0/1) ----
        node_ids_en = jax.lax.broadcasted_iota(jnp.int32, (E, Np), 1)
        row_oh = (row_ref[...] == node_ids_en).astype(jnp.bfloat16)      # (E,Np)
        col_oh = (col_col_ref[...] == node_ids_en).astype(jnp.bfloat16)  # (E,Np)

        # ---- loop-invariant scatter operator, pre-transposed (nodes x edges),
        # built directly in bf16 with the edge mask folded in once.  No f32
        # (Np,E) intermediates are ever materialized.
        node_ids_ne = jax.lax.broadcasted_iota(jnp.int32, (Np, E), 0)
        mask_bf = mask_ref[...].astype(jnp.bfloat16)                     # (1,E)
        col_oh_tm_bf = ((col_row_ref[...] == node_ids_ne)
                        .astype(jnp.bfloat16) * mask_bf)                 # (Np,E)

        inv_denom = inv_denom_ref[...]      # (Np,1) f32, exact 1/(deg+1)
        x_bf = x_ref[...]                   # (Np,8)  bf16, loop-invariant

        edge_attr = edge_ref[...]           # (E, D0p) f32, lane-dense carry

        for i in range(num_layers):
            wa_cat = w_all[3 * i + 0][...]  # (d_prev+8, 2*d_out) bf16 [w1|w2]
            w3 = w_all[3 * i + 1][...]      # (d_prev,   d_out)   bf16
            b = w_all[3 * i + 2][...]       # (1, d_out)          f32
            d_out = w3.shape[1]

            edge_bf = edge_attr.astype(jnp.bfloat16)

            # scatter-mean: one lane-dense bf16 matmul + exact inv-denom scale
            agg = jnp.dot(col_oh_tm_bf, edge_bf,
                          preferred_element_type=jnp.float32)            # (Np,d_prev)
            agg_bf = (agg * inv_denom).astype(jnp.bfloat16)

            # row/col projections fused over BOTH the output axis ([w1|w2])
            # and the contraction axis ([agg | x]).  The lane-concat offset is
            # a multiple of 128 because the edge-feature carry is lane-padded.
            node_rep_bf = jnp.concatenate([agg_bf, x_bf], axis=1)        # (Np,d_prev+8)
            proj = jnp.dot(node_rep_bf, wa_cat,
                           preferred_element_type=jnp.float32)           # (Np,2*d_out)
            proj_row = proj[:, :d_out].astype(jnp.bfloat16)
            proj_col = proj[:, d_out:].astype(jnp.bfloat16)

            # gather back to edges + residual edge term + bias, fused ReLU
            edge_out = (jnp.dot(row_oh, proj_row,
                                preferred_element_type=jnp.float32)
                        + jnp.dot(col_oh, proj_col,
                                  preferred_element_type=jnp.float32)
                        + jnp.dot(edge_bf, w3,
                                  preferred_element_type=jnp.float32)
                        + b)
            edge_attr = jnp.maximum(edge_out, 0.0)      # gnn_non_linear (ReLU)

        edge_out_ref[...] = edge_attr

        # ---- final node aggregation (no ReLU) + global max-pool readout ----
        node_rep = jnp.dot(col_oh_tm_bf, edge_attr.astype(jnp.bfloat16),
                           preferred_element_type=jnp.float32) * inv_denom
        node_out_ref[...] = node_rep

        # TODO(synk): for large num_graphs, restructure the readout as a
        # single masked pass over a (num_graphs, Np) one-hot instead of
        # num_graphs full-array sweeps; fine for small static num_graphs.
        batch = batch_ref[...]                      # (Np,1) int32, -1 for pad
        neg_inf = jnp.float32(-jnp.inf)
        rows = []
        for g in range(num_graphs):
            vals = jnp.where(batch == g, node_rep, neg_inf)
            rows.append(jnp.max(vals, axis=0, keepdims=True))
        pooled_ref[...] = jnp.concatenate(rows, axis=0)   # lane-dense store

    return kernel


# ----------------------------------------------------------------------------
# Parameter setup (deterministic, synthetic)
# ----------------------------------------------------------------------------
def init_params(key, emb_dim, input_dim, num_rels_bg, num_node_ids,
                latent_dim=LATENT_DIM, node_dim=NODE_DIM):
    keys = jax.random.split(key, 2 + 2 * len(latent_dim))
    params = {}
    # nn.Embedding(num_rels_bg, input_dim) for edge types
    params['edge_embedding'] = jax.random.normal(
        keys[0], (num_rels_bg, input_dim), jnp.float32)
    # node_embedding exists in the module but is unused with default flags
    params['node_embedding'] = jax.random.normal(
        keys[1], (num_node_ids, emb_dim), jnp.float32)
    # TODO(synk): pair_node_mlp is declared in __init__ but never used in forward.
    layers = []
    dims = [input_dim] + list(latent_dim)
    for i in range(len(latent_dim)):
        fan_in = dims[i] * 3 + node_dim * 2
        fan_out = dims[i + 1]
        kw, kb = keys[2 + 2 * i], keys[3 + 2 * i]
        bound = (6.0 / (fan_in + fan_out)) ** 0.5          # xavier_uniform_
        W = jax.random.uniform(kw, (fan_in, fan_out), jnp.float32, -bound, bound)
        bb = 1.0 / (fan_in ** 0.5)                         # default Linear bias init
        b = jax.random.uniform(kb, (fan_out,), jnp.float32, -bb, bb)
        layers.append((W, b))
    params['gnn_layers'] = layers
    return params


# ----------------------------------------------------------------------------
# Forward pass reproducing RGCNNet.forward (default flags)
# ----------------------------------------------------------------------------
def rgcn_net_forward(params, x_orig, edge_index, edge_type, batch, num_graphs,
                     mask=None):
    N = x_orig.shape[0]
    E = edge_index.shape[1]
    Np = _round_up(max(N, 128), 128)   # node axis: lane dim of one-hots
    Ep = _round_up(max(E, 128), 128)   # edge axis: lane-dense scatter op,
                                       # full MXU K tiles for the scatter

    row = edge_index[0].astype(jnp.int32)
    col = edge_index[1].astype(jnp.int32)

    # per-graph node counts -> head / tail node indices
    batch_num_nodes = jax.ops.segment_sum(
        jnp.ones((N,), jnp.int32), batch, num_segments=num_graphs)
    head_idxs = jnp.cumsum(
        jnp.concatenate([jnp.zeros((1,), jnp.int32), batch_num_nodes[:-1]]))
    tail_idxs = head_idxs + 1

    if mask is None:
        mask = jnp.ones((E,), jnp.float32)
    mask = mask.astype(jnp.float32)

    # x = zeros; x[head] = x_orig[head]; x[tail] = x_orig[tail]
    keep = (jnp.zeros((N,), bool)
            .at[head_idxs].set(True)
            .at[tail_idxs].set(True))
    x = jnp.where(keep[:, None], x_orig, 0.0)

    # 1-D edge_attr -> edge embedding lookup
    edge_attr = params['edge_embedding'][edge_type]            # (E, input_dim)
    D0 = edge_attr.shape[1]
    D0p = _round_up(D0, 128)    # lane-pad the edge-feature carry to 128

    # exact scatter-mean denominator, computed once (loop-invariant, tiny)
    denom = jax.ops.segment_sum(mask, col, num_segments=N)
    inv_denom = 1.0 / (denom + 1.0)                            # exact f32

    # ---- (8,128)-aligned padded operands; padded edges carry mask=0 and
    #      index 0 (contribute nothing), padded nodes carry batch id -1. ----
    edge_attr_p = jnp.zeros((Ep, D0p), jnp.float32).at[:E, :D0].set(edge_attr)
    mask_row_p = jnp.zeros((1, Ep), jnp.float32).at[0, :E].set(mask)
    row_p = jnp.zeros((Ep, 1), jnp.int32).at[:E, 0].set(row)
    col_col_p = jnp.zeros((Ep, 1), jnp.int32).at[:E, 0].set(col)
    col_row_p = jnp.zeros((1, Ep), jnp.int32).at[0, :E].set(col)
    x_p = jnp.zeros((Np, NODE_DIM_PAD), jnp.bfloat16).at[:N, :NODE_DIM].set(
        x.astype(jnp.bfloat16))
    inv_denom_p = jnp.ones((Np, 1), jnp.float32).at[:N, 0].set(inv_denom)
    batch_p = jnp.full((Np, 1), -1, jnp.int32).at[:N, 0].set(
        batch.astype(jnp.int32))

    # ---- per-layer fused weights.  PyTorch concat order is
    #      cat([agg[row], x[row], agg[col], x[col], edge_attr], -1); we fuse
    #      the row/col projections on the output axis and fold x on the
    #      contraction axis: wa_cat = [[w1a|w2a],[w1b|w2b]] (bf16). ----
    w_inputs = []
    d_prev = D0p
    for (W, b) in params['gnn_layers']:
        d_in = (W.shape[0] - 2 * NODE_DIM) // 3
        d_out = W.shape[1]
        w1a = W[0:d_in]
        w1b = W[d_in:d_in + NODE_DIM]
        w2a = W[d_in + NODE_DIM:2 * d_in + NODE_DIM]
        w2b = W[2 * d_in + NODE_DIM:2 * d_in + 2 * NODE_DIM]
        w3 = W[2 * d_in + 2 * NODE_DIM:3 * d_in + 2 * NODE_DIM]
        wa = (jnp.zeros((d_prev, 2 * d_out), jnp.float32)
              .at[:d_in, :d_out].set(w1a)
              .at[:d_in, d_out:].set(w2a))
        wb = (jnp.zeros((NODE_DIM_PAD, 2 * d_out), jnp.float32)
              .at[:NODE_DIM, :d_out].set(w1b)
              .at[:NODE_DIM, d_out:].set(w2b))
        wa_cat = jnp.concatenate([wa, wb], axis=0).astype(jnp.bfloat16)
        w3p = (jnp.zeros((d_prev, d_out), jnp.float32)
               .at[:d_in].set(w3).astype(jnp.bfloat16))
        w_inputs += [wa_cat, w3p, b.reshape(1, -1).astype(jnp.float32)]
        d_prev = d_out

    num_layers = len(params['gnn_layers'])
    D_last = params['gnn_layers'][-1][0].shape[1]
    n_inputs = 8 + 3 * num_layers

    # ---- VMEM budget from the actual footprint, capped per chip ----------
    d_max = max([D0p] + [W.shape[1] for (W, _) in params['gnn_layers']])
    onehot_bytes = 3 * Ep * Np * 2                       # bf16 one-hots
    act_bytes = (4 * Ep * d_max * 4                      # edge carries / outs
                 + 4 * Np * 2 * d_max * 4                # agg / proj / node_rep
                 + sum(int(w.size) * w.dtype.itemsize for w in w_inputs))
    footprint = onehot_bytes + act_bytes
    try:
        vmem_cap = int(getattr(pltpu.get_tpu_info(), "vmem_capacity_bytes",
                               128 * 1024 * 1024))
    except Exception:
        vmem_cap = 128 * 1024 * 1024
    vmem_limit = int(min(max(32 * 1024 * 1024, 2 * footprint),
                         int(0.8 * vmem_cap)))

    # ---- cost estimate so XLA schedules surrounding ops sensibly ---------
    flops = 0
    d_prev = D0p
    for (W, _) in params['gnn_layers']:
        d_out = W.shape[1]
        flops += 2 * Np * Ep * d_prev                        # scatter-mean
        flops += 2 * Np * (d_prev + NODE_DIM_PAD) * 2 * d_out  # projection
        flops += 2 * 2 * Ep * Np * d_out                     # row+col gathers
        flops += 2 * Ep * d_prev * d_out                     # edge residual
        d_prev = d_out
    flops += 2 * Np * Ep * d_prev                            # final scatter
    in_bytes = sum(int(a.size) * a.dtype.itemsize for a in
                   [edge_attr_p, mask_row_p, row_p, col_col_p, col_row_p,
                    x_p, inv_denom_p, batch_p] + w_inputs)
    out_bytes = (Ep * D_last + Np * D_last + num_graphs * D_last) * 4
    cost = pl.CostEstimate(flops=int(flops), transcendentals=0,
                           bytes_accessed=int(in_bytes + out_bytes))

    # TODO(synk): for graphs where 3*Ep*Np bf16 one-hots approach the VMEM cap
    # (earlier on v7x's 64 MiB), tile the edge axis with a grid ('parallel'
    # edge tiles for the gather/edge-MLP, 'arbitrary' accumulation axis for
    # the scatter); at these sizes a single fused call is launch-latency
    # optimal.
    kernel = _make_fused_kernel(num_layers, num_graphs)
    edge_rep_p, node_rep_p, pooled = pl.pallas_call(
        kernel,
        out_shape=(jax.ShapeDtypeStruct((Ep, D_last), jnp.float32),
                   jax.ShapeDtypeStruct((Np, D_last), jnp.float32),
                   jax.ShapeDtypeStruct((num_graphs, D_last), jnp.float32)),
        in_specs=[VMEM_SPEC] * n_inputs,
        out_specs=(VMEM_SPEC, VMEM_SPEC, VMEM_SPEC),
        compiler_params=pltpu.CompilerParams(vmem_limit_bytes=vmem_limit),
        cost_estimate=cost,
    )(edge_attr_p, mask_row_p, row_p, col_col_p, col_row_p, x_p,
      inv_denom_p, batch_p, *w_inputs)

    edge_attr_out = edge_rep_p[:E]
    node_rep = node_rep_p[:N]
    head_emb = node_rep[head_idxs]
    tail_emb = node_rep[tail_idxs]
    graph_emb = jnp.concatenate([pooled, head_emb, tail_emb], axis=-1)
    return graph_emb, node_rep, edge_attr_out


if __name__ == "__main__":
    key = jax.random.PRNGKey(0)
    emb_dim, input_dim, num_rels_bg = 8, 16, 10
    nodes_per_graph, num_graphs = 10, 2
    N = nodes_per_graph * num_graphs
    E = 32

    k_params, k_x, k_e0, k_e1, k_type = jax.random.split(key, 5)
    params = init_params(k_params, emb_dim, input_dim, num_rels_bg,
                         num_node_ids=N)

    x_orig = jax.random.normal(k_x, (N, NODE_DIM), jnp.float32)

    # edges stay within each of the two graphs
    src0 = jax.random.randint(k_e0, (E // 2,), 0, nodes_per_graph)
    dst0 = jax.random.randint(jax.random.fold_in(k_e0, 1), (E // 2,), 0,
                              nodes_per_graph)
    src1 = jax.random.randint(k_e1, (E // 2,), 0, nodes_per_graph) + nodes_per_graph
    dst1 = jax.random.randint(jax.random.fold_in(k_e1, 1), (E // 2,), 0,
                              nodes_per_graph) + nodes_per_graph
    edge_index = jnp.stack([jnp.concatenate([src0, src1]),
                            jnp.concatenate([dst0, dst1])]).astype(jnp.int32)
    edge_type = jax.random.randint(k_type, (E,), 0, num_rels_bg)
    batch = jnp.repeat(jnp.arange(num_graphs, dtype=jnp.int32), nodes_per_graph)

    graph_emb, node_rep, edge_attr = rgcn_net_forward(
        params, x_orig, edge_index, edge_type, batch, num_graphs)
    jax.block_until_ready((graph_emb, node_rep, edge_attr))

    assert graph_emb.shape == (num_graphs, 3 * LATENT_DIM[-1])
    assert node_rep.shape == (N, LATENT_DIM[-1])
    assert edge_attr.shape == (E, LATENT_DIM[-1])
    assert bool(jnp.isfinite(graph_emb).all())
    print("KERNEL_OK")
</pallas_src>

<mosaic_0001>
module attributes {stable_mosaic.version = 11 : i64} {
  func.func @kernel(%arg0: memref<128x128xf32, #tpu.memory_space<vmem>>, %arg1: memref<1x128xf32, #tpu.memory_space<vmem>>, %arg2: memref<128x1xi32, #tpu.memory_space<vmem>>, %arg3: memref<128x1xi32, #tpu.memory_space<vmem>>, %arg4: memref<1x128xi32, #tpu.memory_space<vmem>>, %arg5: memref<128x8xbf16, #tpu.memory_space<vmem>>, %arg6: memref<128x1xf32, #tpu.memory_space<vmem>>, %arg7: memref<128x1xi32, #tpu.memory_space<vmem>>, %arg8: memref<136x256xbf16, #tpu.memory_space<vmem>>, %arg9: memref<128x128xbf16, #tpu.memory_space<vmem>>, %arg10: memref<1x128xf32, #tpu.memory_space<vmem>>, %arg11: memref<136x256xbf16, #tpu.memory_space<vmem>>, %arg12: memref<128x128xbf16, #tpu.memory_space<vmem>>, %arg13: memref<1x128xf32, #tpu.memory_space<vmem>>, %arg14: memref<136x256xbf16, #tpu.memory_space<vmem>>, %arg15: memref<128x128xbf16, #tpu.memory_space<vmem>>, %arg16: memref<1x128xf32, #tpu.memory_space<vmem>>, %arg17: memref<128x128xf32, #tpu.memory_space<vmem>>, %arg18: memref<128x128xf32, #tpu.memory_space<vmem>>, %arg19: memref<2x128xf32, #tpu.memory_space<vmem>>) attributes {dimension_semantics = [], scalar_prefetch = 0 : i64, scratch_operands = 0 : i64, tpu.core_type = #tpu.core_type<tc>} {
    %0 = tpu.iota {dimensions = array<i32: 1>} : vector<128x128xi32>
    %c0 = arith.constant 0 : index
    %c0_0 = arith.constant 0 : index
    %1 = vector.load %arg2[%c0, %c0_0] : memref<128x1xi32, #tpu.memory_space<vmem>>, vector<128x1xi32>
    %2 = vector.broadcast %1 : vector<128x1xi32> to vector<128x128xi32>
    %3 = arith.cmpi eq, %2, %0 : vector<128x128xi32>
    %4 = arith.extui %3 : vector<128x128xi1> to vector<128x128xi32>
    %5 = arith.sitofp %4 : vector<128x128xi32> to vector<128x128xf32>
    %6 = arith.truncf %5 : vector<128x128xf32> to vector<128x128xbf16>
    %c0_1 = arith.constant 0 : index
    %c0_2 = arith.constant 0 : index
    %7 = vector.load %arg3[%c0_1, %c0_2] : memref<128x1xi32, #tpu.memory_space<vmem>>, vector<128x1xi32>
    %8 = vector.broadcast %7 : vector<128x1xi32> to vector<128x128xi32>
    %9 = arith.cmpi eq, %8, %0 : vector<128x128xi32>
    %10 = arith.extui %9 : vector<128x128xi1> to vector<128x128xi32>
    %11 = arith.sitofp %10 : vector<128x128xi32> to vector<128x128xf32>
    %12 = arith.truncf %11 : vector<128x128xf32> to vector<128x128xbf16>
    %13 = tpu.iota {dimensions = array<i32: 0>} : vector<128x128xi32>
    %c0_3 = arith.constant 0 : index
    %c0_4 = arith.constant 0 : index
    %14 = vector.load %arg1[%c0_3, %c0_4] : memref<1x128xf32, #tpu.memory_space<vmem>>, vector<1x128xf32>
    %15 = arith.truncf %14 : vector<1x128xf32> to vector<1x128xbf16>
    %c0_5 = arith.constant 0 : index
    %c0_6 = arith.constant 0 : index
    %16 = vector.load %arg4[%c0_5, %c0_6] : memref<1x128xi32, #tpu.memory_space<vmem>>, vector<1x128xi32>
    %17 = vector.broadcast %16 : vector<1x128xi32> to vector<128x128xi32>
    %18 = arith.cmpi eq, %17, %13 : vector<128x128xi32>
    %19 = arith.extui %18 : vector<128x128xi1> to vector<128x128xi32>
    %20 = arith.sitofp %19 : vector<128x128xi32> to vector<128x128xf32>
    %21 = arith.truncf %20 : vector<128x128xf32> to vector<128x128xbf16>
    %22 = vector.broadcast %15 : vector<1x128xbf16> to vector<128x128xbf16>
    %23 = arith.mulf %21, %22 : vector<128x128xbf16>
    %c0_7 = arith.constant 0 : index
    %c0_8 = arith.constant 0 : index
    %24 = vector.load %arg6[%c0_7, %c0_8] : memref<128x1xf32, #tpu.memory_space<vmem>>, vector<128x1xf32>
    %c0_9 = arith.constant 0 : index
    %c0_10 = arith.constant 0 : index
    %25 = vector.load %arg5[%c0_9, %c0_10] : memref<128x8xbf16, #tpu.memory_space<vmem>>, vector<128x8xbf16>
    %c0_11 = arith.constant 0 : index
    %c0_12 = arith.constant 0 : index
    %26 = vector.load %arg0[%c0_11, %c0_12] : memref<128x128xf32, #tpu.memory_space<vmem>>, vector<128x128xf32>
    %c0_13 = arith.constant 0 : index
    %c0_14 = arith.constant 0 : index
    %27 = vector.load %arg8[%c0_13, %c0_14] : memref<136x256xbf16, #tpu.memory_space<vmem>>, vector<136x256xbf16>
    %c0_15 = arith.constant 0 : index
    %c0_16 = arith.constant 0 : index
    %28 = vector.load %arg9[%c0_15, %c0_16] : memref<128x128xbf16, #tpu.memory_space<vmem>>, vector<128x128xbf16>
    %c0_17 = arith.constant 0 : index
    %c0_18 = arith.constant 0 : index
    %29 = vector.load %arg10[%c0_17, %c0_18] : memref<1x128xf32, #tpu.memory_space<vmem>>, vector<1x128xf32>
    %30 = arith.truncf %26 : vector<128x128xf32> to vector<128x128xbf16>
    %cst = arith.constant dense<0.000000e+00> : vector<128x128xf32>
    %31 = tpu.matmul %23, %30, %cst {dimension_numbers = #tpu.dot_dimension_numbers<[1], [0], [0], [1], [0, 0, 1, 1], [], []>} : vector<128x128xbf16>, vector<128x128xbf16>, vector<128x128xf32> -> vector<128x128xf32>
    %32 = vector.broadcast %24 : vector<128x1xf32> to vector<128x128xf32>
    %33 = arith.mulf %31, %32 : vector<128x128xf32>
    %34 = arith.truncf %33 : vector<128x128xf32> to vector<128x128xbf16>
    %35 = tpu.concatenate %34, %25 in 1 : vector<128x128xbf16>, vector<128x8xbf16> -> vector<128x136xbf16>
    %cst_19 = arith.constant dense<0.000000e+00> : vector<128x256xf32>
    %36 = tpu.matmul %35, %27, %cst_19 {dimension_numbers = #tpu.dot_dimension_numbers<[1], [0], [0], [1], [0, 0, 1, 1], [], []>} : vector<128x136xbf16>, vector<136x256xbf16>, vector<128x256xf32> -> vector<128x256xf32>
    %37 = vector.extract_strided_slice %36 {offsets = [0, 0], sizes = [128, 128], strides = [1, 1]} : vector<128x256xf32> to vector<128x128xf32>
    %38 = arith.truncf %37 : vector<128x128xf32> to vector<128x128xbf16>
    %39 = vector.extract_strided_slice %36 {offsets = [0, 128], sizes = [128, 128], strides = [1, 1]} : vector<128x256xf32> to vector<128x128xf32>
    %40 = arith.truncf %39 : vector<128x128xf32> to vector<128x128xbf16>
    %cst_20 = arith.constant dense<0.000000e+00> : vector<128x128xf32>
    %41 = tpu.matmul %6, %38, %cst_20 {dimension_numbers = #tpu.dot_dimension_numbers<[1], [0], [0], [1], [0, 0, 1, 1], [], []>} : vector<128x128xbf16>, vector<128x128xbf16>, vector<128x128xf32> -> vector<128x128xf32>
    %cst_21 = arith.constant dense<0.000000e+00> : vector<128x128xf32>
    %42 = tpu.matmul %12, %40, %cst_21 {dimension_numbers = #tpu.dot_dimension_numbers<[1], [0], [0], [1], [0, 0, 1, 1], [], []>} : vector<128x128xbf16>, vector<128x128xbf16>, vector<128x128xf32> -> vector<128x128xf32>
    %43 = arith.addf %41, %42 : vector<128x128xf32>
    %cst_22 = arith.constant dense<0.000000e+00> : vector<128x128xf32>
    %44 = tpu.matmul %30, %28, %cst_22 {dimension_numbers = #tpu.dot_dimension_numbers<[1], [0], [0], [1], [0, 0, 1, 1], [], []>} : vector<128x128xbf16>, vector<128x128xbf16>, vector<128x128xf32> -> vector<128x128xf32>
    %45 = arith.addf %43, %44 : vector<128x128xf32>
    %46 = vector.broadcast %29 : vector<1x128xf32> to vector<128x128xf32>
    %47 = arith.addf %45, %46 : vector<128x128xf32>
    %cst_23 = arith.constant 0.000000e+00 : f32
    %48 = vector.broadcast %cst_23 : f32 to vector<128x128xf32>
    %49 = arith.maximumf %47, %48 : vector<128x128xf32>
    %c0_24 = arith.constant 0 : index
    %c0_25 = arith.constant 0 : index
    %50 = vector.load %arg11[%c0_24, %c0_25] : memref<136x256xbf16, #tpu.memory_space<vmem>>, vector<136x256xbf16>
    %c0_26 = arith.constant 0 : index
    %c0_27 = arith.constant 0 : index
    %51 = vector.load %arg12[%c0_26, %c0_27] : memref<128x128xbf16, #tpu.memory_space<vmem>>, vector<128x128xbf16>
    %c0_28 = arith.constant 0 : index
    %c0_29 = arith.constant 0 : index
    %52 = vector.load %arg13[%c0_28, %c0_29] : memref<1x128xf32, #tpu.memory_space<vmem>>, vector<1x128xf32>
    %53 = arith.truncf %49 : vector<128x128xf32> to vector<128x128xbf16>
    %cst_30 = arith.constant dense<0.000000e+00> : vector<128x128xf32>
    %54 = tpu.matmul %23, %53, %cst_30 {dimension_numbers = #tpu.dot_dimension_numbers<[1], [0], [0], [1], [0, 0, 1, 1], [], []>} : vector<128x128xbf16>, vector<128x128xbf16>, vector<128x128xf32> -> vector<128x128xf32>
    %55 = vector.broadcast %24 : vector<128x1xf32> to vector<128x128xf32>
    %56 = arith.mulf %54, %55 : vector<128x128xf32>
    %57 = arith.truncf %56 : vector<128x128xf32> to vector<128x128xbf16>
    %58 = tpu.concatenate %57, %25 in 1 : vector<128x128xbf16>, vector<128x8xbf16> -> vector<128x136xbf16>
    %cst_31 = arith.constant dense<0.000000e+00> : vector<128x256xf32>
    %59 = tpu.matmul %58, %50, %cst_31 {dimension_numbers = #tpu.dot_dimension_numbers<[1], [0], [0], [1], [0, 0, 1, 1], [], []>} : vector<128x136xbf16>, vector<136x256xbf16>, vector<128x256xf32> -> vector<128x256xf32>
    %60 = vector.extract_strided_slice %59 {offsets = [0, 0], sizes = [128, 128], strides = [1, 1]} : vector<128x256xf32> to vector<128x128xf32>
    %61 = arith.truncf %60 : vector<128x128xf32> to vector<128x128xbf16>
    %62 = vector.extract_strided_slice %59 {offsets = [0, 128], sizes = [128, 128], strides = [1, 1]} : vector<128x256xf32> to vector<128x128xf32>
    %63 = arith.truncf %62 : vector<128x128xf32> to vector<128x128xbf16>
    %cst_32 = arith.constant dense<0.000000e+00> : vector<128x128xf32>
    %64 = tpu.matmul %6, %61, %cst_32 {dimension_numbers = #tpu.dot_dimension_numbers<[1], [0], [0], [1], [0, 0, 1, 1], [], []>} : vector<128x128xbf16>, vector<128x128xbf16>, vector<128x128xf32> -> vector<128x128xf32>
    %cst_33 = arith.constant dense<0.000000e+00> : vector<128x128xf32>
    %65 = tpu.matmul %12, %63, %cst_33 {dimension_numbers = #tpu.dot_dimension_numbers<[1], [0], [0], [1], [0, 0, 1, 1], [], []>} : vector<128x128xbf16>, vector<128x128xbf16>, vector<128x128xf32> -> vector<128x128xf32>
    %66 = arith.addf %64, %65 : vector<128x128xf32>
    %cst_34 = arith.constant dense<0.000000e+00> : vector<128x128xf32>
    %67 = tpu.matmul %53, %51, %cst_34 {dimension_numbers = #tpu.dot_dimension_numbers<[1], [0], [0], [1], [0, 0, 1, 1], [], []>} : vector<128x128xbf16>, vector<128x128xbf16>, vector<128x128xf32> -> vector<128x128xf32>
    %68 = arith.addf %66, %67 : vector<128x128xf32>
    %69 = vector.broadcast %52 : vector<1x128xf32> to vector<128x128xf32>
    %70 = arith.addf %68, %69 : vector<128x128xf32>
    %cst_35 = arith.constant 0.000000e+00 : f32
    %71 = vector.broadcast %cst_35 : f32 to vector<128x128xf32>
    %72 = arith.maximumf %70, %71 : vector<128x128xf32>
    %c0_36 = arith.constant 0 : index
    %c0_37 = arith.constant 0 : index
    %73 = vector.load %arg14[%c0_36, %c0_37] : memref<136x256xbf16, #tpu.memory_space<vmem>>, vector<136x256xbf16>
    %c0_38 = arith.constant 0 : index
    %c0_39 = arith.constant 0 : index
    %74 = vector.load %arg15[%c0_38, %c0_39] : memref<128x128xbf16, #tpu.memory_space<vmem>>, vector<128x128xbf16>
    %c0_40 = arith.constant 0 : index
    %c0_41 = arith.constant 0 : index
    %75 = vector.load %arg16[%c0_40, %c0_41] : memref<1x128xf32, #tpu.memory_space<vmem>>, vector<1x128xf32>
    %76 = arith.truncf %72 : vector<128x128xf32> to vector<128x128xbf16>
    %cst_42 = arith.constant dense<0.000000e+00> : vector<128x128xf32>
    %77 = tpu.matmul %23, %76, %cst_42 {dimension_numbers = #tpu.dot_dimension_numbers<[1], [0], [0], [1], [0, 0, 1, 1], [], []>} : vector<128x128xbf16>, vector<128x128xbf16>, vector<128x128xf32> -> vector<128x128xf32>
    %78 = vector.broadcast %24 : vector<128x1xf32> to vector<128x128xf32>
    %79 = arith.mulf %77, %78 : vector<128x128xf32>
    %80 = arith.truncf %79 : vector<128x128xf32> to vector<128x128xbf16>
    %81 = tpu.concatenate %80, %25 in 1 : vector<128x128xbf16>, vector<128x8xbf16> -> vector<128x136xbf16>
    %cst_43 = arith.constant dense<0.000000e+00> : vector<128x256xf32>
    %82 = tpu.matmul %81, %73, %cst_43 {dimension_numbers = #tpu.dot_dimension_numbers<[1], [0], [0], [1], [0, 0, 1, 1], [], []>} : vector<128x136xbf16>, vector<136x256xbf16>, vector<128x256xf32> -> vector<128x256xf32>
    %83 = vector.extract_strided_slice %82 {offsets = [0, 0], sizes = [128, 128], strides = [1, 1]} : vector<128x256xf32> to vector<128x128xf32>
    %84 = arith.truncf %83 : vector<128x128xf32> to vector<128x128xbf16>
    %85 = vector.extract_strided_slice %82 {offsets = [0, 128], sizes = [128, 128], strides = [1, 1]} : vector<128x256xf32> to vector<128x128xf32>
    %86 = arith.truncf %85 : vector<128x128xf32> to vector<128x128xbf16>
    %cst_44 = arith.constant dense<0.000000e+00> : vector<128x128xf32>
    %87 = tpu.matmul %6, %84, %cst_44 {dimension_numbers = #tpu.dot_dimension_numbers<[1], [0], [0], [1], [0, 0, 1, 1], [], []>} : vector<128x128xbf16>, vector<128x128xbf16>, vector<128x128xf32> -> vector<128x128xf32>
    %cst_45 = arith.constant dense<0.000000e+00> : vector<128x128xf32>
    %88 = tpu.matmul %12, %86, %cst_45 {dimension_numbers = #tpu.dot_dimension_numbers<[1], [0], [0], [1], [0, 0, 1, 1], [], []>} : vector<128x128xbf16>, vector<128x128xbf16>, vector<128x128xf32> -> vector<128x128xf32>
    %89 = arith.addf %87, %88 : vector<128x128xf32>
    %cst_46 = arith.constant dense<0.000000e+00> : vector<128x128xf32>
    %90 = tpu.matmul %76, %74, %cst_46 {dimension_numbers = #tpu.dot_dimension_numbers<[1], [0], [0], [1], [0, 0, 1, 1], [], []>} : vector<128x128xbf16>, vector<128x128xbf16>, vector<128x128xf32> -> vector<128x128xf32>
    %91 = arith.addf %89, %90 : vector<128x128xf32>
    %92 = vector.broadcast %75 : vector<1x128xf32> to vector<128x128xf32>
    %93 = arith.addf %91, %92 : vector<128x128xf32>
    %cst_47 = arith.constant 0.000000e+00 : f32
    %94 = vector.broadcast %cst_47 : f32 to vector<128x128xf32>
    %95 = arith.maximumf %93, %94 : vector<128x128xf32>
    %c0_48 = arith.constant 0 : index
    %c0_49 = arith.constant 0 : index
    %96 = vector.load %arg17[%c0_48, %c0_49] : memref<128x128xf32, #tpu.memory_space<vmem>>, vector<128x128xf32>
    tpu.vector_store %arg17[%c0_48, %c0_49], %95 {strides = array<i32>} : memref<128x128xf32, #tpu.memory_space<vmem>>, vector<128x128xf32>,
    %97 = arith.truncf %95 : vector<128x128xf32> to vector<128x128xbf16>
    %cst_50 = arith.constant dense<0.000000e+00> : vector<128x128xf32>
    %98 = tpu.matmul %23, %97, %cst_50 {dimension_numbers = #tpu.dot_dimension_numbers<[1], [0], [0], [1], [0, 0, 1, 1], [], []>} : vector<128x128xbf16>, vector<128x128xbf16>, vector<128x128xf32> -> vector<128x128xf32>
    %99 = vector.broadcast %24 : vector<128x1xf32> to vector<128x128xf32>
    %100 = arith.mulf %98, %99 : vector<128x128xf32>
    %c0_51 = arith.constant 0 : index
    %c0_52 = arith.constant 0 : index
    %101 = vector.load %arg18[%c0_51, %c0_52] : memref<128x128xf32, #tpu.memory_space<vmem>>, vector<128x128xf32>
    tpu.vector_store %arg18[%c0_51, %c0_52], %100 {strides = array<i32>} : memref<128x128xf32, #tpu.memory_space<vmem>>, vector<128x128xf32>,
    %c0_53 = arith.constant 0 : index
    %c0_54 = arith.constant 0 : index
    %102 = vector.load %arg7[%c0_53, %c0_54] : memref<128x1xi32, #tpu.memory_space<vmem>>, vector<128x1xi32>
    %c0_i32 = arith.constant 0 : i32
    %103 = vector.broadcast %c0_i32 : i32 to vector<128x1xi32>
    %104 = arith.cmpi eq, %102, %103 : vector<128x1xi32>
    %cst_55 = arith.constant 0xFF800000 : f32
    %105 = vector.shape_cast %104 : vector<128x1xi1> to vector<128x1xi1>
    %106 = vector.broadcast %105 : vector<128x1xi1> to vector<128x128xi1>
    %107 = vector.broadcast %cst_55 : f32 to vector<128x128xf32>
    %108 = arith.select %106, %100, %107 : vector<128x128xi1>, vector<128x128xf32>
    %cst_56 = arith.constant dense<0xFF800000> : vector<128xf32>
    %109 = vector.multi_reduction <maximumf>, %108, %cst_56 [0] : vector<128x128xf32> to vector<128xf32>
    %110 = vector.shape_cast %109 : vector<128xf32> to vector<1x128xf32>
    %c1_i32 = arith.constant 1 : i32
    %111 = vector.broadcast %c1_i32 : i32 to vector<128x1xi32>
    %112 = arith.cmpi eq, %102, %111 : vector<128x1xi32>
    %cst_57 = arith.constant 0xFF800000 : f32
    %113 = vector.shape_cast %112 : vector<128x1xi1> to vector<128x1xi1>
    %114 = vector.broadcast %113 : vector<128x1xi1> to vector<128x128xi1>
    %115 = vector.broadcast %cst_57 : f32 to vector<128x128xf32>
    %116 = arith.select %114, %100, %115 : vector<128x128xi1>, vector<128x128xf32>
    %cst_58 = arith.constant dense<0xFF800000> : vector<128xf32>
    %117 = vector.multi_reduction <maximumf>, %116, %cst_58 [0] : vector<128x128xf32> to vector<128xf32>
    %118 = vector.shape_cast %117 : vector<128xf32> to vector<1x128xf32>
    %119 = tpu.concatenate %110, %118 in 0 : vector<1x128xf32>, vector<1x128xf32> -> vector<2x128xf32>
    %c0_59 = arith.constant 0 : index
    %c0_60 = arith.constant 0 : index
    %120 = vector.load %arg19[%c0_59, %c0_60] : memref<2x128xf32, #tpu.memory_space<vmem>>, vector<2x128xf32>
    tpu.vector_store %arg19[%c0_59, %c0_60], %119 {strides = array<i32>} : memref<2x128xf32, #tpu.memory_space<vmem>>, vector<2x128xf32>,
    return
  }
}

</mosaic_0001>

<llo_original>
// kernel: tpu_custom_call.1
$region0: #{tpu_custom_call.1}
  #allocation0 [shape = 'u32[]', space=smem, size = 0x4, offset = 0x4, fixed_abs, tag = 'smem constant byte address 0x4 - core index']
  #allocation1 [shape = 'u32[144,128]{1,0:T(1,128)}', space=vmem, size = 0x12000, scoped, tag = 'internal scratch']
  %s0 = inlined_call_operand.vmem [shape: f32[128,128], index: 0, kind: input, shape index: {}]
  %s1 = inlined_call_operand.vmem [shape: f32[1,128], index: 1, kind: input, shape index: {}]
  %s2 = inlined_call_operand.vmem [shape: s32[128,1], index: 2, kind: input, shape index: {}]
  %s3 = inlined_call_operand.vmem [shape: s32[128,1], index: 3, kind: input, shape index: {}]
  %s4 = inlined_call_operand.vmem [shape: s32[1,128], index: 4, kind: input, shape index: {}]
  %s5 = inlined_call_operand.vmem [shape: bf16[128,8], index: 5, kind: input, shape index: {}]
  %s6 = inlined_call_operand.vmem [shape: f32[128,1], index: 6, kind: input, shape index: {}]
  %s7 = inlined_call_operand.vmem [shape: s32[128,1], index: 7, kind: input, shape index: {}]
  %s8 = inlined_call_operand.vmem [shape: bf16[136,256], index: 8, kind: input, shape index: {}]
  %s9 = inlined_call_operand.hbm [shape: bf16[128,128], index: 9, kind: input, shape index: {}]
  %s10 = inlined_call_operand.vmem [shape: f32[1,128], index: 10, kind: input, shape index: {}]
  %s11 = inlined_call_operand.vmem [shape: bf16[136,256], index: 11, kind: input, shape index: {}]
  %s12 = inlined_call_operand.vmem [shape: bf16[128,128], index: 12, kind: input, shape index: {}]
  %s13 = inlined_call_operand.vmem [shape: f32[1,128], index: 13, kind: input, shape index: {}]
  %s14 = inlined_call_operand.vmem [shape: bf16[136,256], index: 14, kind: input, shape index: {}]
  %s15 = inlined_call_operand.hbm [shape: bf16[128,128], index: 15, kind: input, shape index: {}]
  %s16 = inlined_call_operand.vmem [shape: f32[1,128], index: 16, kind: input, shape index: {}]
  %s17 = inlined_call_operand.hbm [shape: f32[128,128], index: 17, kind: output, shape index: {0}]
  %s18 = inlined_call_operand.hbm [shape: f32[128,128], index: 18, kind: output, shape index: {1}]
  %s19 = inlined_call_operand.hbm [shape: f32[2,128], index: 19, kind: output, shape index: {2}]
  %20 = xla_tuple %s17, %s18, %s19
  %s21 = sld [smem:[#allocation0]]
  $region102: #{tpu_custom_call.1} parent=0
    _
  %s23 = ssub.s32 1, %s21
  %s24 = scalar_select 0, %s23, %s21
  $region1: #{tpu_custom_call.1} parent=0
    #allocation2 [shape = 'u8[32768]{0}', space=vmem, size = 0x8000, scoped, tag = 'input window, operand 9, single buffered']
    #allocation3 [shape = 's32[1]{0}', space=sflag, size = 0x4, scoped, tag = 'scoped memory for tpu_custom_call.1']
    #allocation4 [shape = 's32[1]{0}', space=sflag, size = 0x4, scoped, tag = 'scoped memory for tpu_custom_call.1']
    #allocation5 [shape = 'u8[32768]{0}', space=vmem, size = 0x8000, scoped, tag = 'input window, operand 15, single buffered']
    #allocation6 [shape = 's32[1]{0}', space=sflag, size = 0x4, scoped, tag = 'scoped memory for tpu_custom_call.1']
    #allocation7 [shape = 'u8[65536]{0}', space=vmem, size = 0x10000, scoped, tag = 'output window, operand 0, single buffered']
    #allocation8 [shape = 'u8[65536]{0}', space=vmem, size = 0x10000, scoped, tag = 'output window, operand 1, single buffered']
    #allocation9 [shape = 's32[1]{0}', space=sflag, size = 0x4, scoped, tag = 'scoped memory for tpu_custom_call.1']
    #allocation10 [shape = 'u8[1024]{0}', space=vmem, size = 0x400, scoped, tag = 'output window, operand 2, single buffered']
    %25 = vsyncpa [#allocation3], 0
    %26 = vsyncpa [#allocation6], 0
    %27 = vsyncpa [#allocation4], 0
    %28 = vsyncpa [#allocation9], 0
    // Predicated region
    $region2: #{tpu_custom_call.1} parent=1 // pred_check
      _
    $region3: #{tpu_custom_call.1} parent=1 // pred_check_branch
      %30 = sbr.rel (0) target = $region5
    $region4: #{tpu_custom_call.1} parent=1 // pred_region
      _
    $region5: #{tpu_custom_call.1} parent=1 // pred_fallthru
      _
    // Predicated region
    $region6: #{tpu_custom_call.1} parent=1 // pred_check
      _
    $region7: #{tpu_custom_call.1} parent=1 // pred_check_branch
      %32 = sbr.rel (0) target = $region9
    $region8: #{tpu_custom_call.1} parent=1 // pred_region
      _
    $region9: #{tpu_custom_call.1} parent=1 // pred_fallthru
      _
    // Predicated region
    $region10: #{tpu_custom_call.1} parent=1 // pred_check
      _
    $region11: #{tpu_custom_call.1} parent=1 // pred_check_branch
      %34 = sbr.rel (0) target = $region13
    $region12: #{tpu_custom_call.1} parent=1 // pred_region
      _
    $region13: #{tpu_custom_call.1} parent=1 // pred_fallthru
      _
    // Predicated region
    $region14: #{tpu_custom_call.1} parent=1 // pred_check
      _
    $region15: #{tpu_custom_call.1} parent=1 // pred_check_branch
      %36 = sbr.rel (0) target = $region17
    $region16: #{tpu_custom_call.1} parent=1 // pred_region
      _
    $region17: #{tpu_custom_call.1} parent=1 // pred_fallthru
      _
    // Predicated region
    $region18: #{tpu_custom_call.1} parent=1 // pred_check
      _
    $region19: #{tpu_custom_call.1} parent=1 // pred_check_branch
      %38 = sbr.rel (0) target = $region21
    $region20: #{tpu_custom_call.1} parent=1 // pred_region
      _
    $region21: #{tpu_custom_call.1} parent=1 // pred_fallthru
      _
    // Predicated region
    $region22: #{tpu_custom_call.1} parent=1 // pred_check
      _
    $region23: #{tpu_custom_call.1} parent=1 // pred_check_branch
      %40 = sbr.rel (0) target = $region25
    $region24: #{tpu_custom_call.1} parent=1 // pred_region
      _
    $region25: #{tpu_custom_call.1} parent=1 // pred_fallthru
      _
    // Predicated region
    $region26: #{tpu_custom_call.1} parent=1 // pred_check
      _
    $region27: #{tpu_custom_call.1} parent=1 // pred_check_branch
      %42 = sbr.rel (0) target = $region29
    $region28: #{tpu_custom_call.1} parent=1 // pred_region
      _
    $region29: #{tpu_custom_call.1} parent=1 // pred_fallthru
      _
    // Predicated region
    $region30: #{tpu_custom_call.1} parent=1 // pred_check
      _
    $region31: #{tpu_custom_call.1} parent=1 // pred_check_branch
      %44 = sbr.rel (0) target = $region33
    $region32: #{tpu_custom_call.1} parent=1 // pred_region
      _
    $region33: #{tpu_custom_call.1} parent=1 // pred_fallthru
      _
    // Predicated region
    $region34: #{tpu_custom_call.1} parent=1 // pred_check
      _
    $region35: #{tpu_custom_call.1} parent=1 // pred_check_branch
      %46 = sbr.rel (0) target = $region37
    $region36: #{tpu_custom_call.1} parent=1 // pred_region
      _
    $region37: #{tpu_custom_call.1} parent=1 // pred_fallthru
      _
    // Predicated region
    $region38: #{tpu_custom_call.1} parent=1 // pred_check
      _
    $region39: #{tpu_custom_call.1} parent=1 // pred_check_branch
      %48 = sbr.rel (0) target = $region41
    $region40: #{tpu_custom_call.1} parent=1 // pred_region
      %s50 = ssub.s32 1024, 1024
      %51 = vsyncadd [#allocation3], %s50
      %s52 = sshll.u32 [#allocation2], 4
      %s53 = int_to_ptr.vmem [resolvable:$true] %s52
      %58 = dma.hbm_to_vmem [thread:$0]  %s9, 1024, %s53, [#allocation3], 64, 64, 4
    $region41: #{tpu_custom_call.1} parent=1 // pred_fallthru
      _
    // Predicated region
    $region42: #{tpu_custom_call.1} parent=1 // pred_check
      _
    $region43: #{tpu_custom_call.1} parent=1 // pred_check_branch
      %60 = sbr.rel (0) target = $region45
    $region44: #{tpu_custom_call.1} parent=1 // pred_region
      _
    $region45: #{tpu_custom_call.1} parent=1 // pred_fallthru
      _
    // Predicated region
    $region46: #{tpu_custom_call.1} parent=1 // pred_check
      _
    $region47: #{tpu_custom_call.1} parent=1 // pred_check_branch
      %62 = sbr.rel (0) target = $region49
    $region48: #{tpu_custom_call.1} parent=1 // pred_region
      _
    $region49: #{tpu_custom_call.1} parent=1 // pred_fallthru
      _
    // Predicated region
    $region50: #{tpu_custom_call.1} parent=1 // pred_check
      _
    $region51: #{tpu_custom_call.1} parent=1 // pred_check_branch
      %64 = sbr.rel (0) target = $region53
    $region52: #{tpu_custom_call.1} parent=1 // pred_region
      _
    $region53: #{tpu_custom_call.1} parent=1 // pred_fallthru
      _
    // Predicated region
    $region54: #{tpu_custom_call.1} parent=1 // pred_check
      _
    $region55: #{tpu_custom_call.1} parent=1 // pred_check_branch
      %66 = sbr.rel (0) target = $region57
    $region56: #{tpu_custom_call.1} parent=1 // pred_region
      _
    $region57: #{tpu_custom_call.1} parent=1 // pred_fallthru
      _
    // Predicated region
    $region58: #{tpu_custom_call.1} parent=1 // pred_check
      _
    $region59: #{tpu_custom_call.1} parent=1 // pred_check_branch
      %68 = sbr.rel (0) target = $region61
    $region60: #{tpu_custom_call.1} parent=1 // pred_region
      _
    $region61: #{tpu_custom_call.1} parent=1 // pred_fallthru
      _
    // Predicated region
    $region62: #{tpu_custom_call.1} parent=1 // pred_check
      _
    $region63: #{tpu_custom_call.1} parent=1 // pred_check_branch
      %70 = sbr.rel (0) target = $region65
    $region64: #{tpu_custom_call.1} parent=1 // pred_region
      %s72 = ssub.s32 1024, 1024
      %73 = vsyncadd [#allocation6], %s72
      %s74 = sshll.u32 [#allocation5], 4
      %s75 = int_to_ptr.vmem [resolvable:$true] %s74
      %80 = dma.hbm_to_vmem [thread:$0]  %s15, 1024, %s75, [#allocation6], 64, 64, 4
    $region65: #{tpu_custom_call.1} parent=1 // pred_fallthru
      _
    // Predicated region
    $region66: #{tpu_custom_call.1} parent=1 // pred_check
      _
    $region67: #{tpu_custom_call.1} parent=1 // pred_check_branch
      %82 = sbr.rel (0) target = $region69
    $region68: #{tpu_custom_call.1} parent=1 // pred_region
      _
    $region69: #{tpu_custom_call.1} parent=1 // pred_fallthru
      _
    // Predicated region
    $region70: #{tpu_custom_call.1} parent=1 // pred_check
      _
    $region71: #{tpu_custom_call.1} parent=1 // pred_check_branch
      %84 = sbr.rel (0) target = $region73
    $region72: #{tpu_custom_call.1} parent=1 // pred_region
      %85 = dma.done [#allocation3], 1024
    $region73: #{tpu_custom_call.1} parent=1 // pred_fallthru
      _
    // Predicated region
    $region74: #{tpu_custom_call.1} parent=1 // pred_check
      _
    $region75: #{tpu_custom_call.1} parent=1 // pred_check_branch
      %87 = sbr.rel (0) target = $region77
    $region76: #{tpu_custom_call.1} parent=1 // pred_region
      %88 = dma.done [#allocation6], 1024
    $region77: #{tpu_custom_call.1} parent=1 // pred_fallthru
      _
    %v90 = vlaneseq
    %v91 = vand.u32 %v90, 127
    %v92 = vld [vmem:[%s2] sm:$0xff]
    %v93 = vld [vmem:[%s2 + $0x8] sm:$0xff]
    %v94 = vld [vmem:[%s2 + $0x10] sm:$0xff]
    %v95 = vld [vmem:[%s2 + $0x18] sm:$0xff]
    %v96 = vld [vmem:[%s2 + $0x20] sm:$0xff]
    %v97 = vld [vmem:[%s2 + $0x28] sm:$0xff]
    %v98 = vld [vmem:[%s2 + $0x30] sm:$0xff]
    %v99 = vld [vmem:[%s2 + $0x38] sm:$0xff]
    %v100 = vld [vmem:[%s2 + $0x40] sm:$0xff]
    %v101 = vld [vmem:[%s2 + $0x48] sm:$0xff]
    %v102 = vld [vmem:[%s2 + $0x50] sm:$0xff]
    %v103 = vld [vmem:[%s2 + $0x58] sm:$0xff]
    %v104 = vld [vmem:[%s2 + $0x60] sm:$0xff]
    %v105 = vld [vmem:[%s2 + $0x68] sm:$0xff]
    %v106 = vld [vmem:[%s2 + $0x70] sm:$0xff]
    %v107 = vld [vmem:[%s2 + $0x78] sm:$0xff]
    %108 = vset.pattern.permute.xlu0 0
    %109 = vperm.xlu0 %108, %v92
    %v110 = vpop.permute.xlu0 %109
    %111 = vset.pattern.permute.xlu0 0
    %112 = vperm.xlu0 %111, %v93
    %v113 = vpop.permute.xlu0 %112
    %114 = vset.pattern.permute.xlu0 0
    %115 = vperm.xlu0 %114, %v94
    %v116 = vpop.permute.xlu0 %115
    %117 = vset.pattern.permute.xlu0 0
    %118 = vperm.xlu0 %117, %v95
    %v119 = vpop.permute.xlu0 %118
    %120 = vset.pattern.permute.xlu0 0
    %121 = vperm.xlu0 %120, %v96
    %v122 = vpop.permute.xlu0 %121
    %123 = vset.pattern.permute.xlu0 0
    %124 = vperm.xlu0 %123, %v97
    %v125 = vpop.permute.xlu0 %124
    %126 = vset.pattern.permute.xlu0 0
    %127 = vperm.xlu0 %126, %v98
    %v128 = vpop.permute.xlu0 %127
    %129 = vset.pattern.permute.xlu0 0
    %130 = vperm.xlu0 %129, %v99
    %v131 = vpop.permute.xlu0 %130
    %132 = vset.pattern.permute.xlu0 0
    %133 = vperm.xlu0 %132, %v100
    %v134 = vpop.permute.xlu0 %133
    %135 = vset.pattern.permute.xlu0 0
    %136 = vperm.xlu0 %135, %v101
    %v137 = vpop.permute.xlu0 %136
    %138 = vset.pattern.permute.xlu0 0
    %139 = vperm.xlu0 %138, %v102
    %v140 = vpop.permute.xlu0 %139
    %141 = vset.pattern.permute.xlu0 0
    %142 = vperm.xlu0 %141, %v103
    %v143 = vpop.permute.xlu0 %142
    %144 = vset.pattern.permute.xlu0 0
    %145 = vperm.xlu0 %144, %v104
    %v146 = vpop.permute.xlu0 %145
    %147 = vset.pattern.permute.xlu0 0
    %148 = vperm.xlu0 %147, %v105
    %v149 = vpop.permute.xlu0 %148
    %150 = vset.pattern.permute.xlu0 0
    %151 = vperm.xlu0 %150, %v106
    %v152 = vpop.permute.xlu0 %151
    %153 = vset.pattern.permute.xlu0 0
    %154 = vperm.xlu0 %153, %v107
    %v155 = vpop.permute.xlu0 %154
    %vm156 = vcmp.eq.s32.totalorder %v110, %v91
    %vm157 = vcmp.eq.s32.totalorder %v113, %v91
    %vm158 = vcmp.eq.s32.totalorder %v116, %v91
    %vm159 = vcmp.eq.s32.totalorder %v119, %v91
    %vm160 = vcmp.eq.s32.totalorder %v122, %v91
    %vm161 = vcmp.eq.s32.totalorder %v125, %v91
    %vm162 = vcmp.eq.s32.totalorder %v128, %v91
    %vm163 = vcmp.eq.s32.totalorder %v131, %v91
    %vm164 = vcmp.eq.s32.totalorder %v134, %v91
    %vm165 = vcmp.eq.s32.totalorder %v137, %v91
    %vm166 = vcmp.eq.s32.totalorder %v140, %v91
    %vm167 = vcmp.eq.s32.totalorder %v143, %v91
    %vm168 = vcmp.eq.s32.totalorder %v146, %v91
    %vm169 = vcmp.eq.s32.totalorder %v149, %v91
    %vm170 = vcmp.eq.s32.totalorder %v152, %v91
    %vm171 = vcmp.eq.s32.totalorder %v155, %v91
    %v172 = vsel %vm156, 1, 0
    %v173 = vsel %vm157, 1, 0
    %v174 = vsel %vm158, 1, 0
    %v175 = vsel %vm159, 1, 0
    %v176 = vsel %vm160, 1, 0
    %v177 = vsel %vm161, 1, 0
    %v178 = vsel %vm162, 1, 0
    %v179 = vsel %vm163, 1, 0
    %v180 = vsel %vm164, 1, 0
    %v181 = vsel %vm165, 1, 0
    %v182 = vsel %vm166, 1, 0
    %v183 = vsel %vm167, 1, 0
    %v184 = vsel %vm168, 1, 0
    %v185 = vsel %vm169, 1, 0
    %v186 = vsel %vm170, 1, 0
    %v187 = vsel %vm171, 1, 0
    %v188 = vcvt.s32.f32 %v172
    %v189 = vcvt.s32.f32 %v173
    %v190 = vcvt.s32.f32 %v174
    %v191 = vcvt.s32.f32 %v175
    %v192 = vcvt.s32.f32 %v176
    %v193 = vcvt.s32.f32 %v177
    %v194 = vcvt.s32.f32 %v178
    %v195 = vcvt.s32.f32 %v179
    %v196 = vcvt.s32.f32 %v180
    %v197 = vcvt.s32.f32 %v181
    %v198 = vcvt.s32.f32 %v182
    %v199 = vcvt.s32.f32 %v183
    %v200 = vcvt.s32.f32 %v184
    %v201 = vcvt.s32.f32 %v185
    %v202 = vcvt.s32.f32 %v186
    %v203 = vcvt.s32.f32 %v187
    %v204 = vpack.c.bf16 %v189, %v188
    %v205 = vpack.c.bf16 %v191, %v190
    %v206 = vpack.c.bf16 %v193, %v192
    %v207 = vpack.c.bf16 %v195, %v194
    %v208 = vpack.c.bf16 %v197, %v196
    %v209 = vpack.c.bf16 %v199, %v198
    %v210 = vpack.c.bf16 %v201, %v200
    %v211 = vpack.c.bf16 %v203, %v202
    %v212 = vld [vmem:[%s3] sm:$0xff]
    %v213 = vld [vmem:[%s3 + $0x8] sm:$0xff]
    %v214 = vld [vmem:[%s3 + $0x10] sm:$0xff]
    %v215 = vld [vmem:[%s3 + $0x18] sm:$0xff]
    %v216 = vld [vmem:[%s3 + $0x20] sm:$0xff]
    %v217 = vld [vmem:[%s3 + $0x28] sm:$0xff]
    %v218 = vld [vmem:[%s3 + $0x30] sm:$0xff]
    %v219 = vld [vmem:[%s3 + $0x38] sm:$0xff]
    %v220 = vld [vmem:[%s3 + $0x40] sm:$0xff]
    %v221 = vld [vmem:[%s3 + $0x48] sm:$0xff]
    %v222 = vld [vmem:[%s3 + $0x50] sm:$0xff]
    %v223 = vld [vmem:[%s3 + $0x58] sm:$0xff]
    %v224 = vld [vmem:[%s3 + $0x60] sm:$0xff]
    %v225 = vld [vmem:[%s3 + $0x68] sm:$0xff]
    %v226 = vld [vmem:[%s3 + $0x70] sm:$0xff]
    %v227 = vld [vmem:[%s3 + $0x78] sm:$0xff]
    %228 = vset.pattern.permute.xlu0 0
    %229 = vperm.xlu0 %228, %v212
    %v230 = vpop.permute.xlu0 %229
    %231 = vset.pattern.permute.xlu0 0
    %232 = vperm.xlu0 %231, %v213
    %v233 = vpop.permute.xlu0 %232
    %234 = vset.pattern.permute.xlu0 0
    %235 = vperm.xlu0 %234, %v214
    %v236 = vpop.permute.xlu0 %235
    %237 = vset.pattern.permute.xlu0 0
    %238 = vperm.xlu0 %237, %v215
    %v239 = vpop.permute.xlu0 %238
    %240 = vset.pattern.permute.xlu0 0
    %241 = vperm.xlu0 %240, %v216
    %v242 = vpop.permute.xlu0 %241
    %243 = vset.pattern.permute.xlu0 0
    %244 = vperm.xlu0 %243, %v217
    %v245 = vpop.permute.xlu0 %244
    %246 = vset.pattern.permute.xlu0 0
    %247 = vperm.xlu0 %246, %v218
    %v248 = vpop.permute.xlu0 %247
    %249 = vset.pattern.permute.xlu0 0
    %250 = vperm.xlu0 %249, %v219
    %v251 = vpop.permute.xlu0 %250
    %252 = vset.pattern.permute.xlu0 0
    %253 = vperm.xlu0 %252, %v220
    %v254 = vpop.permute.xlu0 %253
    %255 = vset.pattern.permute.xlu0 0
    %256 = vperm.xlu0 %255, %v221
    %v257 = vpop.permute.xlu0 %256
    %258 = vset.pattern.permute.xlu0 0
    %259 = vperm.xlu0 %258, %v222
    %v260 = vpop.permute.xlu0 %259
    %261 = vset.pattern.permute.xlu0 0
    %262 = vperm.xlu0 %261, %v223
    %v263 = vpop.permute.xlu0 %262
    %264 = vset.pattern.permute.xlu0 0
    %265 = vperm.xlu0 %264, %v224
    %v266 = vpop.permute.xlu0 %265
    %267 = vset.pattern.permute.xlu0 0
    %268 = vperm.xlu0 %267, %v225
    %v269 = vpop.permute.xlu0 %268
    %270 = vset.pattern.permute.xlu0 0
    %271 = vperm.xlu0 %270, %v226
    %v272 = vpop.permute.xlu0 %271
    %273 = vset.pattern.permute.xlu0 0
    %274 = vperm.xlu0 %273, %v227
    %v275 = vpop.permute.xlu0 %274
    %vm276 = vcmp.eq.s32.totalorder %v230, %v91
    %vm277 = vcmp.eq.s32.totalorder %v233, %v91
    %vm278 = vcmp.eq.s32.totalorder %v236, %v91
    %vm279 = vcmp.eq.s32.totalorder %v239, %v91
    %vm280 = vcmp.eq.s32.totalorder %v242, %v91
    %vm281 = vcmp.eq.s32.totalorder %v245, %v91
    %vm282 = vcmp.eq.s32.totalorder %v248, %v91
    %vm283 = vcmp.eq.s32.totalorder %v251, %v91
    %vm284 = vcmp.eq.s32.totalorder %v254, %v91
    %vm285 = vcmp.eq.s32.totalorder %v257, %v91
    %vm286 = vcmp.eq.s32.totalorder %v260, %v91
    %vm287 = vcmp.eq.s32.totalorder %v263, %v91
    %vm288 = vcmp.eq.s32.totalorder %v266, %v91
    %vm289 = vcmp.eq.s32.totalorder %v269, %v91
    %vm290 = vcmp.eq.s32.totalorder %v272, %v91
    %vm291 = vcmp.eq.s32.totalorder %v275, %v91
    %v292 = vsel %vm276, 1, 0
    %v293 = vsel %vm277, 1, 0
    %v294 = vsel %vm278, 1, 0
    %v295 = vsel %vm279, 1, 0
    %v296 = vsel %vm280, 1, 0
    %v297 = vsel %vm281, 1, 0
    %v298 = vsel %vm282, 1, 0
    %v299 = vsel %vm283, 1, 0
    %v300 = vsel %vm284, 1, 0
    %v301 = vsel %vm285, 1, 0
    %v302 = vsel %vm286, 1, 0
    %v303 = vsel %vm287, 1, 0
    %v304 = vsel %vm288, 1, 0
    %v305 = vsel %vm289, 1, 0
    %v306 = vsel %vm290, 1, 0
    %v307 = vsel %vm291, 1, 0
    %v308 = vcvt.s32.f32 %v292
    %v309 = vcvt.s32.f32 %v293
    %v310 = vcvt.s32.f32 %v294
    %v311 = vcvt.s32.f32 %v295
    %v312 = vcvt.s32.f32 %v296
    %v313 = vcvt.s32.f32 %v297
    %v314 = vcvt.s32.f32 %v298
    %v315 = vcvt.s32.f32 %v299
    %v316 = vcvt.s32.f32 %v300
    %v317 = vcvt.s32.f32 %v301
    %v318 = vcvt.s32.f32 %v302
    %v319 = vcvt.s32.f32 %v303
    %v320 = vcvt.s32.f32 %v304
    %v321 = vcvt.s32.f32 %v305
    %v322 = vcvt.s32.f32 %v306
    %v323 = vcvt.s32.f32 %v307
    %v324 = vpack.c.bf16 %v309, %v308
    %v325 = vpack.c.bf16 %v311, %v310
    %v326 = vpack.c.bf16 %v313, %v312
    %v327 = vpack.c.bf16 %v315, %v314
    %v328 = vpack.c.bf16 %v317, %v316
    %v329 = vpack.c.bf16 %v319, %v318
    %v330 = vpack.c.bf16 %v321, %v320
    %v331 = vpack.c.bf16 %v323, %v322
    %v332 = vlaneseq
    %v333 = vshrl.u32 %v332, 7
    %v334 = vadd.s32 %v333, 8
    %v335 = vadd.s32 %v333, 16
    %v336 = vadd.s32 %v333, 24
    %v337 = vadd.s32 %v333, 32
    %v338 = vadd.s32 %v333, 40
    %v339 = vadd.s32 %v333, 48
    %v340 = vadd.s32 %v333, 56
    %v341 = vadd.s32 %v333, 64
    %v342 = vadd.s32 %v333, 72
    %v343 = vadd.s32 %v333, 80
    %v344 = vadd.s32 %v333, 88
    %v345 = vadd.s32 %v333, 96
    %v346 = vadd.s32 %v333, 104
    %v347 = vadd.s32 %v333, 112
    %v348 = vadd.s32 %v333, 120
    %v349 = vld [vmem:[%s1] sm:$0x1]
    %v350 = vpack.c.bf16 %v349, %v349
    %v351 = vld [vmem:[%s4] sm:$0x1]
    %v352 = vlaneseq
    %v353 = vshrl.u32 %v352, 7
    %v354 = vsub.s32 0, %v353
    %v355 = vrot.slane %v351, %v354
    %vm356 = vcmp.eq.s32.totalorder %v355, %v333
    %vm357 = vcmp.eq.s32.totalorder %v355, %v334
    %vm358 = vcmp.eq.s32.totalorder %v355, %v335
    %vm359 = vcmp.eq.s32.totalorder %v355, %v336
    %vm360 = vcmp.eq.s32.totalorder %v355, %v337
    %vm361 = vcmp.eq.s32.totalorder %v355, %v338
    %vm362 = vcmp.eq.s32.totalorder %v355, %v339
    %vm363 = vcmp.eq.s32.totalorder %v355, %v340
    %vm364 = vcmp.eq.s32.totalorder %v355, %v341
    %vm365 = vcmp.eq.s32.totalorder %v355, %v342
    %vm366 = vcmp.eq.s32.totalorder %v355, %v343
    %vm367 = vcmp.eq.s32.totalorder %v355, %v344
    %vm368 = vcmp.eq.s32.totalorder %v355, %v345
    %vm369 = vcmp.eq.s32.totalorder %v355, %v346
    %vm370 = vcmp.eq.s32.totalorder %v355, %v347
    %vm371 = vcmp.eq.s32.totalorder %v355, %v348
    %v372 = vsel %vm356, 1, 0
    %v373 = vsel %vm357, 1, 0
    %v374 = vsel %vm358, 1, 0
    %v375 = vsel %vm359, 1, 0
    %v376 = vsel %vm360, 1, 0
    %v377 = vsel %vm361, 1, 0
    %v378 = vsel %vm362, 1, 0
    %v379 = vsel %vm363, 1, 0
    %v380 = vsel %vm364, 1, 0
    %v381 = vsel %vm365, 1, 0
    %v382 = vsel %vm366, 1, 0
    %v383 = vsel %vm367, 1, 0
    %v384 = vsel %vm368, 1, 0
    %v385 = vsel %vm369, 1, 0
    %v386 = vsel %vm370, 1, 0
    %v387 = vsel %vm371, 1, 0
    %v388 = vcvt.s32.f32 %v372
    %v389 = vcvt.s32.f32 %v373
    %v390 = vcvt.s32.f32 %v374
    %v391 = vcvt.s32.f32 %v375
    %v392 = vcvt.s32.f32 %v376
    %v393 = vcvt.s32.f32 %v377
    %v394 = vcvt.s32.f32 %v378
    %v395 = vcvt.s32.f32 %v379
    %v396 = vcvt.s32.f32 %v380
    %v397 = vcvt.s32.f32 %v381
    %v398 = vcvt.s32.f32 %v382
    %v399 = vcvt.s32.f32 %v383
    %v400 = vcvt.s32.f32 %v384
    %v401 = vcvt.s32.f32 %v385
    %v402 = vcvt.s32.f32 %v386
    %v403 = vcvt.s32.f32 %v387
    %v404 = vpack.c.bf16 %v389, %v388
    %v405 = vpack.c.bf16 %v391, %v390
    %v406 = vpack.c.bf16 %v393, %v392
    %v407 = vpack.c.bf16 %v395, %v394
    %v408 = vpack.c.bf16 %v397, %v396
    %v409 = vpack.c.bf16 %v399, %v398
    %v410 = vpack.c.bf16 %v401, %v400
    %v411 = vpack.c.bf16 %v403, %v402
    %v413 = vpack.i.b16 %v350, %v350
    %v415 = vlaneseq
    %v416 = vshrl.u32 %v415, 7
    %v417 = vsub.s32 0, %v416
    %v418 = vrot.slane %v413, %v417
    %v419 = vmul.bf16 %v404, %v418
    %v420 = vmul.bf16 %v405, %v418
    %v421 = vmul.bf16 %v406, %v418
    %v422 = vmul.bf16 %v407, %v418
    %v423 = vmul.bf16 %v408, %v418
    %v424 = vmul.bf16 %v409, %v418
    %v425 = vmul.bf16 %v410, %v418
    %v426 = vmul.bf16 %v411, %v418
    %v427 = vld [vmem:[%s6] sm:$0xff]
    %v428 = vld [vmem:[%s6 + $0x8] sm:$0xff]
    %v429 = vld [vmem:[%s6 + $0x10] sm:$0xff]
    %v430 = vld [vmem:[%s6 + $0x18] sm:$0xff]
    %v431 = vld [vmem:[%s6 + $0x20] sm:$0xff]
    %v432 = vld [vmem:[%s6 + $0x28] sm:$0xff]
    %v433 = vld [vmem:[%s6 + $0x30] sm:$0xff]
    %v434 = vld [vmem:[%s6 + $0x38] sm:$0xff]
    %v435 = vld [vmem:[%s6 + $0x40] sm:$0xff]
    %v436 = vld [vmem:[%s6 + $0x48] sm:$0xff]
    %v437 = vld [vmem:[%s6 + $0x50] sm:$0xff]
    %v438 = vld [vmem:[%s6 + $0x58] sm:$0xff]
    %v439 = vld [vmem:[%s6 + $0x60] sm:$0xff]
    %v440 = vld [vmem:[%s6 + $0x68] sm:$0xff]
    %v441 = vld [vmem:[%s6 + $0x70] sm:$0xff]
    %v442 = vld [vmem:[%s6 + $0x78] sm:$0xff]
    %v443 = vld [vmem:[%s5] sm:$0xf]
    %v444 = vld [vmem:[%s5 + $0x4] sm:$0xf]
    %v445 = vld [vmem:[%s5 + $0x8] sm:$0xf]
    %v446 = vld [vmem:[%s5 + $0xc] sm:$0xf]
    %v447 = vld [vmem:[%s5 + $0x10] sm:$0xf]
    %v448 = vld [vmem:[%s5 + $0x14] sm:$0xf]
    %v449 = vld [vmem:[%s5 + $0x18] sm:$0xf]
    %v450 = vld [vmem:[%s5 + $0x1c] sm:$0xf]
    %v451 = vld [vmem:[%s5 + $0x20] sm:$0xf]
    %v452 = vld [vmem:[%s5 + $0x24] sm:$0xf]
    %v453 = vld [vmem:[%s5 + $0x28] sm:$0xf]
    %v454 = vld [vmem:[%s5 + $0x2c] sm:$0xf]
    %v455 = vld [vmem:[%s5 + $0x30] sm:$0xf]
    %v456 = vld [vmem:[%s5 + $0x34] sm:$0xf]
    %v457 = vld [vmem:[%s5 + $0x38] sm:$0xf]
    %v458 = vld [vmem:[%s5 + $0x3c] sm:$0xf]
    %v459 = vld [vmem:[%s0] sm:$0xff]
    %v460 = vld [vmem:[%s0 + $0x8] sm:$0xff]
    %v461 = vld [vmem:[%s0 + $0x10] sm:$0xff]
    %v462 = vld [vmem:[%s0 + $0x18] sm:$0xff]
    %v463 = vld [vmem:[%s0 + $0x20] sm:$0xff]
    %v464 = vld [vmem:[%s0 + $0x28] sm:$0xff]
    %v465 = vld [vmem:[%s0 + $0x30] sm:$0xff]
    %v466 = vld [vmem:[%s0 + $0x38] sm:$0xff]
    %v467 = vld [vmem:[%s0 + $0x40] sm:$0xff]
    %v468 = vld [vmem:[%s0 + $0x48] sm:$0xff]
    %v469 = vld [vmem:[%s0 + $0x50] sm:$0xff]
    %v470 = vld [vmem:[%s0 + $0x58] sm:$0xff]
    %v471 = vld [vmem:[%s0 + $0x60] sm:$0xff]
    %v472 = vld [vmem:[%s0 + $0x68] sm:$0xff]
    %v473 = vld [vmem:[%s0 + $0x70] sm:$0xff]
    %v474 = vld [vmem:[%s0 + $0x78] sm:$0xff]
    %v475 = vld [vmem:[%s8] sm:$0xff]
    %v476 = vld [vmem:[%s8 + $0x8] sm:$0xff]
    %v477 = vld [vmem:[%s8 + $0x10] sm:$0xff]
    %v478 = vld [vmem:[%s8 + $0x18] sm:$0xff]
    %v479 = vld [vmem:[%s8 + $0x20] sm:$0xff]
    %v480 = vld [vmem:[%s8 + $0x28] sm:$0xff]
    %v481 = vld [vmem:[%s8 + $0x30] sm:$0xff]
    %v482 = vld [vmem:[%s8 + $0x38] sm:$0xff]
    %v483 = vld [vmem:[%s8 + $0x40] sm:$0xff]
    %v484 = vld [vmem:[%s8 + $0x48] sm:$0xff]
    %v485 = vld [vmem:[%s8 + $0x50] sm:$0xff]
    %v486 = vld [vmem:[%s8 + $0x58] sm:$0xff]
    %v487 = vld [vmem:[%s8 + $0x60] sm:$0xff]
    %v488 = vld [vmem:[%s8 + $0x68] sm:$0xff]
    %v489 = vld [vmem:[%s8 + $0x70] sm:$0xff]
    %v490 = vld [vmem:[%s8 + $0x78] sm:$0xff]
    %v491 = vld [vmem:[%s8 + $0x80] sm:$0xff]
    %v492 = vld [vmem:[#allocation2] sm:$0xf]
    %v493 = vld [vmem:[#allocation2 + $0x4] sm:$0xf]
    %v494 = vld [vmem:[#allocation2 + $0x8] sm:$0xf]
    %v495 = vld [vmem:[#allocation2 + $0xc] sm:$0xf]
    %v496 = vld [vmem:[#allocation2 + $0x10] sm:$0xf]
    %v497 = vld [vmem:[#allocation2 + $0x14] sm:$0xf]
    %v498 = vld [vmem:[#allocation2 + $0x18] sm:$0xf]
    %v499 = vld [vmem:[#allocation2 + $0x1c] sm:$0xf]
    %v500 = vld [vmem:[#allocation2 + $0x20] sm:$0xf]
    %v501 = vld [vmem:[#allocation2 + $0x24] sm:$0xf]
    %v502 = vld [vmem:[#allocation2 + $0x28] sm:$0xf]
    %v503 = vld [vmem:[#allocation2 + $0x2c] sm:$0xf]
    %v504 = vld [vmem:[#allocation2 + $0x30] sm:$0xf]
    %v505 = vld [vmem:[#allocation2 + $0x34] sm:$0xf]
    %v506 = vld [vmem:[#allocation2 + $0x38] sm:$0xf]
    %v507 = vld [vmem:[#allocation2 + $0x3c] sm:$0xf]
    %v508 = vld [vmem:[%s10] sm:$0x1]
    %v509 = vpack.c.bf16 %v460, %v459
    %v510 = vpack.c.bf16 %v462, %v461
    %v511 = vpack.c.bf16 %v464, %v463
    %v512 = vpack.c.bf16 %v466, %v465
    %v513 = vpack.c.bf16 %v468, %v467
    %v514 = vpack.c.bf16 %v470, %v469
    %v515 = vpack.c.bf16 %v472, %v471
    %v516 = vpack.c.bf16 %v474, %v473
    %517 = vmatprep.subr.bf16.mxu0 0
    %518 = vmatpush1.bf16.msra.mxu0 %v516
    %519 = vmatprep.subr.bf16.mxu0 0
    %520 = vmatpush1.bf16.msra.mxu0 %v515
    %521 = vmatprep.subr.bf16.mxu0 0
    %522 = vmatpush1.bf16.msra.mxu0 %v514
    %523 = vmatprep.subr.bf16.mxu0 0
    %524 = vmatpush1.bf16.msra.mxu0 %v513
    %525 = vmatprep.subr.bf16.mxu0 0
    %526 = vmatpush1.bf16.msra.mxu0 %v512
    %527 = vmatprep.subr.bf16.mxu0 0
    %528 = vmatpush1.bf16.msra.mxu0 %v511
    %529 = vmatprep.subr.bf16.mxu0 0
    %530 = vmatpush1.bf16.msra.mxu0 %v510
    %531 = vmatprep.subr.bf16.mxu0 0
    %532 = vmatpush1.bf16.msra.mxu0 %v509
    %533 = vmatprep.subr.bf16.mxu0 0
    %534 = vmatpush2.bf16.msra.mxu0 0
    %535 = vmatprep.subr.bf16.mxu0 0
    %536 = vmatpush2.bf16.msra.mxu0 0
    %537 = vmatprep.subr.bf16.mxu0 0
    %538 = vmatpush2.bf16.msra.mxu0 0
    %539 = vmatprep.subr.bf16.mxu0 0
    %540 = vmatpush2.bf16.msra.mxu0 0
    %541 = vmatprep.subr.bf16.mxu0 0
    %542 = vmatpush2.bf16.msra.mxu0 0
    %543 = vmatprep.subr.bf16.mxu0 0
    %544 = vmatpush2.bf16.msra.mxu0 0
    %545 = vmatprep.subr.bf16.mxu0 0
    %546 = vmatpush2.bf16.msra.mxu0 0
    %547 = vmatprep.subr.bf16.mxu0 0
    %548 = vmatpush2.bf16.msra.mxu0 0
    %549 = vmatprep.mubr.bf16.mxu0 0
    %550 = vmatmul.mubr.bf16.gmra.mxu0 %v419
    %v551 = vpop.f32.mrf.mxu0
    %v552 = vadd.f32 0.0, %v551
    %v553 = vpop.f32.mrf.mxu0
    %v554 = vpop.f32.mrf.mxu0
    %v555 = vadd.f32 0.0, %v554
    %v556 = vpop.f32.mrf.mxu0
    %557 = vmatprep.mubr.bf16.mxu0 0
    %558 = vmatmul.mubr.bf16.gmra.mxu0 %v420
    %v559 = vpop.f32.mrf.mxu0
    %v560 = vadd.f32 0.0, %v559
    %v561 = vpop.f32.mrf.mxu0
    %v562 = vpop.f32.mrf.mxu0
    %v563 = vadd.f32 0.0, %v562
    %v564 = vpop.f32.mrf.mxu0
    %565 = vmatprep.mubr.bf16.mxu0 0
    %566 = vmatmul.mubr.bf16.gmra.mxu0 %v421
    %v567 = vpop.f32.mrf.mxu0
    %v568 = vadd.f32 0.0, %v567
    %v569 = vpop.f32.mrf.mxu0
    %v570 = vpop.f32.mrf.mxu0
    %v571 = vadd.f32 0.0, %v570
    %v572 = vpop.f32.mrf.mxu0
    %573 = vmatprep.mubr.bf16.mxu0 0
    %574 = vmatmul.mubr.bf16.gmra.mxu0 %v422
    %v575 = vpop.f32.mrf.mxu0
    %v576 = vadd.f32 0.0, %v575
    %v577 = vpop.f32.mrf.mxu0
    %v578 = vpop.f32.mrf.mxu0
    %v579 = vadd.f32 0.0, %v578
    %v580 = vpop.f32.mrf.mxu0
    %581 = vmatprep.mubr.bf16.mxu0 0
    %582 = vmatmul.mubr.bf16.gmra.mxu0 %v423
    %v583 = vpop.f32.mrf.mxu0
    %v584 = vadd.f32 0.0, %v583
    %v585 = vpop.f32.mrf.mxu0
    %v586 = vpop.f32.mrf.mxu0
    %v587 = vadd.f32 0.0, %v586
    %v588 = vpop.f32.mrf.mxu0
    %589 = vmatprep.mubr.bf16.mxu0 0
    %590 = vmatmul.mubr.bf16.gmra.mxu0 %v424
    %v591 = vpop.f32.mrf.mxu0
    %v592 = vadd.f32 0.0, %v591
    %v593 = vpop.f32.mrf.mxu0
    %v594 = vpop.f32.mrf.mxu0
    %v595 = vadd.f32 0.0, %v594
    %v596 = vpop.f32.mrf.mxu0
    %597 = vmatprep.mubr.bf16.mxu0 0
    %598 = vmatmul.mubr.bf16.gmra.mxu0 %v425
    %v599 = vpop.f32.mrf.mxu0
    %v600 = vadd.f32 0.0, %v599
    %v601 = vpop.f32.mrf.mxu0
    %v602 = vpop.f32.mrf.mxu0
    %v603 = vadd.f32 0.0, %v602
    %v604 = vpop.f32.mrf.mxu0
    %605 = vmatprep.mubr.bf16.mxu0 0
    %606 = vmatmul.mubr.bf16.gmra.mxu0 %v426
    %v607 = vpop.f32.mrf.mxu0
    %v608 = vadd.f32 0.0, %v607
    %v609 = vpop.f32.mrf.mxu0
    %v610 = vpop.f32.mrf.mxu0
    %v611 = vadd.f32 0.0, %v610
    %v612 = vpop.f32.mrf.mxu0
    %613 = vdwg.mxu0
    %615 = vset.pattern.permute.xlu0 0
    %616 = vperm.xlu0 %615, %v427
    %v617 = vpop.permute.xlu0 %616
    %620 = vset.pattern.permute.xlu0 0
    %621 = vperm.xlu0 %620, %v428
    %v622 = vpop.permute.xlu0 %621
    %625 = vset.pattern.permute.xlu0 0
    %626 = vperm.xlu0 %625, %v429
    %v627 = vpop.permute.xlu0 %626
    %630 = vset.pattern.permute.xlu0 0
    %631 = vperm.xlu0 %630, %v430
    %v632 = vpop.permute.xlu0 %631
    %635 = vset.pattern.permute.xlu0 0
    %636 = vperm.xlu0 %635, %v431
    %v637 = vpop.permute.xlu0 %636
    %640 = vset.pattern.permute.xlu0 0
    %641 = vperm.xlu0 %640, %v432
    %v642 = vpop.permute.xlu0 %641
    %645 = vset.pattern.permute.xlu0 0
    %646 = vperm.xlu0 %645, %v433
    %v647 = vpop.permute.xlu0 %646
    %650 = vset.pattern.permute.xlu0 0
    %651 = vperm.xlu0 %650, %v434
    %v652 = vpop.permute.xlu0 %651
    %655 = vset.pattern.permute.xlu0 0
    %656 = vperm.xlu0 %655, %v435
    %v657 = vpop.permute.xlu0 %656
    %660 = vset.pattern.permute.xlu0 0
    %661 = vperm.xlu0 %660, %v436
    %v662 = vpop.permute.xlu0 %661
    %665 = vset.pattern.permute.xlu0 0
    %666 = vperm.xlu0 %665, %v437
    %v667 = vpop.permute.xlu0 %666
    %670 = vset.pattern.permute.xlu0 0
    %671 = vperm.xlu0 %670, %v438
    %v672 = vpop.permute.xlu0 %671
    %675 = vset.pattern.permute.xlu0 0
    %676 = vperm.xlu0 %675, %v439
    %v677 = vpop.permute.xlu0 %676
    %680 = vset.pattern.permute.xlu0 0
    %681 = vperm.xlu0 %680, %v440
    %v682 = vpop.permute.xlu0 %681
    %685 = vset.pattern.permute.xlu0 0
    %686 = vperm.xlu0 %685, %v441
    %v687 = vpop.permute.xlu0 %686
    %690 = vset.pattern.permute.xlu0 0
    %691 = vperm.xlu0 %690, %v442
    %v692 = vpop.permute.xlu0 %691
    %v694 = vmul.f32 %v552, %v617
    %v695 = vmul.f32 %v555, %v622
    %v696 = vmul.f32 %v560, %v627
    %v697 = vmul.f32 %v563, %v632
    %v698 = vmul.f32 %v568, %v637
    %v699 = vmul.f32 %v571, %v642
    %v700 = vmul.f32 %v576, %v647
    %v701 = vmul.f32 %v579, %v652
    %v702 = vmul.f32 %v584, %v657
    %v703 = vmul.f32 %v587, %v662
    %v704 = vmul.f32 %v592, %v667
    %v705 = vmul.f32 %v595, %v672
    %v706 = vmul.f32 %v600, %v677
    %v707 = vmul.f32 %v603, %v682
    %v708 = vmul.f32 %v608, %v687
    %v709 = vmul.f32 %v611, %v692
    %v710 = vpack.c.bf16 %v695, %v694
    %v711 = vpack.c.bf16 %v697, %v696
    %v712 = vpack.c.bf16 %v699, %v698
    %v713 = vpack.c.bf16 %v701, %v700
    %v714 = vpack.c.bf16 %v703, %v702
    %v715 = vpack.c.bf16 %v705, %v704
    %v716 = vpack.c.bf16 %v707, %v706
    %v717 = vpack.c.bf16 %v709, %v708
    %v734 = vunpack.c.l.b16 %v443
    %v735 = vunpack.c.l.b16 %v444
    %v736 = vunpack.c.l.b16 %v445
    %v737 = vunpack.c.l.b16 %v446
    %v738 = vunpack.c.l.b16 %v447
    %v739 = vunpack.c.l.b16 %v448
    %v740 = vunpack.c.l.b16 %v449
    %v741 = vunpack.c.l.b16 %v450
    %v742 = vunpack.c.l.b16 %v451
    %v743 = vunpack.c.l.b16 %v452
    %v744 = vunpack.c.l.b16 %v453
    %v745 = vunpack.c.l.b16 %v454
    %v746 = vunpack.c.l.b16 %v455
    %v747 = vunpack.c.l.b16 %v456
    %v748 = vunpack.c.l.b16 %v457
    %v749 = vunpack.c.l.b16 %v458
    %v750 = vpack.c.b16 %v735, %v734
    %v751 = vpack.c.b16 %v737, %v736
    %v752 = vpack.c.b16 %v739, %v738
    %v753 = vpack.c.b16 %v741, %v740
    %v754 = vpack.c.b16 %v743, %v742
    %v755 = vpack.c.b16 %v745, %v744
    %v756 = vpack.c.b16 %v747, %v746
    %v757 = vpack.c.b16 %v749, %v748
    %v775 = vunpack.c.l.b16 %v475
    %v776 = vunpack.c.h.b16 %v475
    %v777 = vunpack.c.l.b16 %v476
    %v778 = vunpack.c.h.b16 %v476
    %v779 = vunpack.c.l.b16 %v477
    %v780 = vunpack.c.h.b16 %v477
    %v781 = vunpack.c.l.b16 %v478
    %v782 = vunpack.c.h.b16 %v478
    %v783 = vunpack.c.l.b16 %v479
    %v784 = vunpack.c.h.b16 %v479
    %v785 = vunpack.c.l.b16 %v480
    %v786 = vunpack.c.h.b16 %v480
    %v787 = vunpack.c.l.b16 %v481
    %v788 = vunpack.c.h.b16 %v481
    %v789 = vunpack.c.l.b16 %v482
    %v790 = vunpack.c.h.b16 %v482
    %v791 = vunpack.c.l.b16 %v483
    %v792 = vunpack.c.h.b16 %v483
    %v793 = vunpack.c.l.b16 %v484
    %v794 = vunpack.c.h.b16 %v484
    %v795 = vunpack.c.l.b16 %v485
    %v796 = vunpack.c.h.b16 %v485
    %v797 = vunpack.c.l.b16 %v486
    %v798 = vunpack.c.h.b16 %v486
    %v799 = vunpack.c.l.b16 %v487
    %v800 = vunpack.c.h.b16 %v487
    %v801 = vunpack.c.l.b16 %v488
    %v802 = vunpack.c.h.b16 %v488
    %v803 = vunpack.c.l.b16 %v489
    %v804 = vunpack.c.h.b16 %v489
    %v805 = vunpack.c.l.b16 %v490
    %v806 = vunpack.c.h.b16 %v490
    %v807 = vunpack.c.l.b16 %v491
    %v808 = vunpack.c.h.b16 %v491
    %v809 = vpack.c.b16 %v777, %v775
    %v810 = vpack.c.b16 %v778, %v776
    %v811 = vpack.c.b16 %v781, %v779
    %v812 = vpack.c.b16 %v782, %v780
    %v813 = vpack.c.b16 %v785, %v783
    %v814 = vpack.c.b16 %v786, %v784
    %v815 = vpack.c.b16 %v789, %v787
    %v816 = vpack.c.b16 %v790, %v788
    %v817 = vpack.c.b16 %v793, %v791
    %v818 = vpack.c.b16 %v794, %v792
    %v819 = vpack.c.b16 %v797, %v795
    %v820 = vpack.c.b16 %v798, %v796
    %v821 = vpack.c.b16 %v801, %v799
    %v822 = vpack.c.b16 %v802, %v800
    %v823 = vpack.c.b16 %v805, %v803
    %v824 = vpack.c.b16 %v806, %v804
    %v825 = vpack.c.b16 %v807, %v807
    %v826 = vpack.c.b16 %v808, %v808
    %vm843 = vcmask 64512
    %v845 = vsel %vm843, %v750, 0
    %v848 = vsel %vm843, %v751, 0
    %v851 = vsel %vm843, %v752, 0
    %v854 = vsel %vm843, %v753, 0
    %v857 = vsel %vm843, %v754, 0
    %v860 = vsel %vm843, %v755, 0
    %v863 = vsel %vm843, %v756, 0
    %v866 = vsel %vm843, %v757, 0
    %vm868 = vcmask 1043456
    %v870 = vsel %vm868, %v825, 0
    %v873 = vsel %vm868, %v826, 0
    %875 = vmatprep.subr.bf16.mxu0 %v824
    %876 = vmatpush1.bf16.msra.mxu0 %v823
    %877 = vmatprep.subr.bf16.mxu0 %v822
    %878 = vmatpush1.bf16.msra.mxu0 %v821
    %879 = vmatprep.subr.bf16.mxu0 %v820
    %880 = vmatpush1.bf16.msra.mxu0 %v819
    %881 = vmatprep.subr.bf16.mxu0 %v818
    %882 = vmatpush1.bf16.msra.mxu0 %v817
    %883 = vmatprep.subr.bf16.mxu0 %v816
    %884 = vmatpush1.bf16.msra.mxu0 %v815
    %885 = vmatprep.subr.bf16.mxu0 %v814
    %886 = vmatpush1.bf16.msra.mxu0 %v813
    %887 = vmatprep.subr.bf16.mxu0 %v812
    %888 = vmatpush1.bf16.msra.mxu0 %v811
    %889 = vmatprep.subr.bf16.mxu0 %v810
    %890 = vmatpush1.bf16.msra.mxu0 %v809
    %891 = vmatprep.subr.bf16.mxu0 0
    %892 = vmatpush2.bf16.msra.mxu0 0
    %893 = vmatprep.subr.bf16.mxu0 0
    %894 = vmatpush2.bf16.msra.mxu0 0
    %895 = vmatprep.subr.bf16.mxu0 0
    %896 = vmatpush2.bf16.msra.mxu0 0
    %897 = vmatprep.subr.bf16.mxu0 0
    %898 = vmatpush2.bf16.msra.mxu0 0
    %899 = vmatprep.subr.bf16.mxu0 0
    %900 = vmatpush2.bf16.msra.mxu0 0
    %901 = vmatprep.subr.bf16.mxu0 0
    %902 = vmatpush2.bf16.msra.mxu0 0
    %903 = vmatprep.subr.bf16.mxu0 0
    %904 = vmatpush2.bf16.msra.mxu0 0
    %905 = vmatprep.subr.bf16.mxu0 %v873
    %906 = vmatpush2.bf16.msra.mxu0 %v870
    %907 = vmatprep.mubr.bf16.mxu0 %v845
    %908 = vmatmul.mubr.bf16.gmra.mxu0 %v710
    %v909 = vpop.f32.mrf.mxu0
    %v910 = vadd.f32 0.0, %v909
    %v911 = vpop.f32.mrf.mxu0
    %v912 = vadd.f32 0.0, %v911
    %v913 = vpop.f32.mrf.mxu0
    %v914 = vadd.f32 0.0, %v913
    %v915 = vpop.f32.mrf.mxu0
    %v916 = vadd.f32 0.0, %v915
    %917 = vmatprep.mubr.bf16.mxu0 %v848
    %918 = vmatmul.mubr.bf16.gmra.mxu0 %v711
    %v919 = vpop.f32.mrf.mxu0
    %v920 = vadd.f32 0.0, %v919
    %v921 = vpop.f32.mrf.mxu0
    %v922 = vadd.f32 0.0, %v921
    %v923 = vpop.f32.mrf.mxu0
    %v924 = vadd.f32 0.0, %v923
    %v925 = vpop.f32.mrf.mxu0
    %v926 = vadd.f32 0.0, %v925
    %927 = vmatprep.mubr.bf16.mxu0 %v851
    %928 = vmatmul.mubr.bf16.gmra.mxu0 %v712
    %v929 = vpop.f32.mrf.mxu0
    %v930 = vadd.f32 0.0, %v929
    %v931 = vpop.f32.mrf.mxu0
    %v932 = vadd.f32 0.0, %v931
    %v933 = vpop.f32.mrf.mxu0
    %v934 = vadd.f32 0.0, %v933
    %v935 = vpop.f32.mrf.mxu0
    %v936 = vadd.f32 0.0, %v935
    %937 = vmatprep.mubr.bf16.mxu0 %v854
    %938 = vmatmul.mubr.bf16.gmra.mxu0 %v713
    %v939 = vpop.f32.mrf.mxu0
    %v940 = vadd.f32 0.0, %v939
    %v941 = vpop.f32.mrf.mxu0
    %v942 = vadd.f32 0.0, %v941
    %v943 = vpop.f32.mrf.mxu0
    %v944 = vadd.f32 0.0, %v943
    %v945 = vpop.f32.mrf.mxu0
    %v946 = vadd.f32 0.0, %v945
    %947 = vmatprep.mubr.bf16.mxu0 %v857
    %948 = vmatmul.mubr.bf16.gmra.mxu0 %v714
    %v949 = vpop.f32.mrf.mxu0
    %v950 = vadd.f32 0.0, %v949
    %v951 = vpop.f32.mrf.mxu0
    %v952 = vadd.f32 0.0, %v951
    %v953 = vpop.f32.mrf.mxu0
    %v954 = vadd.f32 0.0, %v953
    %v955 = vpop.f32.mrf.mxu0
    %v956 = vadd.f32 0.0, %v955
    %957 = vmatprep.mubr.bf16.mxu0 %v860
    %958 = vmatmul.mubr.bf16.gmra.mxu0 %v715
    %v959 = vpop.f32.mrf.mxu0
    %v960 = vadd.f32 0.0, %v959
    %v961 = vpop.f32.mrf.mxu0
    %v962 = vadd.f32 0.0, %v961
    %v963 = vpop.f32.mrf.mxu0
    %v964 = vadd.f32 0.0, %v963
    %v965 = vpop.f32.mrf.mxu0
    %v966 = vadd.f32 0.0, %v965
    %967 = vmatprep.mubr.bf16.mxu0 %v863
    %968 = vmatmul.mubr.bf16.gmra.mxu0 %v716
    %v969 = vpop.f32.mrf.mxu0
    %v970 = vadd.f32 0.0, %v969
    %v971 = vpop.f32.mrf.mxu0
    %v972 = vadd.f32 0.0, %v971
    %v973 = vpop.f32.mrf.mxu0
    %v974 = vadd.f32 0.0, %v973
    %v975 = vpop.f32.mrf.mxu0
    %v976 = vadd.f32 0.0, %v975
    %977 = vmatprep.mubr.bf16.mxu0 %v866
    %978 = vmatmul.mubr.bf16.gmra.mxu0 %v717
    %v979 = vpop.f32.mrf.mxu0
    %v980 = vadd.f32 0.0, %v979
    %v981 = vpop.f32.mrf.mxu0
    %v982 = vadd.f32 0.0, %v981
    %v983 = vpop.f32.mrf.mxu0
    %v984 = vadd.f32 0.0, %v983
    %v985 = vpop.f32.mrf.mxu0
    %v986 = vadd.f32 0.0, %v985
    %987 = vdwg.mxu0
    %v988 = vpack.c.bf16 %v914, %v910
    %v989 = vpack.c.bf16 %v924, %v920
    %v990 = vpack.c.bf16 %v934, %v930
    %v991 = vpack.c.bf16 %v944, %v940
    %v992 = vpack.c.bf16 %v954, %v950
    %v993 = vpack.c.bf16 %v964, %v960
    %v994 = vpack.c.bf16 %v974, %v970
    %v995 = vpack.c.bf16 %v984, %v980
    %v996 = vpack.c.bf16 %v916, %v912
    %v997 = vpack.c.bf16 %v926, %v922
    %v998 = vpack.c.bf16 %v936, %v932
    %v999 = vpack.c.bf16 %v946, %v942
    %v1000 = vpack.c.bf16 %v956, %v952
    %v1001 = vpack.c.bf16 %v966, %v962
    %v1002 = vpack.c.bf16 %v976, %v972
    %v1003 = vpack.c.bf16 %v986, %v982
    %1004 = vmatprep.subr.bf16.mxu0 0
    %1005 = vmatpush1.bf16.msra.mxu0 %v1003
    %1006 = vmatprep.subr.bf16.mxu0 0
    %1007 = vmatpush1.bf16.msra.mxu0 %v1002
    %1008 = vmatprep.subr.bf16.mxu0 0
    %1009 = vmatpush1.bf16.msra.mxu0 %v1001
    %1010 = vmatprep.subr.bf16.mxu0 0
    %1011 = vmatpush1.bf16.msra.mxu0 %v1000
    %1012 = vmatprep.subr.bf16.mxu0 0
    %1013 = vmatpush1.bf16.msra.mxu0 %v999
    %1014 = vmatprep.subr.bf16.mxu0 0
    %1015 = vmatpush1.bf16.msra.mxu0 %v998
    %1016 = vmatprep.subr.bf16.mxu0 0
    %1017 = vmatpush1.bf16.msra.mxu0 %v997
    %1018 = vmatprep.subr.bf16.mxu0 0
    %1019 = vmatpush1.bf16.msra.mxu0 %v996
    %1020 = vmatprep.subr.bf16.mxu0 0
    %1021 = vmatpush2.bf16.msra.mxu0 0
    %1022 = vmatprep.subr.bf16.mxu0 0
    %1023 = vmatpush2.bf16.msra.mxu0 0
    %1024 = vmatprep.subr.bf16.mxu0 0
    %1025 = vmatpush2.bf16.msra.mxu0 0
    %1026 = vmatprep.subr.bf16.mxu0 0
    %1027 = vmatpush2.bf16.msra.mxu0 0
    %1028 = vmatprep.subr.bf16.mxu0 0
    %1029 = vmatpush2.bf16.msra.mxu0 0
    %1030 = vmatprep.subr.bf16.mxu0 0
    %1031 = vmatpush2.bf16.msra.mxu0 0
    %1032 = vmatprep.subr.bf16.mxu0 0
    %1033 = vmatpush2.bf16.msra.mxu0 0
    %1034 = vmatprep.subr.bf16.mxu0 0
    %1035 = vmatpush2.bf16.msra.mxu0 0
    %1036 = vmatprep.mubr.bf16.mxu0 0
    %1037 = vmatmul.mubr.bf16.gmra.mxu0 %v324
    %v1038 = vpop.f32.mrf.mxu0
    %v1039 = vadd.f32 0.0, %v1038
    %v1040 = vpop.f32.mrf.mxu0
    %v1041 = vpop.f32.mrf.mxu0
    %v1042 = vadd.f32 0.0, %v1041
    %v1043 = vpop.f32.mrf.mxu0
    %1044 = vmatprep.mubr.bf16.mxu0 0
    %1045 = vmatmul.mubr.bf16.gmra.mxu0 %v325
    %v1046 = vpop.f32.mrf.mxu0
    %v1047 = vadd.f32 0.0, %v1046
    %v1048 = vpop.f32.mrf.mxu0
    %v1049 = vpop.f32.mrf.mxu0
    %v1050 = vadd.f32 0.0, %v1049
    %v1051 = vpop.f32.mrf.mxu0
    %1052 = vmatprep.mubr.bf16.mxu0 0
    %1053 = vmatmul.mubr.bf16.gmra.mxu0 %v326
    %v1054 = vpop.f32.mrf.mxu0
    %v1055 = vadd.f32 0.0, %v1054
    %v1056 = vpop.f32.mrf.mxu0
    %v1057 = vpop.f32.mrf.mxu0
    %v1058 = vadd.f32 0.0, %v1057
    %v1059 = vpop.f32.mrf.mxu0
    %1060 = vmatprep.mubr.bf16.mxu0 0
    %1061 = vmatmul.mubr.bf16.gmra.mxu0 %v327
    %v1062 = vpop.f32.mrf.mxu0
    %v1063 = vadd.f32 0.0, %v1062
    %v1064 = vpop.f32.mrf.mxu0
    %v1065 = vpop.f32.mrf.mxu0
    %v1066 = vadd.f32 0.0, %v1065
    %v1067 = vpop.f32.mrf.mxu0
    %1068 = vmatprep.mubr.bf16.mxu0 0
    %1069 = vmatmul.mubr.bf16.gmra.mxu0 %v328
    %v1070 = vpop.f32.mrf.mxu0
    %v1071 = vadd.f32 0.0, %v1070
    %v1072 = vpop.f32.mrf.mxu0
    %v1073 = vpop.f32.mrf.mxu0
    %v1074 = vadd.f32 0.0, %v1073
    %v1075 = vpop.f32.mrf.mxu0
    %1076 = vmatprep.mubr.bf16.mxu0 0
    %1077 = vmatmul.mubr.bf16.gmra.mxu0 %v329
    %v1078 = vpop.f32.mrf.mxu0
    %v1079 = vadd.f32 0.0, %v1078
    %v1080 = vpop.f32.mrf.mxu0
    %v1081 = vpop.f32.mrf.mxu0
    %v1082 = vadd.f32 0.0, %v1081
    %v1083 = vpop.f32.mrf.mxu0
    %1084 = vmatprep.mubr.bf16.mxu0 0
    %1085 = vmatmul.mubr.bf16.gmra.mxu0 %v330
    %v1086 = vpop.f32.mrf.mxu0
    %v1087 = vadd.f32 0.0, %v1086
    %v1088 = vpop.f32.mrf.mxu0
    %v1089 = vpop.f32.mrf.mxu0
    %v1090 = vadd.f32 0.0, %v1089
    %v1091 = vpop.f32.mrf.mxu0
    %1092 = vmatprep.mubr.bf16.mxu0 0
    %1093 = vmatmul.mubr.bf16.gmra.mxu0 %v331
    %v1094 = vpop.f32.mrf.mxu0
    %v1095 = vadd.f32 0.0, %v1094
    %v1096 = vpop.f32.mrf.mxu0
    %v1097 = vpop.f32.mrf.mxu0
    %v1098 = vadd.f32 0.0, %v1097
    %v1099 = vpop.f32.mrf.mxu0
    %1100 = vdwg.mxu0
    %1101 = vmatprep.subr.bf16.mxu0 0
    %1102 = vmatpush1.bf16.msra.mxu0 %v995
    %1103 = vmatprep.subr.bf16.mxu0 0
    %1104 = vmatpush1.bf16.msra.mxu0 %v994
    %1105 = vmatprep.subr.bf16.mxu0 0
    %1106 = vmatpush1.bf16.msra.mxu0 %v993
    %1107 = vmatprep.subr.bf16.mxu0 0
    %1108 = vmatpush1.bf16.msra.mxu0 %v992
    %1109 = vmatprep.subr.bf16.mxu0 0
    %1110 = vmatpush1.bf16.msra.mxu0 %v991
    %1111 = vmatprep.subr.bf16.mxu0 0
    %1112 = vmatpush1.bf16.msra.mxu0 %v990
    %1113 = vmatprep.subr.bf16.mxu0 0
    %1114 = vmatpush1.bf16.msra.mxu0 %v989
    %1115 = vmatprep.subr.bf16.mxu0 0
    %1116 = vmatpush1.bf16.msra.mxu0 %v988
    %1117 = vmatprep.subr.bf16.mxu0 0
    %1118 = vmatpush2.bf16.msra.mxu0 0
    %1119 = vmatprep.subr.bf16.mxu0 0
    %1120 = vmatpush2.bf16.msra.mxu0 0
    %1121 = vmatprep.subr.bf16.mxu0 0
    %1122 = vmatpush2.bf16.msra.mxu0 0
    %1123 = vmatprep.subr.bf16.mxu0 0
    %1124 = vmatpush2.bf16.msra.mxu0 0
    %1125 = vmatprep.subr.bf16.mxu0 0
    %1126 = vmatpush2.bf16.msra.mxu0 0
    %1127 = vmatprep.subr.bf16.mxu0 0
    %1128 = vmatpush2.bf16.msra.mxu0 0
    %1129 = vmatprep.subr.bf16.mxu0 0
    %1130 = vmatpush2.bf16.msra.mxu0 0
    %1131 = vmatprep.subr.bf16.mxu0 0
    %1132 = vmatpush2.bf16.msra.mxu0 0
    %1133 = vmatprep.mubr.bf16.mxu0 0
    %1134 = vmatmul.mubr.bf16.gmra.mxu0 %v204
    %v1135 = vpop.f32.mrf.mxu0
    %v1136 = vadd.f32 %v1039, %v1135
    %v1137 = vpop.f32.mrf.mxu0
    %v1138 = vpop.f32.mrf.mxu0
    %v1139 = vadd.f32 %v1042, %v1138
    %v1140 = vpop.f32.mrf.mxu0
    %1141 = vmatprep.mubr.bf16.mxu0 0
    %1142 = vmatmul.mubr.bf16.gmra.mxu0 %v205
    %v1143 = vpop.f32.mrf.mxu0
    %v1144 = vadd.f32 %v1047, %v1143
    %v1145 = vpop.f32.mrf.mxu0
    %v1146 = vpop.f32.mrf.mxu0
    %v1147 = vadd.f32 %v1050, %v1146
    %v1148 = vpop.f32.mrf.mxu0
    %1149 = vmatprep.mubr.bf16.mxu0 0
    %1150 = vmatmul.mubr.bf16.gmra.mxu0 %v206
    %v1151 = vpop.f32.mrf.mxu0
    %v1152 = vadd.f32 %v1055, %v1151
    %v1153 = vpop.f32.mrf.mxu0
    %v1154 = vpop.f32.mrf.mxu0
    %v1155 = vadd.f32 %v1058, %v1154
    %v1156 = vpop.f32.mrf.mxu0
    %1157 = vmatprep.mubr.bf16.mxu0 0
    %1158 = vmatmul.mubr.bf16.gmra.mxu0 %v207
    %v1159 = vpop.f32.mrf.mxu0
    %v1160 = vadd.f32 %v1063, %v1159
    %v1161 = vpop.f32.mrf.mxu0
    %v1162 = vpop.f32.mrf.mxu0
    %v1163 = vadd.f32 %v1066, %v1162
    %v1164 = vpop.f32.mrf.mxu0
    %1165 = vmatprep.mubr.bf16.mxu0 0
    %1166 = vmatmul.mubr.bf16.gmra.mxu0 %v208
    %v1167 = vpop.f32.mrf.mxu0
    %v1168 = vadd.f32 %v1071, %v1167
    %v1169 = vpop.f32.mrf.mxu0
    %v1170 = vpop.f32.mrf.mxu0
    %v1171 = vadd.f32 %v1074, %v1170
    %v1172 = vpop.f32.mrf.mxu0
    %1173 = vmatprep.mubr.bf16.mxu0 0
    %1174 = vmatmul.mubr.bf16.gmra.mxu0 %v209
    %v1175 = vpop.f32.mrf.mxu0
    %v1176 = vadd.f32 %v1079, %v1175
    %v1177 = vpop.f32.mrf.mxu0
    %v1178 = vpop.f32.mrf.mxu0
    %v1179 = vadd.f32 %v1082, %v1178
    %v1180 = vpop.f32.mrf.mxu0
    %1181 = vmatprep.mubr.bf16.mxu0 0
    %1182 = vmatmul.mubr.bf16.gmra.mxu0 %v210
    %v1183 = vpop.f32.mrf.mxu0
    %v1184 = vadd.f32 %v1087, %v1183
    %v1185 = vpop.f32.mrf.mxu0
    %v1186 = vpop.f32.mrf.mxu0
    %v1187 = vadd.f32 %v1090, %v1186
    %v1188 = vpop.f32.mrf.mxu0
    %1189 = vmatprep.mubr.bf16.mxu0 0
    %1190 = vmatmul.mubr.bf16.gmra.mxu0 %v211
    %v1191 = vpop.f32.mrf.mxu0
    %v1192 = vadd.f32 %v1095, %v1191
    %v1193 = vpop.f32.mrf.mxu0
    %v1194 = vpop.f32.mrf.mxu0
    %v1195 = vadd.f32 %v1098, %v1194
    %v1196 = vpop.f32.mrf.mxu0
    %1197 = vdwg.mxu0
    %v1214 = vunpack.c.l.b16 %v492
    %v1215 = vunpack.c.l.b16 %v493
    %v1216 = vunpack.c.l.b16 %v494
    %v1217 = vunpack.c.l.b16 %v495
    %v1218 = vunpack.c.l.b16 %v496
    %v1219 = vunpack.c.l.b16 %v497
    %v1220 = vunpack.c.l.b16 %v498
    %v1221 = vunpack.c.l.b16 %v499
    %v1222 = vunpack.c.l.b16 %v500
    %v1223 = vunpack.c.l.b16 %v501
    %v1224 = vunpack.c.l.b16 %v502
    %v1225 = vunpack.c.l.b16 %v503
    %v1226 = vunpack.c.l.b16 %v504
    %v1227 = vunpack.c.l.b16 %v505
    %v1228 = vunpack.c.l.b16 %v506
    %v1229 = vunpack.c.l.b16 %v507
    %v1230 = vpack.c.b16 %v1215, %v1214
    %v1231 = vpack.c.b16 %v1217, %v1216
    %v1232 = vpack.c.b16 %v1219, %v1218
    %v1233 = vpack.c.b16 %v1221, %v1220
    %v1234 = vpack.c.b16 %v1223, %v1222
    %v1235 = vpack.c.b16 %v1225, %v1224
    %v1236 = vpack.c.b16 %v1227, %v1226
    %v1237 = vpack.c.b16 %v1229, %v1228
    %1246 = vmatprep.subr.bf16.mxu0 0
    %1247 = vmatpush1.bf16.msra.mxu0 %v1237
    %1248 = vmatprep.subr.bf16.mxu0 0
    %1249 = vmatpush1.bf16.msra.mxu0 %v1236
    %1250 = vmatprep.subr.bf16.mxu0 0
    %1251 = vmatpush1.bf16.msra.mxu0 %v1235
    %1252 = vmatprep.subr.bf16.mxu0 0
    %1253 = vmatpush1.bf16.msra.mxu0 %v1234
    %1254 = vmatprep.subr.bf16.mxu0 0
    %1255 = vmatpush1.bf16.msra.mxu0 %v1233
    %1256 = vmatprep.subr.bf16.mxu0 0
    %1257 = vmatpush1.bf16.msra.mxu0 %v1232
    %1258 = vmatprep.subr.bf16.mxu0 0
    %1259 = vmatpush1.bf16.msra.mxu0 %v1231
    %1260 = vmatprep.subr.bf16.mxu0 0
    %1261 = vmatpush1.bf16.msra.mxu0 %v1230
    %1262 = vmatprep.subr.bf16.mxu0 0
    %1263 = vmatpush2.bf16.msra.mxu0 0
    %1264 = vmatprep.subr.bf16.mxu0 0
    %1265 = vmatpush2.bf16.msra.mxu0 0
    %1266 = vmatprep.subr.bf16.mxu0 0
    %1267 = vmatpush2.bf16.msra.mxu0 0
    %1268 = vmatprep.subr.bf16.mxu0 0
    %1269 = vmatpush2.bf16.msra.mxu0 0
    %1270 = vmatprep.subr.bf16.mxu0 0
    %1271 = vmatpush2.bf16.msra.mxu0 0
    %1272 = vmatprep.subr.bf16.mxu0 0
    %1273 = vmatpush2.bf16.msra.mxu0 0
    %1274 = vmatprep.subr.bf16.mxu0 0
    %1275 = vmatpush2.bf16.msra.mxu0 0
    %1276 = vmatprep.subr.bf16.mxu0 0
    %1277 = vmatpush2.bf16.msra.mxu0 0
    %1278 = vmatprep.mubr.bf16.mxu0 0
    %1279 = vmatmul.mubr.bf16.gmra.mxu0 %v509
    %v1280 = vpop.f32.mrf.mxu0
    %v1281 = vadd.f32 0.0, %v1280
    %v1282 = vpop.f32.mrf.mxu0
    %v1283 = vpop.f32.mrf.mxu0
    %v1284 = vadd.f32 0.0, %v1283
    %v1285 = vpop.f32.mrf.mxu0
    %1286 = vmatprep.mubr.bf16.mxu0 0
    %1287 = vmatmul.mubr.bf16.gmra.mxu0 %v510
    %v1288 = vpop.f32.mrf.mxu0
    %v1289 = vadd.f32 0.0, %v1288
    %v1290 = vpop.f32.mrf.mxu0
    %v1291 = vpop.f32.mrf.mxu0
    %v1292 = vadd.f32 0.0, %v1291
    %v1293 = vpop.f32.mrf.mxu0
    %1294 = vmatprep.mubr.bf16.mxu0 0
    %1295 = vmatmul.mubr.bf16.gmra.mxu0 %v511
    %v1296 = vpop.f32.mrf.mxu0
    %v1297 = vadd.f32 0.0, %v1296
    %v1298 = vpop.f32.mrf.mxu0
    %v1299 = vpop.f32.mrf.mxu0
    %v1300 = vadd.f32 0.0, %v1299
    %v1301 = vpop.f32.mrf.mxu0
    %1302 = vmatprep.mubr.bf16.mxu0 0
    %1303 = vmatmul.mubr.bf16.gmra.mxu0 %v512
    %v1304 = vpop.f32.mrf.mxu0
    %v1305 = vadd.f32 0.0, %v1304
    %v1306 = vpop.f32.mrf.mxu0
    %v1307 = vpop.f32.mrf.mxu0
    %v1308 = vadd.f32 0.0, %v1307
    %v1309 = vpop.f32.mrf.mxu0
    %1310 = vmatprep.mubr.bf16.mxu0 0
    %1311 = vmatmul.mubr.bf16.gmra.mxu0 %v513
    %v1312 = vpop.f32.mrf.mxu0
    %v1313 = vadd.f32 0.0, %v1312
    %v1314 = vpop.f32.mrf.mxu0
    %v1315 = vpop.f32.mrf.mxu0
    %v1316 = vadd.f32 0.0, %v1315
    %v1317 = vpop.f32.mrf.mxu0
    %1318 = vmatprep.mubr.bf16.mxu0 0
    %1319 = vmatmul.mubr.bf16.gmra.mxu0 %v514
    %v1320 = vpop.f32.mrf.mxu0
    %v1321 = vadd.f32 0.0, %v1320
    %v1322 = vpop.f32.mrf.mxu0
    %v1323 = vpop.f32.mrf.mxu0
    %v1324 = vadd.f32 0.0, %v1323
    %v1325 = vpop.f32.mrf.mxu0
    %1326 = vmatprep.mubr.bf16.mxu0 0
    %1327 = vmatmul.mubr.bf16.gmra.mxu0 %v515
    %v1328 = vpop.f32.mrf.mxu0
    %v1329 = vadd.f32 0.0, %v1328
    %v1330 = vpop.f32.mrf.mxu0
    %v1331 = vpop.f32.mrf.mxu0
    %v1332 = vadd.f32 0.0, %v1331
    %v1333 = vpop.f32.mrf.mxu0
    %1334 = vmatprep.mubr.bf16.mxu0 0
    %1335 = vmatmul.mubr.bf16.gmra.mxu0 %v516
    %v1336 = vpop.f32.mrf.mxu0
    %v1337 = vadd.f32 0.0, %v1336
    %v1338 = vpop.f32.mrf.mxu0
    %v1339 = vpop.f32.mrf.mxu0
    %v1340 = vadd.f32 0.0, %v1339
    %v1341 = vpop.f32.mrf.mxu0
    %1342 = vdwg.mxu0
    %v1343 = vadd.f32 %v1136, %v1281
    %v1344 = vadd.f32 %v1139, %v1284
    %v1345 = vadd.f32 %v1144, %v1289
    %v1346 = vadd.f32 %v1147, %v1292
    %v1347 = vadd.f32 %v1152, %v1297
    %v1348 = vadd.f32 %v1155, %v1300
    %v1349 = vadd.f32 %v1160, %v1305
    %v1350 = vadd.f32 %v1163, %v1308
    %v1351 = vadd.f32 %v1168, %v1313
    %v1352 = vadd.f32 %v1171, %v1316
    %v1353 = vadd.f32 %v1176, %v1321
    %v1354 = vadd.f32 %v1179, %v1324
    %v1355 = vadd.f32 %v1184, %v1329
    %v1356 = vadd.f32 %v1187, %v1332
    %v1357 = vadd.f32 %v1192, %v1337
    %v1358 = vadd.f32 %v1195, %v1340
    %v1360 = vlaneseq
    %v1361 = vshrl.u32 %v1360, 7
    %v1362 = vsub.s32 0, %v1361
    %v1363 = vrot.slane %v508, %v1362
    %v1365 = vadd.f32 %v1343, %v1363
    %v1366 = vadd.f32 %v1344, %v1363
    %v1367 = vadd.f32 %v1345, %v1363
    %v1368 = vadd.f32 %v1346, %v1363
    %v1369 = vadd.f32 %v1347, %v1363
    %v1370 = vadd.f32 %v1348, %v1363
    %v1371 = vadd.f32 %v1349, %v1363
    %v1372 = vadd.f32 %v1350, %v1363
    %v1373 = vadd.f32 %v1351, %v1363
    %v1374 = vadd.f32 %v1352, %v1363
    %v1375 = vadd.f32 %v1353, %v1363
    %v1376 = vadd.f32 %v1354, %v1363
    %v1377 = vadd.f32 %v1355, %v1363
    %v1378 = vadd.f32 %v1356, %v1363
    %v1379 = vadd.f32 %v1357, %v1363
    %v1380 = vadd.f32 %v1358, %v1363
    %v1381 = vmax.f32 %v1365, 0.0
    %v1382 = vmax.f32 %v1366, 0.0
    %v1383 = vmax.f32 %v1367, 0.0
    %v1384 = vmax.f32 %v1368, 0.0
    %v1385 = vmax.f32 %v1369, 0.0
    %v1386 = vmax.f32 %v1370, 0.0
    %v1387 = vmax.f32 %v1371, 0.0
    %v1388 = vmax.f32 %v1372, 0.0
    %v1389 = vmax.f32 %v1373, 0.0
    %v1390 = vmax.f32 %v1374, 0.0
    %v1391 = vmax.f32 %v1375, 0.0
    %v1392 = vmax.f32 %v1376, 0.0
    %v1393 = vmax.f32 %v1377, 0.0
    %v1394 = vmax.f32 %v1378, 0.0
    %v1395 = vmax.f32 %v1379, 0.0
    %v1396 = vmax.f32 %v1380, 0.0
    %v1397 = vld [vmem:[%s11] sm:$0xff]
    %v1398 = vld [vmem:[%s11 + $0x8] sm:$0xff]
    %v1399 = vld [vmem:[%s11 + $0x10] sm:$0xff]
    %v1400 = vld [vmem:[%s11 + $0x18] sm:$0xff]
    %v1401 = vld [vmem:[%s11 + $0x20] sm:$0xff]
    %v1402 = vld [vmem:[%s11 + $0x28] sm:$0xff]
    %v1403 = vld [vmem:[%s11 + $0x30] sm:$0xff]
    %v1404 = vld [vmem:[%s11 + $0x38] sm:$0xff]
    %v1405 = vld [vmem:[%s11 + $0x40] sm:$0xff]
    %v1406 = vld [vmem:[%s11 + $0x48] sm:$0xff]
    %v1407 = vld [vmem:[%s11 + $0x50] sm:$0xff]
    %v1408 = vld [vmem:[%s11 + $0x58] sm:$0xff]
    %v1409 = vld [vmem:[%s11 + $0x60] sm:$0xff]
    %v1410 = vld [vmem:[%s11 + $0x68] sm:$0xff]
    %v1411 = vld [vmem:[%s11 + $0x70] sm:$0xff]
    %v1412 = vld [vmem:[%s11 + $0x78] sm:$0xff]
    %v1413 = vld [vmem:[%s11 + $0x80] sm:$0xff]
    %v1414 = vld [vmem:[%s12] sm:$0xf]
    %v1415 = vld [vmem:[%s12 + $0x4] sm:$0xf]
    %v1416 = vld [vmem:[%s12 + $0x8] sm:$0xf]
    %v1417 = vld [vmem:[%s12 + $0xc] sm:$0xf]
    %v1418 = vld [vmem:[%s12 + $0x10] sm:$0xf]
    %v1419 = vld [vmem:[%s12 + $0x14] sm:$0xf]
    %v1420 = vld [vmem:[%s12 + $0x18] sm:$0xf]
    %v1421 = vld [vmem:[%s12 + $0x1c] sm:$0xf]
    %v1422 = vld [vmem:[%s12 + $0x20] sm:$0xf]
    %v1423 = vld [vmem:[%s12 + $0x24] sm:$0xf]
    %v1424 = vld [vmem:[%s12 + $0x28] sm:$0xf]
    %v1425 = vld [vmem:[%s12 + $0x2c] sm:$0xf]
    %v1426 = vld [vmem:[%s12 + $0x30] sm:$0xf]
    %v1427 = vld [vmem:[%s12 + $0x34] sm:$0xf]
    %v1428 = vld [vmem:[%s12 + $0x38] sm:$0xf]
    %v1429 = vld [vmem:[%s12 + $0x3c] sm:$0xf]
    %v1430 = vld [vmem:[%s13] sm:$0x1]
    %v1431 = vpack.c.bf16 %v1382, %v1381
    %v1432 = vpack.c.bf16 %v1384, %v1383
    %v1433 = vpack.c.bf16 %v1386, %v1385
    %v1434 = vpack.c.bf16 %v1388, %v1387
    %v1435 = vpack.c.bf16 %v1390, %v1389
    %v1436 = vpack.c.bf16 %v1392, %v1391
    %v1437 = vpack.c.bf16 %v1394, %v1393
    %v1438 = vpack.c.bf16 %v1396, %v1395
    %1439 = vmatprep.subr.bf16.mxu0 0
    %1440 = vmatpush1.bf16.msra.mxu0 %v1438
    %1441 = vmatprep.subr.bf16.mxu0 0
    %1442 = vmatpush1.bf16.msra.mxu0 %v1437
    %1443 = vmatprep.subr.bf16.mxu0 0
    %1444 = vmatpush1.bf16.msra.mxu0 %v1436
    %1445 = vmatprep.subr.bf16.mxu0 0
    %1446 = vmatpush1.bf16.msra.mxu0 %v1435
    %1447 = vmatprep.subr.bf16.mxu0 0
    %1448 = vmatpush1.bf16.msra.mxu0 %v1434
    %1449 = vmatprep.subr.bf16.mxu0 0
    %1450 = vmatpush1.bf16.msra.mxu0 %v1433
    %1451 = vmatprep.subr.bf16.mxu0 0
    %1452 = vmatpush1.bf16.msra.mxu0 %v1432
    %1453 = vmatprep.subr.bf16.mxu0 0
    %1454 = vmatpush1.bf16.msra.mxu0 %v1431
    %1455 = vmatprep.subr.bf16.mxu0 0
    %1456 = vmatpush2.bf16.msra.mxu0 0
    %1457 = vmatprep.subr.bf16.mxu0 0
    %1458 = vmatpush2.bf16.msra.mxu0 0
    %1459 = vmatprep.subr.bf16.mxu0 0
    %1460 = vmatpush2.bf16.msra.mxu0 0
    %1461 = vmatprep.subr.bf16.mxu0 0
    %1462 = vmatpush2.bf16.msra.mxu0 0
    %1463 = vmatprep.subr.bf16.mxu0 0
    %1464 = vmatpush2.bf16.msra.mxu0 0
    %1465 = vmatprep.subr.bf16.mxu0 0
    %1466 = vmatpush2.bf16.msra.mxu0 0
    %1467 = vmatprep.subr.bf16.mxu0 0
    %1468 = vmatpush2.bf16.msra.mxu0 0
    %1469 = vmatprep.subr.bf16.mxu0 0
    %1470 = vmatpush2.bf16.msra.mxu0 0
    %1471 = vmatprep.mubr.bf16.mxu0 0
    %1472 = vmatmul.mubr.bf16.gmra.mxu0 %v419
    %v1473 = vpop.f32.mrf.mxu0
    %v1474 = vadd.f32 0.0, %v1473
    %v1475 = vpop.f32.mrf.mxu0
    %v1476 = vpop.f32.mrf.mxu0
    %v1477 = vadd.f32 0.0, %v1476
    %v1478 = vpop.f32.mrf.mxu0
    %1479 = vmatprep.mubr.bf16.mxu0 0
    %1480 = vmatmul.mubr.bf16.gmra.mxu0 %v420
    %v1481 = vpop.f32.mrf.mxu0
    %v1482 = vadd.f32 0.0, %v1481
    %v1483 = vpop.f32.mrf.mxu0
    %v1484 = vpop.f32.mrf.mxu0
    %v1485 = vadd.f32 0.0, %v1484
    %v1486 = vpop.f32.mrf.mxu0
    %1487 = vmatprep.mubr.bf16.mxu0 0
    %1488 = vmatmul.mubr.bf16.gmra.mxu0 %v421
    %v1489 = vpop.f32.mrf.mxu0
    %v1490 = vadd.f32 0.0, %v1489
    %v1491 = vpop.f32.mrf.mxu0
    %v1492 = vpop.f32.mrf.mxu0
    %v1493 = vadd.f32 0.0, %v1492
    %v1494 = vpop.f32.mrf.mxu0
    %1495 = vmatprep.mubr.bf16.mxu0 0
    %1496 = vmatmul.mubr.bf16.gmra.mxu0 %v422
    %v1497 = vpop.f32.mrf.mxu0
    %v1498 = vadd.f32 0.0, %v1497
    %v1499 = vpop.f32.mrf.mxu0
    %v1500 = vpop.f32.mrf.mxu0
    %v1501 = vadd.f32 0.0, %v1500
    %v1502 = vpop.f32.mrf.mxu0
    %1503 = vmatprep.mubr.bf16.mxu0 0
    %1504 = vmatmul.mubr.bf16.gmra.mxu0 %v423
    %v1505 = vpop.f32.mrf.mxu0
    %v1506 = vadd.f32 0.0, %v1505
    %v1507 = vpop.f32.mrf.mxu0
    %v1508 = vpop.f32.mrf.mxu0
    %v1509 = vadd.f32 0.0, %v1508
    %v1510 = vpop.f32.mrf.mxu0
    %1511 = vmatprep.mubr.bf16.mxu0 0
    %1512 = vmatmul.mubr.bf16.gmra.mxu0 %v424
    %v1513 = vpop.f32.mrf.mxu0
    %v1514 = vadd.f32 0.0, %v1513
    %v1515 = vpop.f32.mrf.mxu0
    %v1516 = vpop.f32.mrf.mxu0
    %v1517 = vadd.f32 0.0, %v1516
    %v1518 = vpop.f32.mrf.mxu0
    %1519 = vmatprep.mubr.bf16.mxu0 0
    %1520 = vmatmul.mubr.bf16.gmra.mxu0 %v425
    %v1521 = vpop.f32.mrf.mxu0
    %v1522 = vadd.f32 0.0, %v1521
    %v1523 = vpop.f32.mrf.mxu0
    %v1524 = vpop.f32.mrf.mxu0
    %v1525 = vadd.f32 0.0, %v1524
    %v1526 = vpop.f32.mrf.mxu0
    %1527 = vmatprep.mubr.bf16.mxu0 0
    %1528 = vmatmul.mubr.bf16.gmra.mxu0 %v426
    %v1529 = vpop.f32.mrf.mxu0
    %v1530 = vadd.f32 0.0, %v1529
    %v1531 = vpop.f32.mrf.mxu0
    %v1532 = vpop.f32.mrf.mxu0
    %v1533 = vadd.f32 0.0, %v1532
    %v1534 = vpop.f32.mrf.mxu0
    %1535 = vdwg.mxu0
    %v1536 = vmul.f32 %v1474, %v617
    %v1537 = vmul.f32 %v1477, %v622
    %v1538 = vmul.f32 %v1482, %v627
    %v1539 = vmul.f32 %v1485, %v632
    %v1540 = vmul.f32 %v1490, %v637
    %v1541 = vmul.f32 %v1493, %v642
    %v1542 = vmul.f32 %v1498, %v647
    %v1543 = vmul.f32 %v1501, %v652
    %v1544 = vmul.f32 %v1506, %v657
    %v1545 = vmul.f32 %v1509, %v662
    %v1546 = vmul.f32 %v1514, %v667
    %v1547 = vmul.f32 %v1517, %v672
    %v1548 = vmul.f32 %v1522, %v677
    %v1549 = vmul.f32 %v1525, %v682
    %v1550 = vmul.f32 %v1530, %v687
    %v1551 = vmul.f32 %v1533, %v692
    %v1552 = vpack.c.bf16 %v1537, %v1536
    %v1553 = vpack.c.bf16 %v1539, %v1538
    %v1554 = vpack.c.bf16 %v1541, %v1540
    %v1555 = vpack.c.bf16 %v1543, %v1542
    %v1556 = vpack.c.bf16 %v1545, %v1544
    %v1557 = vpack.c.bf16 %v1547, %v1546
    %v1558 = vpack.c.bf16 %v1549, %v1548
    %v1559 = vpack.c.bf16 %v1551, %v1550
    %v1577 = vunpack.c.l.b16 %v1397
    %v1578 = vunpack.c.h.b16 %v1397
    %v1579 = vunpack.c.l.b16 %v1398
    %v1580 = vunpack.c.h.b16 %v1398
    %v1581 = vunpack.c.l.b16 %v1399
    %v1582 = vunpack.c.h.b16 %v1399
    %v1583 = vunpack.c.l.b16 %v1400
    %v1584 = vunpack.c.h.b16 %v1400
    %v1585 = vunpack.c.l.b16 %v1401
    %v1586 = vunpack.c.h.b16 %v1401
    %v1587 = vunpack.c.l.b16 %v1402
    %v1588 = vunpack.c.h.b16 %v1402
    %v1589 = vunpack.c.l.b16 %v1403
    %v1590 = vunpack.c.h.b16 %v1403
    %v1591 = vunpack.c.l.b16 %v1404
    %v1592 = vunpack.c.h.b16 %v1404
    %v1593 = vunpack.c.l.b16 %v1405
    %v1594 = vunpack.c.h.b16 %v1405
    %v1595 = vunpack.c.l.b16 %v1406
    %v1596 = vunpack.c.h.b16 %v1406
    %v1597 = vunpack.c.l.b16 %v1407
    %v1598 = vunpack.c.h.b16 %v1407
    %v1599 = vunpack.c.l.b16 %v1408
    %v1600 = vunpack.c.h.b16 %v1408
    %v1601 = vunpack.c.l.b16 %v1409
    %v1602 = vunpack.c.h.b16 %v1409
    %v1603 = vunpack.c.l.b16 %v1410
    %v1604 = vunpack.c.h.b16 %v1410
    %v1605 = vunpack.c.l.b16 %v1411
    %v1606 = vunpack.c.h.b16 %v1411
    %v1607 = vunpack.c.l.b16 %v1412
    %v1608 = vunpack.c.h.b16 %v1412
    %v1609 = vunpack.c.l.b16 %v1413
    %v1610 = vunpack.c.h.b16 %v1413
    %v1611 = vpack.c.b16 %v1579, %v1577
    %v1612 = vpack.c.b16 %v1580, %v1578
    %v1613 = vpack.c.b16 %v1583, %v1581
    %v1614 = vpack.c.b16 %v1584, %v1582
    %v1615 = vpack.c.b16 %v1587, %v1585
    %v1616 = vpack.c.b16 %v1588, %v1586
    %v1617 = vpack.c.b16 %v1591, %v1589
    %v1618 = vpack.c.b16 %v1592, %v1590
    %v1619 = vpack.c.b16 %v1595, %v1593
    %v1620 = vpack.c.b16 %v1596, %v1594
    %v1621 = vpack.c.b16 %v1599, %v1597
    %v1622 = vpack.c.b16 %v1600, %v1598
    %v1623 = vpack.c.b16 %v1603, %v1601
    %v1624 = vpack.c.b16 %v1604, %v1602
    %v1625 = vpack.c.b16 %v1607, %v1605
    %v1626 = vpack.c.b16 %v1608, %v1606
    %v1627 = vpack.c.b16 %v1609, %v1609
    %v1628 = vpack.c.b16 %v1610, %v1610
    %v1646 = vsel %vm868, %v1627, 0
    %v1649 = vsel %vm868, %v1628, 0
    %1651 = vmatprep.subr.bf16.mxu0 %v1626
    %1652 = vmatpush1.bf16.msra.mxu0 %v1625
    %1653 = vmatprep.subr.bf16.mxu0 %v1624
    %1654 = vmatpush1.bf16.msra.mxu0 %v1623
    %1655 = vmatprep.subr.bf16.mxu0 %v1622
    %1656 = vmatpush1.bf16.msra.mxu0 %v1621
    %1657 = vmatprep.subr.bf16.mxu0 %v1620
    %1658 = vmatpush1.bf16.msra.mxu0 %v1619
    %1659 = vmatprep.subr.bf16.mxu0 %v1618
    %1660 = vmatpush1.bf16.msra.mxu0 %v1617
    %1661 = vmatprep.subr.bf16.mxu0 %v1616
    %1662 = vmatpush1.bf16.msra.mxu0 %v1615
    %1663 = vmatprep.subr.bf16.mxu0 %v1614
    %1664 = vmatpush1.bf16.msra.mxu0 %v1613
    %1665 = vmatprep.subr.bf16.mxu0 %v1612
    %1666 = vmatpush1.bf16.msra.mxu0 %v1611
    %1667 = vmatprep.subr.bf16.mxu0 0
    %1668 = vmatpush2.bf16.msra.mxu0 0
    %1669 = vmatprep.subr.bf16.mxu0 0
    %1670 = vmatpush2.bf16.msra.mxu0 0
    %1671 = vmatprep.subr.bf16.mxu0 0
    %1672 = vmatpush2.bf16.msra.mxu0 0
    %1673 = vmatprep.subr.bf16.mxu0 0
    %1674 = vmatpush2.bf16.msra.mxu0 0
    %1675 = vmatprep.subr.bf16.mxu0 0
    %1676 = vmatpush2.bf16.msra.mxu0 0
    %1677 = vmatprep.subr.bf16.mxu0 0
    %1678 = vmatpush2.bf16.msra.mxu0 0
    %1679 = vmatprep.subr.bf16.mxu0 0
    %1680 = vmatpush2.bf16.msra.mxu0 0
    %1681 = vmatprep.subr.bf16.mxu0 %v1649
    %1682 = vmatpush2.bf16.msra.mxu0 %v1646
    %1683 = vmatprep.mubr.bf16.mxu0 %v845
    %1684 = vmatmul.mubr.bf16.gmra.mxu0 %v1552
    %v1685 = vpop.f32.mrf.mxu0
    %v1686 = vadd.f32 0.0, %v1685
    %v1687 = vpop.f32.mrf.mxu0
    %v1688 = vadd.f32 0.0, %v1687
    %v1689 = vpop.f32.mrf.mxu0
    %v1690 = vadd.f32 0.0, %v1689
    %v1691 = vpop.f32.mrf.mxu0
    %v1692 = vadd.f32 0.0, %v1691
    %1693 = vmatprep.mubr.bf16.mxu0 %v848
    %1694 = vmatmul.mubr.bf16.gmra.mxu0 %v1553
    %v1695 = vpop.f32.mrf.mxu0
    %v1696 = vadd.f32 0.0, %v1695
    %v1697 = vpop.f32.mrf.mxu0
    %v1698 = vadd.f32 0.0, %v1697
    %v1699 = vpop.f32.mrf.mxu0
    %v1700 = vadd.f32 0.0, %v1699
    %v1701 = vpop.f32.mrf.mxu0
    %v1702 = vadd.f32 0.0, %v1701
    %1703 = vmatprep.mubr.bf16.mxu0 %v851
    %1704 = vmatmul.mubr.bf16.gmra.mxu0 %v1554
    %v1705 = vpop.f32.mrf.mxu0
    %v1706 = vadd.f32 0.0, %v1705
    %v1707 = vpop.f32.mrf.mxu0
    %v1708 = vadd.f32 0.0, %v1707
    %v1709 = vpop.f32.mrf.mxu0
    %v1710 = vadd.f32 0.0, %v1709
    %v1711 = vpop.f32.mrf.mxu0
    %v1712 = vadd.f32 0.0, %v1711
    %1713 = vmatprep.mubr.bf16.mxu0 %v854
    %1714 = vmatmul.mubr.bf16.gmra.mxu0 %v1555
    %v1715 = vpop.f32.mrf.mxu0
    %v1716 = vadd.f32 0.0, %v1715
    %v1717 = vpop.f32.mrf.mxu0
    %v1718 = vadd.f32 0.0, %v1717
    %v1719 = vpop.f32.mrf.mxu0
    %v1720 = vadd.f32 0.0, %v1719
    %v1721 = vpop.f32.mrf.mxu0
    %v1722 = vadd.f32 0.0, %v1721
    %1723 = vmatprep.mubr.bf16.mxu0 %v857
    %1724 = vmatmul.mubr.bf16.gmra.mxu0 %v1556
    %v1725 = vpop.f32.mrf.mxu0
    %v1726 = vadd.f32 0.0, %v1725
    %v1727 = vpop.f32.mrf.mxu0
    %v1728 = vadd.f32 0.0, %v1727
    %v1729 = vpop.f32.mrf.mxu0
    %v1730 = vadd.f32 0.0, %v1729
    %v1731 = vpop.f32.mrf.mxu0
    %v1732 = vadd.f32 0.0, %v1731
    %1733 = vmatprep.mubr.bf16.mxu0 %v860
    %1734 = vmatmul.mubr.bf16.gmra.mxu0 %v1557
    %v1735 = vpop.f32.mrf.mxu0
    %v1736 = vadd.f32 0.0, %v1735
    %v1737 = vpop.f32.mrf.mxu0
    %v1738 = vadd.f32 0.0, %v1737
    %v1739 = vpop.f32.mrf.mxu0
    %v1740 = vadd.f32 0.0, %v1739
    %v1741 = vpop.f32.mrf.mxu0
    %v1742 = vadd.f32 0.0, %v1741
    %1743 = vmatprep.mubr.bf16.mxu0 %v863
    %1744 = vmatmul.mubr.bf16.gmra.mxu0 %v1558
    %v1745 = vpop.f32.mrf.mxu0
    %v1746 = vadd.f32 0.0, %v1745
    %v1747 = vpop.f32.mrf.mxu0
    %v1748 = vadd.f32 0.0, %v1747
    %v1749 = vpop.f32.mrf.mxu0
    %v1750 = vadd.f32 0.0, %v1749
    %v1751 = vpop.f32.mrf.mxu0
    %v1752 = vadd.f32 0.0, %v1751
    %1753 = vmatprep.mubr.bf16.mxu0 %v866
    %1754 = vmatmul.mubr.bf16.gmra.mxu0 %v1559
    %v1755 = vpop.f32.mrf.mxu0
    %v1756 = vadd.f32 0.0, %v1755
    %v1757 = vpop.f32.mrf.mxu0
    %v1758 = vadd.f32 0.0, %v1757
    %v1759 = vpop.f32.mrf.mxu0
    %v1760 = vadd.f32 0.0, %v1759
    %v1761 = vpop.f32.mrf.mxu0
    %v1762 = vadd.f32 0.0, %v1761
    %1763 = vdwg.mxu0
    %v1764 = vpack.c.bf16 %v1690, %v1686
    %v1765 = vpack.c.bf16 %v1700, %v1696
    %v1766 = vpack.c.bf16 %v1710, %v1706
    %v1767 = vpack.c.bf16 %v1720, %v1716
    %v1768 = vpack.c.bf16 %v1730, %v1726
    %v1769 = vpack.c.bf16 %v1740, %v1736
    %v1770 = vpack.c.bf16 %v1750, %v1746
    %v1771 = vpack.c.bf16 %v1760, %v1756
    %v1772 = vpack.c.bf16 %v1692, %v1688
    %v1773 = vpack.c.bf16 %v1702, %v1698
    %v1774 = vpack.c.bf16 %v1712, %v1708
    %v1775 = vpack.c.bf16 %v1722, %v1718
    %v1776 = vpack.c.bf16 %v1732, %v1728
    %v1777 = vpack.c.bf16 %v1742, %v1738
    %v1778 = vpack.c.bf16 %v1752, %v1748
    %v1779 = vpack.c.bf16 %v1762, %v1758
    %1780 = vmatprep.subr.bf16.mxu0 0
    %1781 = vmatpush1.bf16.msra.mxu0 %v1779
    %1782 = vmatprep.subr.bf16.mxu0 0
    %1783 = vmatpush1.bf16.msra.mxu0 %v1778
    %1784 = vmatprep.subr.bf16.mxu0 0
    %1785 = vmatpush1.bf16.msra.mxu0 %v1777
    %1786 = vmatprep.subr.bf16.mxu0 0
    %1787 = vmatpush1.bf16.msra.mxu0 %v1776
    %1788 = vmatprep.subr.bf16.mxu0 0
    %1789 = vmatpush1.bf16.msra.mxu0 %v1775
    %1790 = vmatprep.subr.bf16.mxu0 0
    %1791 = vmatpush1.bf16.msra.mxu0 %v1774
    %1792 = vmatprep.subr.bf16.mxu0 0
    %1793 = vmatpush1.bf16.msra.mxu0 %v1773
    %1794 = vmatprep.subr.bf16.mxu0 0
    %1795 = vmatpush1.bf16.msra.mxu0 %v1772
    %1796 = vmatprep.subr.bf16.mxu0 0
    %1797 = vmatpush2.bf16.msra.mxu0 0
    %1798 = vmatprep.subr.bf16.mxu0 0
    %1799 = vmatpush2.bf16.msra.mxu0 0
    %1800 = vmatprep.subr.bf16.mxu0 0
    %1801 = vmatpush2.bf16.msra.mxu0 0
    %1802 = vmatprep.subr.bf16.mxu0 0
    %1803 = vmatpush2.bf16.msra.mxu0 0
    %1804 = vmatprep.subr.bf16.mxu0 0
    %1805 = vmatpush2.bf16.msra.mxu0 0
    %1806 = vmatprep.subr.bf16.mxu0 0
    %1807 = vmatpush2.bf16.msra.mxu0 0
    %1808 = vmatprep.subr.bf16.mxu0 0
    %1809 = vmatpush2.bf16.msra.mxu0 0
    %1810 = vmatprep.subr.bf16.mxu0 0
    %1811 = vmatpush2.bf16.msra.mxu0 0
    %1812 = vmatprep.mubr.bf16.mxu0 0
    %1813 = vmatmul.mubr.bf16.gmra.mxu0 %v324
    %v1814 = vpop.f32.mrf.mxu0
    %v1815 = vadd.f32 0.0, %v1814
    %v1816 = vpop.f32.mrf.mxu0
    %v1817 = vpop.f32.mrf.mxu0
    %v1818 = vadd.f32 0.0, %v1817
    %v1819 = vpop.f32.mrf.mxu0
    %1820 = vmatprep.mubr.bf16.mxu0 0
    %1821 = vmatmul.mubr.bf16.gmra.mxu0 %v325
    %v1822 = vpop.f32.mrf.mxu0
    %v1823 = vadd.f32 0.0, %v1822
    %v1824 = vpop.f32.mrf.mxu0
    %v1825 = vpop.f32.mrf.mxu0
    %v1826 = vadd.f32 0.0, %v1825
    %v1827 = vpop.f32.mrf.mxu0
    %1828 = vmatprep.mubr.bf16.mxu0 0
    %1829 = vmatmul.mubr.bf16.gmra.mxu0 %v326
    %v1830 = vpop.f32.mrf.mxu0
    %v1831 = vadd.f32 0.0, %v1830
    %v1832 = vpop.f32.mrf.mxu0
    %v1833 = vpop.f32.mrf.mxu0
    %v1834 = vadd.f32 0.0, %v1833
    %v1835 = vpop.f32.mrf.mxu0
    %1836 = vmatprep.mubr.bf16.mxu0 0
    %1837 = vmatmul.mubr.bf16.gmra.mxu0 %v327
    %v1838 = vpop.f32.mrf.mxu0
    %v1839 = vadd.f32 0.0, %v1838
    %v1840 = vpop.f32.mrf.mxu0
    %v1841 = vpop.f32.mrf.mxu0
    %v1842 = vadd.f32 0.0, %v1841
    %v1843 = vpop.f32.mrf.mxu0
    %1844 = vmatprep.mubr.bf16.mxu0 0
    %1845 = vmatmul.mubr.bf16.gmra.mxu0 %v328
    %v1846 = vpop.f32.mrf.mxu0
    %v1847 = vadd.f32 0.0, %v1846
    %v1848 = vpop.f32.mrf.mxu0
    %v1849 = vpop.f32.mrf.mxu0
    %v1850 = vadd.f32 0.0, %v1849
    %v1851 = vpop.f32.mrf.mxu0
    %1852 = vmatprep.mubr.bf16.mxu0 0
    %1853 = vmatmul.mubr.bf16.gmra.mxu0 %v329
    %v1854 = vpop.f32.mrf.mxu0
    %v1855 = vadd.f32 0.0, %v1854
    %v1856 = vpop.f32.mrf.mxu0
    %v1857 = vpop.f32.mrf.mxu0
    %v1858 = vadd.f32 0.0, %v1857
    %v1859 = vpop.f32.mrf.mxu0
    %1860 = vmatprep.mubr.bf16.mxu0 0
    %1861 = vmatmul.mubr.bf16.gmra.mxu0 %v330
    %v1862 = vpop.f32.mrf.mxu0
    %v1863 = vadd.f32 0.0, %v1862
    %v1864 = vpop.f32.mrf.mxu0
    %v1865 = vpop.f32.mrf.mxu0
    %v1866 = vadd.f32 0.0, %v1865
    %v1867 = vpop.f32.mrf.mxu0
    %1868 = vmatprep.mubr.bf16.mxu0 0
    %1869 = vmatmul.mubr.bf16.gmra.mxu0 %v331
    %v1870 = vpop.f32.mrf.mxu0
    %v1871 = vadd.f32 0.0, %v1870
    %v1872 = vpop.f32.mrf.mxu0
    %v1873 = vpop.f32.mrf.mxu0
    %v1874 = vadd.f32 0.0, %v1873
    %v1875 = vpop.f32.mrf.mxu0
    %1876 = vdwg.mxu0
    %1877 = vmatprep.subr.bf16.mxu0 0
    %1878 = vmatpush1.bf16.msra.mxu0 %v1771
    %1879 = vmatprep.subr.bf16.mxu0 0
    %1880 = vmatpush1.bf16.msra.mxu0 %v1770
    %1881 = vmatprep.subr.bf16.mxu0 0
    %1882 = vmatpush1.bf16.msra.mxu0 %v1769
    %1883 = vmatprep.subr.bf16.mxu0 0
    %1884 = vmatpush1.bf16.msra.mxu0 %v1768
    %1885 = vmatprep.subr.bf16.mxu0 0
    %1886 = vmatpush1.bf16.msra.mxu0 %v1767
    %1887 = vmatprep.subr.bf16.mxu0 0
    %1888 = vmatpush1.bf16.msra.mxu0 %v1766
    %1889 = vmatprep.subr.bf16.mxu0 0
    %1890 = vmatpush1.bf16.msra.mxu0 %v1765
    %1891 = vmatprep.subr.bf16.mxu0 0
    %1892 = vmatpush1.bf16.msra.mxu0 %v1764
    %1893 = vmatprep.subr.bf16.mxu0 0
    %1894 = vmatpush2.bf16.msra.mxu0 0
    %1895 = vmatprep.subr.bf16.mxu0 0
    %1896 = vmatpush2.bf16.msra.mxu0 0
    %1897 = vmatprep.subr.bf16.mxu0 0
    %1898 = vmatpush2.bf16.msra.mxu0 0
    %1899 = vmatprep.subr.bf16.mxu0 0
    %1900 = vmatpush2.bf16.msra.mxu0 0
    %1901 = vmatprep.subr.bf16.mxu0 0
    %1902 = vmatpush2.bf16.msra.mxu0 0
    %1903 = vmatprep.subr.bf16.mxu0 0
    %1904 = vmatpush2.bf16.msra.mxu0 0
    %1905 = vmatprep.subr.bf16.mxu0 0
    %1906 = vmatpush2.bf16.msra.mxu0 0
    %1907 = vmatprep.subr.bf16.mxu0 0
    %1908 = vmatpush2.bf16.msra.mxu0 0
    %1909 = vmatprep.mubr.bf16.mxu0 0
    %1910 = vmatmul.mubr.bf16.gmra.mxu0 %v204
    %v1911 = vpop.f32.mrf.mxu0
    %v1912 = vadd.f32 %v1815, %v1911
    %v1913 = vpop.f32.mrf.mxu0
    %v1914 = vpop.f32.mrf.mxu0
    %v1915 = vadd.f32 %v1818, %v1914
    %v1916 = vpop.f32.mrf.mxu0
    %1917 = vmatprep.mubr.bf16.mxu0 0
    %1918 = vmatmul.mubr.bf16.gmra.mxu0 %v205
    %v1919 = vpop.f32.mrf.mxu0
    %v1920 = vadd.f32 %v1823, %v1919
    %v1921 = vpop.f32.mrf.mxu0
    %v1922 = vpop.f32.mrf.mxu0
    %v1923 = vadd.f32 %v1826, %v1922
    %v1924 = vpop.f32.mrf.mxu0
    %1925 = vmatprep.mubr.bf16.mxu0 0
    %1926 = vmatmul.mubr.bf16.gmra.mxu0 %v206
    %v1927 = vpop.f32.mrf.mxu0
    %v1928 = vadd.f32 %v1831, %v1927
    %v1929 = vpop.f32.mrf.mxu0
    %v1930 = vpop.f32.mrf.mxu0
    %v1931 = vadd.f32 %v1834, %v1930
    %v1932 = vpop.f32.mrf.mxu0
    %1933 = vmatprep.mubr.bf16.mxu0 0
    %1934 = vmatmul.mubr.bf16.gmra.mxu0 %v207
    %v1935 = vpop.f32.mrf.mxu0
    %v1936 = vadd.f32 %v1839, %v1935
    %v1937 = vpop.f32.mrf.mxu0
    %v1938 = vpop.f32.mrf.mxu0
    %v1939 = vadd.f32 %v1842, %v1938
    %v1940 = vpop.f32.mrf.mxu0
    %1941 = vmatprep.mubr.bf16.mxu0 0
    %1942 = vmatmul.mubr.bf16.gmra.mxu0 %v208
    %v1943 = vpop.f32.mrf.mxu0
    %v1944 = vadd.f32 %v1847, %v1943
    %v1945 = vpop.f32.mrf.mxu0
    %v1946 = vpop.f32.mrf.mxu0
    %v1947 = vadd.f32 %v1850, %v1946
    %v1948 = vpop.f32.mrf.mxu0
    %1949 = vmatprep.mubr.bf16.mxu0 0
    %1950 = vmatmul.mubr.bf16.gmra.mxu0 %v209
    %v1951 = vpop.f32.mrf.mxu0
    %v1952 = vadd.f32 %v1855, %v1951
    %v1953 = vpop.f32.mrf.mxu0
    %v1954 = vpop.f32.mrf.mxu0
    %v1955 = vadd.f32 %v1858, %v1954
    %v1956 = vpop.f32.mrf.mxu0
    %1957 = vmatprep.mubr.bf16.mxu0 0
    %1958 = vmatmul.mubr.bf16.gmra.mxu0 %v210
    %v1959 = vpop.f32.mrf.mxu0
    %v1960 = vadd.f32 %v1863, %v1959
    %v1961 = vpop.f32.mrf.mxu0
    %v1962 = vpop.f32.mrf.mxu0
    %v1963 = vadd.f32 %v1866, %v1962
    %v1964 = vpop.f32.mrf.mxu0
    %1965 = vmatprep.mubr.bf16.mxu0 0
    %1966 = vmatmul.mubr.bf16.gmra.mxu0 %v211
    %v1967 = vpop.f32.mrf.mxu0
    %v1968 = vadd.f32 %v1871, %v1967
    %v1969 = vpop.f32.mrf.mxu0
    %v1970 = vpop.f32.mrf.mxu0
    %v1971 = vadd.f32 %v1874, %v1970
    %v1972 = vpop.f32.mrf.mxu0
    %1973 = vdwg.mxu0
    %v1990 = vunpack.c.l.b16 %v1414
    %v1991 = vunpack.c.l.b16 %v1415
    %v1992 = vunpack.c.l.b16 %v1416
    %v1993 = vunpack.c.l.b16 %v1417
    %v1994 = vunpack.c.l.b16 %v1418
    %v1995 = vunpack.c.l.b16 %v1419
    %v1996 = vunpack.c.l.b16 %v1420
    %v1997 = vunpack.c.l.b16 %v1421
    %v1998 = vunpack.c.l.b16 %v1422
    %v1999 = vunpack.c.l.b16 %v1423
    %v2000 = vunpack.c.l.b16 %v1424
    %v2001 = vunpack.c.l.b16 %v1425
    %v2002 = vunpack.c.l.b16 %v1426
    %v2003 = vunpack.c.l.b16 %v1427
    %v2004 = vunpack.c.l.b16 %v1428
    %v2005 = vunpack.c.l.b16 %v1429
    %v2006 = vpack.c.b16 %v1991, %v1990
    %v2007 = vpack.c.b16 %v1993, %v1992
    %v2008 = vpack.c.b16 %v1995, %v1994
    %v2009 = vpack.c.b16 %v1997, %v1996
    %v2010 = vpack.c.b16 %v1999, %v1998
    %v2011 = vpack.c.b16 %v2001, %v2000
    %v2012 = vpack.c.b16 %v2003, %v2002
    %v2013 = vpack.c.b16 %v2005, %v2004
    %2022 = vmatprep.subr.bf16.mxu0 0
    %2023 = vmatpush1.bf16.msra.mxu0 %v2013
    %2024 = vmatprep.subr.bf16.mxu0 0
    %2025 = vmatpush1.bf16.msra.mxu0 %v2012
    %2026 = vmatprep.subr.bf16.mxu0 0
    %2027 = vmatpush1.bf16.msra.mxu0 %v2011
    %2028 = vmatprep.subr.bf16.mxu0 0
    %2029 = vmatpush1.bf16.msra.mxu0 %v2010
    %2030 = vmatprep.subr.bf16.mxu0 0
    %2031 = vmatpush1.bf16.msra.mxu0 %v2009
    %2032 = vmatprep.subr.bf16.mxu0 0
    %2033 = vmatpush1.bf16.msra.mxu0 %v2008
    %2034 = vmatprep.subr.bf16.mxu0 0
    %2035 = vmatpush1.bf16.msra.mxu0 %v2007
    %2036 = vmatprep.subr.bf16.mxu0 0
    %2037 = vmatpush1.bf16.msra.mxu0 %v2006
    %2038 = vmatprep.subr.bf16.mxu0 0
    %2039 = vmatpush2.bf16.msra.mxu0 0
    %2040 = vmatprep.subr.bf16.mxu0 0
    %2041 = vmatpush2.bf16.msra.mxu0 0
    %2042 = vmatprep.subr.bf16.mxu0 0
    %2043 = vmatpush2.bf16.msra.mxu0 0
    %2044 = vmatprep.subr.bf16.mxu0 0
    %2045 = vmatpush2.bf16.msra.mxu0 0
    %2046 = vmatprep.subr.bf16.mxu0 0
    %2047 = vmatpush2.bf16.msra.mxu0 0
    %2048 = vmatprep.subr.bf16.mxu0 0
    %2049 = vmatpush2.bf16.msra.mxu0 0
    %2050 = vmatprep.subr.bf16.mxu0 0
    %2051 = vmatpush2.bf16.msra.mxu0 0
    %2052 = vmatprep.subr.bf16.mxu0 0
    %2053 = vmatpush2.bf16.msra.mxu0 0
    %2054 = vmatprep.mubr.bf16.mxu0 0
    %2055 = vmatmul.mubr.bf16.gmra.mxu0 %v1431
    %v2056 = vpop.f32.mrf.mxu0
    %v2057 = vadd.f32 0.0, %v2056
    %v2058 = vpop.f32.mrf.mxu0
    %v2059 = vpop.f32.mrf.mxu0
    %v2060 = vadd.f32 0.0, %v2059
    %v2061 = vpop.f32.mrf.mxu0
    %2062 = vmatprep.mubr.bf16.mxu0 0
    %2063 = vmatmul.mubr.bf16.gmra.mxu0 %v1432
    %v2064 = vpop.f32.mrf.mxu0
    %v2065 = vadd.f32 0.0, %v2064
    %v2066 = vpop.f32.mrf.mxu0
    %v2067 = vpop.f32.mrf.mxu0
    %v2068 = vadd.f32 0.0, %v2067
    %v2069 = vpop.f32.mrf.mxu0
    %2070 = vmatprep.mubr.bf16.mxu0 0
    %2071 = vmatmul.mubr.bf16.gmra.mxu0 %v1433
    %v2072 = vpop.f32.mrf.mxu0
    %v2073 = vadd.f32 0.0, %v2072
    %v2074 = vpop.f32.mrf.mxu0
    %v2075 = vpop.f32.mrf.mxu0
    %v2076 = vadd.f32 0.0, %v2075
    %v2077 = vpop.f32.mrf.mxu0
    %2078 = vmatprep.mubr.bf16.mxu0 0
    %2079 = vmatmul.mubr.bf16.gmra.mxu0 %v1434
    %v2080 = vpop.f32.mrf.mxu0
    %v2081 = vadd.f32 0.0, %v2080
    %v2082 = vpop.f32.mrf.mxu0
    %v2083 = vpop.f32.mrf.mxu0
    %v2084 = vadd.f32 0.0, %v2083
    %v2085 = vpop.f32.mrf.mxu0
    %2086 = vmatprep.mubr.bf16.mxu0 0
    %2087 = vmatmul.mubr.bf16.gmra.mxu0 %v1435
    %v2088 = vpop.f32.mrf.mxu0
    %v2089 = vadd.f32 0.0, %v2088
    %v2090 = vpop.f32.mrf.mxu0
    %v2091 = vpop.f32.mrf.mxu0
    %v2092 = vadd.f32 0.0, %v2091
    %v2093 = vpop.f32.mrf.mxu0
    %2094 = vmatprep.mubr.bf16.mxu0 0
    %2095 = vmatmul.mubr.bf16.gmra.mxu0 %v1436
    %v2096 = vpop.f32.mrf.mxu0
    %v2097 = vadd.f32 0.0, %v2096
    %v2098 = vpop.f32.mrf.mxu0
    %v2099 = vpop.f32.mrf.mxu0
    %v2100 = vadd.f32 0.0, %v2099
    %v2101 = vpop.f32.mrf.mxu0
    %2102 = vmatprep.mubr.bf16.mxu0 0
    %2103 = vmatmul.mubr.bf16.gmra.mxu0 %v1437
    %v2104 = vpop.f32.mrf.mxu0
    %v2105 = vadd.f32 0.0, %v2104
    %v2106 = vpop.f32.mrf.mxu0
    %v2107 = vpop.f32.mrf.mxu0
    %v2108 = vadd.f32 0.0, %v2107
    %v2109 = vpop.f32.mrf.mxu0
    %2110 = vmatprep.mubr.bf16.mxu0 0
    %2111 = vmatmul.mubr.bf16.gmra.mxu0 %v1438
    %v2112 = vpop.f32.mrf.mxu0
    %v2113 = vadd.f32 0.0, %v2112
    %v2114 = vpop.f32.mrf.mxu0
    %v2115 = vpop.f32.mrf.mxu0
    %v2116 = vadd.f32 0.0, %v2115
    %v2117 = vpop.f32.mrf.mxu0
    %2118 = vdwg.mxu0
    %v2119 = vadd.f32 %v1912, %v2057
    %v2120 = vadd.f32 %v1915, %v2060
    %v2121 = vadd.f32 %v1920, %v2065
    %v2122 = vadd.f32 %v1923, %v2068
    %v2123 = vadd.f32 %v1928, %v2073
    %v2124 = vadd.f32 %v1931, %v2076
    %v2125 = vadd.f32 %v1936, %v2081
    %v2126 = vadd.f32 %v1939, %v2084
    %v2127 = vadd.f32 %v1944, %v2089
    %v2128 = vadd.f32 %v1947, %v2092
    %v2129 = vadd.f32 %v1952, %v2097
    %v2130 = vadd.f32 %v1955, %v2100
    %v2131 = vadd.f32 %v1960, %v2105
    %v2132 = vadd.f32 %v1963, %v2108
    %v2133 = vadd.f32 %v1968, %v2113
    %v2134 = vadd.f32 %v1971, %v2116
    %v2136 = vlaneseq
    %v2137 = vshrl.u32 %v2136, 7
    %v2138 = vsub.s32 0, %v2137
    %v2139 = vrot.slane %v1430, %v2138
    %v2141 = vadd.f32 %v2119, %v2139
    %v2142 = vadd.f32 %v2120, %v2139
    %v2143 = vadd.f32 %v2121, %v2139
    %v2144 = vadd.f32 %v2122, %v2139
    %v2145 = vadd.f32 %v2123, %v2139
    %v2146 = vadd.f32 %v2124, %v2139
    %v2147 = vadd.f32 %v2125, %v2139
    %v2148 = vadd.f32 %v2126, %v2139
    %v2149 = vadd.f32 %v2127, %v2139
    %v2150 = vadd.f32 %v2128, %v2139
    %v2151 = vadd.f32 %v2129, %v2139
    %v2152 = vadd.f32 %v2130, %v2139
    %v2153 = vadd.f32 %v2131, %v2139
    %v2154 = vadd.f32 %v2132, %v2139
    %v2155 = vadd.f32 %v2133, %v2139
    %v2156 = vadd.f32 %v2134, %v2139
    %v2157 = vmax.f32 %v2141, 0.0
    %v2158 = vmax.f32 %v2142, 0.0
    %v2159 = vmax.f32 %v2143, 0.0
    %v2160 = vmax.f32 %v2144, 0.0
    %v2161 = vmax.f32 %v2145, 0.0
    %v2162 = vmax.f32 %v2146, 0.0
    %v2163 = vmax.f32 %v2147, 0.0
    %v2164 = vmax.f32 %v2148, 0.0
    %v2165 = vmax.f32 %v2149, 0.0
    %v2166 = vmax.f32 %v2150, 0.0
    %v2167 = vmax.f32 %v2151, 0.0
    %v2168 = vmax.f32 %v2152, 0.0
    %v2169 = vmax.f32 %v2153, 0.0
    %v2170 = vmax.f32 %v2154, 0.0
    %v2171 = vmax.f32 %v2155, 0.0
    %v2172 = vmax.f32 %v2156, 0.0
    %v2173 = vld [vmem:[%s14] sm:$0xff]
    %v2174 = vld [vmem:[%s14 + $0x8] sm:$0xff]
    %v2175 = vld [vmem:[%s14 + $0x10] sm:$0xff]
    %v2176 = vld [vmem:[%s14 + $0x18] sm:$0xff]
    %v2177 = vld [vmem:[%s14 + $0x20] sm:$0xff]
    %v2178 = vld [vmem:[%s14 + $0x28] sm:$0xff]
    %v2179 = vld [vmem:[%s14 + $0x30] sm:$0xff]
    %v2180 = vld [vmem:[%s14 + $0x38] sm:$0xff]
    %v2181 = vld [vmem:[%s14 + $0x40] sm:$0xff]
    %v2182 = vld [vmem:[%s14 + $0x48] sm:$0xff]
    %v2183 = vld [vmem:[%s14 + $0x50] sm:$0xff]
    %v2184 = vld [vmem:[%s14 + $0x58] sm:$0xff]
    %v2185 = vld [vmem:[%s14 + $0x60] sm:$0xff]
    %v2186 = vld [vmem:[%s14 + $0x68] sm:$0xff]
    %v2187 = vld [vmem:[%s14 + $0x70] sm:$0xff]
    %v2188 = vld [vmem:[%s14 + $0x78] sm:$0xff]
    %v2189 = vld [vmem:[%s14 + $0x80] sm:$0xff]
    %v2190 = vld [vmem:[#allocation5] sm:$0xf]
    %v2191 = vld [vmem:[#allocation5 + $0x4] sm:$0xf]
    %v2192 = vld [vmem:[#allocation5 + $0x8] sm:$0xf]
    %v2193 = vld [vmem:[#allocation5 + $0xc] sm:$0xf]
    %v2194 = vld [vmem:[#allocation5 + $0x10] sm:$0xf]
    %v2195 = vld [vmem:[#allocation5 + $0x14] sm:$0xf]
    %v2196 = vld [vmem:[#allocation5 + $0x18] sm:$0xf]
    %v2197 = vld [vmem:[#allocation5 + $0x1c] sm:$0xf]
    %v2198 = vld [vmem:[#allocation5 + $0x20] sm:$0xf]
    %v2199 = vld [vmem:[#allocation5 + $0x24] sm:$0xf]
    %v2200 = vld [vmem:[#allocation5 + $0x28] sm:$0xf]
    %v2201 = vld [vmem:[#allocation5 + $0x2c] sm:$0xf]
    %v2202 = vld [vmem:[#allocation5 + $0x30] sm:$0xf]
    %v2203 = vld [vmem:[#allocation5 + $0x34] sm:$0xf]
    %v2204 = vld [vmem:[#allocation5 + $0x38] sm:$0xf]
    %v2205 = vld [vmem:[#allocation5 + $0x3c] sm:$0xf]
    %v2206 = vld [vmem:[%s16] sm:$0x1]
    %v2207 = vpack.c.bf16 %v2158, %v2157
    %v2208 = vpack.c.bf16 %v2160, %v2159
    %v2209 = vpack.c.bf16 %v2162, %v2161
    %v2210 = vpack.c.bf16 %v2164, %v2163
    %v2211 = vpack.c.bf16 %v2166, %v2165
    %v2212 = vpack.c.bf16 %v2168, %v2167
    %v2213 = vpack.c.bf16 %v2170, %v2169
    %v2214 = vpack.c.bf16 %v2172, %v2171
    %2215 = vmatprep.subr.bf16.mxu0 0
    %2216 = vmatpush1.bf16.msra.mxu0 %v2214
    %2217 = vmatprep.subr.bf16.mxu0 0
    %2218 = vmatpush1.bf16.msra.mxu0 %v2213
    %2219 = vmatprep.subr.bf16.mxu0 0
    %2220 = vmatpush1.bf16.msra.mxu0 %v2212
    %2221 = vmatprep.subr.bf16.mxu0 0
    %2222 = vmatpush1.bf16.msra.mxu0 %v2211
    %2223 = vmatprep.subr.bf16.mxu0 0
    %2224 = vmatpush1.bf16.msra.mxu0 %v2210
    %2225 = vmatprep.subr.bf16.mxu0 0
    %2226 = vmatpush1.bf16.msra.mxu0 %v2209
    %2227 = vmatprep.subr.bf16.mxu0 0
    %2228 = vmatpush1.bf16.msra.mxu0 %v2208
    %2229 = vmatprep.subr.bf16.mxu0 0
    %2230 = vmatpush1.bf16.msra.mxu0 %v2207
    %2231 = vmatprep.subr.bf16.mxu0 0
    %2232 = vmatpush2.bf16.msra.mxu0 0
    %2233 = vmatprep.subr.bf16.mxu0 0
    %2234 = vmatpush2.bf16.msra.mxu0 0
    %2235 = vmatprep.subr.bf16.mxu0 0
    %2236 = vmatpush2.bf16.msra.mxu0 0
    %2237 = vmatprep.subr.bf16.mxu0 0
    %2238 = vmatpush2.bf16.msra.mxu0 0
    %2239 = vmatprep.subr.bf16.mxu0 0
    %2240 = vmatpush2.bf16.msra.mxu0 0
    %2241 = vmatprep.subr.bf16.mxu0 0
    %2242 = vmatpush2.bf16.msra.mxu0 0
    %2243 = vmatprep.subr.bf16.mxu0 0
    %2244 = vmatpush2.bf16.msra.mxu0 0
    %2245 = vmatprep.subr.bf16.mxu0 0
    %2246 = vmatpush2.bf16.msra.mxu0 0
    %2247 = vmatprep.mubr.bf16.mxu0 0
    %2248 = vmatmul.mubr.bf16.gmra.mxu0 %v419
    %v2249 = vpop.f32.mrf.mxu0
    %v2250 = vadd.f32 0.0, %v2249
    %v2251 = vpop.f32.mrf.mxu0
    %v2252 = vpop.f32.mrf.mxu0
    %v2253 = vadd.f32 0.0, %v2252
    %v2254 = vpop.f32.mrf.mxu0
    %2255 = vmatprep.mubr.bf16.mxu0 0
    %2256 = vmatmul.mubr.bf16.gmra.mxu0 %v420
    %v2257 = vpop.f32.mrf.mxu0
    %v2258 = vadd.f32 0.0, %v2257
    %v2259 = vpop.f32.mrf.mxu0
    %v2260 = vpop.f32.mrf.mxu0
    %v2261 = vadd.f32 0.0, %v2260
    %v2262 = vpop.f32.mrf.mxu0
    %2263 = vmatprep.mubr.bf16.mxu0 0
    %2264 = vmatmul.mubr.bf16.gmra.mxu0 %v421
    %v2265 = vpop.f32.mrf.mxu0
    %v2266 = vadd.f32 0.0, %v2265
    %v2267 = vpop.f32.mrf.mxu0
    %v2268 = vpop.f32.mrf.mxu0
    %v2269 = vadd.f32 0.0, %v2268
    %v2270 = vpop.f32.mrf.mxu0
    %2271 = vmatprep.mubr.bf16.mxu0 0
    %2272 = vmatmul.mubr.bf16.gmra.mxu0 %v422
    %v2273 = vpop.f32.mrf.mxu0
    %v2274 = vadd.f32 0.0, %v2273
    %v2275 = vpop.f32.mrf.mxu0
    %v2276 = vpop.f32.mrf.mxu0
    %v2277 = vadd.f32 0.0, %v2276
    %v2278 = vpop.f32.mrf.mxu0
    %2279 = vmatprep.mubr.bf16.mxu0 0
    %2280 = vmatmul.mubr.bf16.gmra.mxu0 %v423
    %v2281 = vpop.f32.mrf.mxu0
    %v2282 = vadd.f32 0.0, %v2281
    %v2283 = vpop.f32.mrf.mxu0
    %v2284 = vpop.f32.mrf.mxu0
    %v2285 = vadd.f32 0.0, %v2284
    %v2286 = vpop.f32.mrf.mxu0
    %2287 = vmatprep.mubr.bf16.mxu0 0
    %2288 = vmatmul.mubr.bf16.gmra.mxu0 %v424
    %v2289 = vpop.f32.mrf.mxu0
    %v2290 = vadd.f32 0.0, %v2289
    %v2291 = vpop.f32.mrf.mxu0
    %v2292 = vpop.f32.mrf.mxu0
    %v2293 = vadd.f32 0.0, %v2292
    %v2294 = vpop.f32.mrf.mxu0
    %2295 = vmatprep.mubr.bf16.mxu0 0
    %2296 = vmatmul.mubr.bf16.gmra.mxu0 %v425
    %v2297 = vpop.f32.mrf.mxu0
    %v2298 = vadd.f32 0.0, %v2297
    %v2299 = vpop.f32.mrf.mxu0
    %v2300 = vpop.f32.mrf.mxu0
    %v2301 = vadd.f32 0.0, %v2300
    %v2302 = vpop.f32.mrf.mxu0
    %2303 = vmatprep.mubr.bf16.mxu0 0
    %2304 = vmatmul.mubr.bf16.gmra.mxu0 %v426
    %v2305 = vpop.f32.mrf.mxu0
    %v2306 = vadd.f32 0.0, %v2305
    %v2307 = vpop.f32.mrf.mxu0
    %v2308 = vpop.f32.mrf.mxu0
    %v2309 = vadd.f32 0.0, %v2308
    %v2310 = vpop.f32.mrf.mxu0
    %2311 = vdwg.mxu0
    %v2312 = vmul.f32 %v2250, %v617
    %v2313 = vmul.f32 %v2253, %v622
    %v2314 = vmul.f32 %v2258, %v627
    %v2315 = vmul.f32 %v2261, %v632
    %v2316 = vmul.f32 %v2266, %v637
    %v2317 = vmul.f32 %v2269, %v642
    %v2318 = vmul.f32 %v2274, %v647
    %v2319 = vmul.f32 %v2277, %v652
    %v2320 = vmul.f32 %v2282, %v657
    %v2321 = vmul.f32 %v2285, %v662
    %v2322 = vmul.f32 %v2290, %v667
    %v2323 = vmul.f32 %v2293, %v672
    %v2324 = vmul.f32 %v2298, %v677
    %v2325 = vmul.f32 %v2301, %v682
    %v2326 = vmul.f32 %v2306, %v687
    %v2327 = vmul.f32 %v2309, %v692
    %v2328 = vpack.c.bf16 %v2313, %v2312
    %v2329 = vpack.c.bf16 %v2315, %v2314
    %v2330 = vpack.c.bf16 %v2317, %v2316
    %v2331 = vpack.c.bf16 %v2319, %v2318
    %v2332 = vpack.c.bf16 %v2321, %v2320
    %v2333 = vpack.c.bf16 %v2323, %v2322
    %v2334 = vpack.c.bf16 %v2325, %v2324
    %v2335 = vpack.c.bf16 %v2327, %v2326
    %v2353 = vunpack.c.l.b16 %v2173
    %v2354 = vunpack.c.h.b16 %v2173
    %v2355 = vunpack.c.l.b16 %v2174
    %v2356 = vunpack.c.h.b16 %v2174
    %v2357 = vunpack.c.l.b16 %v2175
    %v2358 = vunpack.c.h.b16 %v2175
    %v2359 = vunpack.c.l.b16 %v2176
    %v2360 = vunpack.c.h.b16 %v2176
    %v2361 = vunpack.c.l.b16 %v2177
    %v2362 = vunpack.c.h.b16 %v2177
    %v2363 = vunpack.c.l.b16 %v2178
    %v2364 = vunpack.c.h.b16 %v2178
    %v2365 = vunpack.c.l.b16 %v2179
    %v2366 = vunpack.c.h.b16 %v2179
    %v2367 = vunpack.c.l.b16 %v2180
    %v2368 = vunpack.c.h.b16 %v2180
    %v2369 = vunpack.c.l.b16 %v2181
    %v2370 = vunpack.c.h.b16 %v2181
    %v2371 = vunpack.c.l.b16 %v2182
    %v2372 = vunpack.c.h.b16 %v2182
    %v2373 = vunpack.c.l.b16 %v2183
    %v2374 = vunpack.c.h.b16 %v2183
    %v2375 = vunpack.c.l.b16 %v2184
    %v2376 = vunpack.c.h.b16 %v2184
    %v2377 = vunpack.c.l.b16 %v2185
    %v2378 = vunpack.c.h.b16 %v2185
    %v2379 = vunpack.c.l.b16 %v2186
    %v2380 = vunpack.c.h.b16 %v2186
    %v2381 = vunpack.c.l.b16 %v2187
    %v2382 = vunpack.c.h.b16 %v2187
    %v2383 = vunpack.c.l.b16 %v2188
    %v2384 = vunpack.c.h.b16 %v2188
    %v2385 = vunpack.c.l.b16 %v2189
    %v2386 = vunpack.c.h.b16 %v2189
    %v2387 = vpack.c.b16 %v2355, %v2353
    %v2388 = vpack.c.b16 %v2356, %v2354
    %v2389 = vpack.c.b16 %v2359, %v2357
    %v2390 = vpack.c.b16 %v2360, %v2358
    %v2391 = vpack.c.b16 %v2363, %v2361
    %v2392 = vpack.c.b16 %v2364, %v2362
    %v2393 = vpack.c.b16 %v2367, %v2365
    %v2394 = vpack.c.b16 %v2368, %v2366
    %v2395 = vpack.c.b16 %v2371, %v2369
    %v2396 = vpack.c.b16 %v2372, %v2370
    %v2397 = vpack.c.b16 %v2375, %v2373
    %v2398 = vpack.c.b16 %v2376, %v2374
    %v2399 = vpack.c.b16 %v2379, %v2377
    %v2400 = vpack.c.b16 %v2380, %v2378
    %v2401 = vpack.c.b16 %v2383, %v2381
    %v2402 = vpack.c.b16 %v2384, %v2382
    %v2403 = vpack.c.b16 %v2385, %v2385
    %v2404 = vpack.c.b16 %v2386, %v2386
    %v2422 = vsel %vm868, %v2403, 0
    %v2425 = vsel %vm868, %v2404, 0
    %2427 = vmatprep.subr.bf16.mxu0 %v2402
    %2428 = vmatpush1.bf16.msra.mxu0 %v2401
    %2429 = vmatprep.subr.bf16.mxu0 %v2400
    %2430 = vmatpush1.bf16.msra.mxu0 %v2399
    %2431 = vmatprep.subr.bf16.mxu0 %v2398
    %2432 = vmatpush1.bf16.msra.mxu0 %v2397
    %2433 = vmatprep.subr.bf16.mxu0 %v2396
    %2434 = vmatpush1.bf16.msra.mxu0 %v2395
    %2435 = vmatprep.subr.bf16.mxu0 %v2394
    %2436 = vmatpush1.bf16.msra.mxu0 %v2393
    %2437 = vmatprep.subr.bf16.mxu0 %v2392
    %2438 = vmatpush1.bf16.msra.mxu0 %v2391
    %2439 = vmatprep.subr.bf16.mxu0 %v2390
    %2440 = vmatpush1.bf16.msra.mxu0 %v2389
    %2441 = vmatprep.subr.bf16.mxu0 %v2388
    %2442 = vmatpush1.bf16.msra.mxu0 %v2387
    %2443 = vmatprep.subr.bf16.mxu0 0
    %2444 = vmatpush2.bf16.msra.mxu0 0
    %2445 = vmatprep.subr.bf16.mxu0 0
    %2446 = vmatpush2.bf16.msra.mxu0 0
    %2447 = vmatprep.subr.bf16.mxu0 0
    %2448 = vmatpush2.bf16.msra.mxu0 0
    %2449 = vmatprep.subr.bf16.mxu0 0
    %2450 = vmatpush2.bf16.msra.mxu0 0
    %2451 = vmatprep.subr.bf16.mxu0 0
    %2452 = vmatpush2.bf16.msra.mxu0 0
    %2453 = vmatprep.subr.bf16.mxu0 0
    %2454 = vmatpush2.bf16.msra.mxu0 0
    %2455 = vmatprep.subr.bf16.mxu0 0
    %2456 = vmatpush2.bf16.msra.mxu0 0
    %2457 = vmatprep.subr.bf16.mxu0 %v2425
    %2458 = vmatpush2.bf16.msra.mxu0 %v2422
    %2459 = vmatprep.mubr.bf16.mxu0 %v845
    %2460 = vmatmul.mubr.bf16.gmra.mxu0 %v2328
    %v2461 = vpop.f32.mrf.mxu0
    %v2462 = vadd.f32 0.0, %v2461
    %v2463 = vpop.f32.mrf.mxu0
    %v2464 = vadd.f32 0.0, %v2463
    %v2465 = vpop.f32.mrf.mxu0
    %v2466 = vadd.f32 0.0, %v2465
    %v2467 = vpop.f32.mrf.mxu0
    %v2468 = vadd.f32 0.0, %v2467
    %2469 = vmatprep.mubr.bf16.mxu0 %v848
    %2470 = vmatmul.mubr.bf16.gmra.mxu0 %v2329
    %v2471 = vpop.f32.mrf.mxu0
    %v2472 = vadd.f32 0.0, %v2471
    %v2473 = vpop.f32.mrf.mxu0
    %v2474 = vadd.f32 0.0, %v2473
    %v2475 = vpop.f32.mrf.mxu0
    %v2476 = vadd.f32 0.0, %v2475
    %v2477 = vpop.f32.mrf.mxu0
    %v2478 = vadd.f32 0.0, %v2477
    %2479 = vmatprep.mubr.bf16.mxu0 %v851
    %2480 = vmatmul.mubr.bf16.gmra.mxu0 %v2330
    %v2481 = vpop.f32.mrf.mxu0
    %v2482 = vadd.f32 0.0, %v2481
    %v2483 = vpop.f32.mrf.mxu0
    %v2484 = vadd.f32 0.0, %v2483
    %v2485 = vpop.f32.mrf.mxu0
    %v2486 = vadd.f32 0.0, %v2485
    %v2487 = vpop.f32.mrf.mxu0
    %v2488 = vadd.f32 0.0, %v2487
    %2489 = vmatprep.mubr.bf16.mxu0 %v854
    %2490 = vmatmul.mubr.bf16.gmra.mxu0 %v2331
    %v2491 = vpop.f32.mrf.mxu0
    %v2492 = vadd.f32 0.0, %v2491
    %v2493 = vpop.f32.mrf.mxu0
    %v2494 = vadd.f32 0.0, %v2493
    %v2495 = vpop.f32.mrf.mxu0
    %v2496 = vadd.f32 0.0, %v2495
    %v2497 = vpop.f32.mrf.mxu0
    %v2498 = vadd.f32 0.0, %v2497
    %2499 = vmatprep.mubr.bf16.mxu0 %v857
    %2500 = vmatmul.mubr.bf16.gmra.mxu0 %v2332
    %v2501 = vpop.f32.mrf.mxu0
    %v2502 = vadd.f32 0.0, %v2501
    %v2503 = vpop.f32.mrf.mxu0
    %v2504 = vadd.f32 0.0, %v2503
    %v2505 = vpop.f32.mrf.mxu0
    %v2506 = vadd.f32 0.0, %v2505
    %v2507 = vpop.f32.mrf.mxu0
    %v2508 = vadd.f32 0.0, %v2507
    %2509 = vmatprep.mubr.bf16.mxu0 %v860
    %2510 = vmatmul.mubr.bf16.gmra.mxu0 %v2333
    %v2511 = vpop.f32.mrf.mxu0
    %v2512 = vadd.f32 0.0, %v2511
    %v2513 = vpop.f32.mrf.mxu0
    %v2514 = vadd.f32 0.0, %v2513
    %v2515 = vpop.f32.mrf.mxu0
    %v2516 = vadd.f32 0.0, %v2515
    %v2517 = vpop.f32.mrf.mxu0
    %v2518 = vadd.f32 0.0, %v2517
    %2519 = vmatprep.mubr.bf16.mxu0 %v863
    %2520 = vmatmul.mubr.bf16.gmra.mxu0 %v2334
    %v2521 = vpop.f32.mrf.mxu0
    %v2522 = vadd.f32 0.0, %v2521
    %v2523 = vpop.f32.mrf.mxu0
    %v2524 = vadd.f32 0.0, %v2523
    %v2525 = vpop.f32.mrf.mxu0
    %v2526 = vadd.f32 0.0, %v2525
    %v2527 = vpop.f32.mrf.mxu0
    %v2528 = vadd.f32 0.0, %v2527
    %2529 = vmatprep.mubr.bf16.mxu0 %v866
    %2530 = vmatmul.mubr.bf16.gmra.mxu0 %v2335
    %v2531 = vpop.f32.mrf.mxu0
    %v2532 = vadd.f32 0.0, %v2531
    %v2533 = vpop.f32.mrf.mxu0
    %v2534 = vadd.f32 0.0, %v2533
    %v2535 = vpop.f32.mrf.mxu0
    %v2536 = vadd.f32 0.0, %v2535
    %v2537 = vpop.f32.mrf.mxu0
    %v2538 = vadd.f32 0.0, %v2537
    %2539 = vdwg.mxu0
    %v2540 = vpack.c.bf16 %v2466, %v2462
    %v2541 = vpack.c.bf16 %v2476, %v2472
    %v2542 = vpack.c.bf16 %v2486, %v2482
    %v2543 = vpack.c.bf16 %v2496, %v2492
    %v2544 = vpack.c.bf16 %v2506, %v2502
    %v2545 = vpack.c.bf16 %v2516, %v2512
    %v2546 = vpack.c.bf16 %v2526, %v2522
    %v2547 = vpack.c.bf16 %v2536, %v2532
    %v2548 = vpack.c.bf16 %v2468, %v2464
    %v2549 = vpack.c.bf16 %v2478, %v2474
    %v2550 = vpack.c.bf16 %v2488, %v2484
    %v2551 = vpack.c.bf16 %v2498, %v2494
    %v2552 = vpack.c.bf16 %v2508, %v2504
    %v2553 = vpack.c.bf16 %v2518, %v2514
    %v2554 = vpack.c.bf16 %v2528, %v2524
    %v2555 = vpack.c.bf16 %v2538, %v2534
    %2556 = vmatprep.subr.bf16.mxu0 0
    %2557 = vmatpush1.bf16.msra.mxu0 %v2555
    %2558 = vmatprep.subr.bf16.mxu0 0
    %2559 = vmatpush1.bf16.msra.mxu0 %v2554
    %2560 = vmatprep.subr.bf16.mxu0 0
    %2561 = vmatpush1.bf16.msra.mxu0 %v2553
    %2562 = vmatprep.subr.bf16.mxu0 0
    %2563 = vmatpush1.bf16.msra.mxu0 %v2552
    %2564 = vmatprep.subr.bf16.mxu0 0
    %2565 = vmatpush1.bf16.msra.mxu0 %v2551
    %2566 = vmatprep.subr.bf16.mxu0 0
    %2567 = vmatpush1.bf16.msra.mxu0 %v2550
    %2568 = vmatprep.subr.bf16.mxu0 0
    %2569 = vmatpush1.bf16.msra.mxu0 %v2549
    %2570 = vmatprep.subr.bf16.mxu0 0
    %2571 = vmatpush1.bf16.msra.mxu0 %v2548
    %2572 = vmatprep.subr.bf16.mxu0 0
    %2573 = vmatpush2.bf16.msra.mxu0 0
    %2574 = vmatprep.subr.bf16.mxu0 0
    %2575 = vmatpush2.bf16.msra.mxu0 0
    %2576 = vmatprep.subr.bf16.mxu0 0
    %2577 = vmatpush2.bf16.msra.mxu0 0
    %2578 = vmatprep.subr.bf16.mxu0 0
    %2579 = vmatpush2.bf16.msra.mxu0 0
    %2580 = vmatprep.subr.bf16.mxu0 0
    %2581 = vmatpush2.bf16.msra.mxu0 0
    %2582 = vmatprep.subr.bf16.mxu0 0
    %2583 = vmatpush2.bf16.msra.mxu0 0
    %2584 = vmatprep.subr.bf16.mxu0 0
    %2585 = vmatpush2.bf16.msra.mxu0 0
    %2586 = vmatprep.subr.bf16.mxu0 0
    %2587 = vmatpush2.bf16.msra.mxu0 0
    %2588 = vmatprep.mubr.bf16.mxu0 0
    %2589 = vmatmul.mubr.bf16.gmra.mxu0 %v324
    %v2590 = vpop.f32.mrf.mxu0
    %v2591 = vadd.f32 0.0, %v2590
    %v2592 = vpop.f32.mrf.mxu0
    %v2593 = vpop.f32.mrf.mxu0
    %v2594 = vadd.f32 0.0, %v2593
    %v2595 = vpop.f32.mrf.mxu0
    %2596 = vmatprep.mubr.bf16.mxu0 0
    %2597 = vmatmul.mubr.bf16.gmra.mxu0 %v325
    %v2598 = vpop.f32.mrf.mxu0
    %v2599 = vadd.f32 0.0, %v2598
    %v2600 = vpop.f32.mrf.mxu0
    %v2601 = vpop.f32.mrf.mxu0
    %v2602 = vadd.f32 0.0, %v2601
    %v2603 = vpop.f32.mrf.mxu0
    %2604 = vmatprep.mubr.bf16.mxu0 0
    %2605 = vmatmul.mubr.bf16.gmra.mxu0 %v326
    %v2606 = vpop.f32.mrf.mxu0
    %v2607 = vadd.f32 0.0, %v2606
    %v2608 = vpop.f32.mrf.mxu0
    %v2609 = vpop.f32.mrf.mxu0
    %v2610 = vadd.f32 0.0, %v2609
    %v2611 = vpop.f32.mrf.mxu0
    %2612 = vmatprep.mubr.bf16.mxu0 0
    %2613 = vmatmul.mubr.bf16.gmra.mxu0 %v327
    %v2614 = vpop.f32.mrf.mxu0
    %v2615 = vadd.f32 0.0, %v2614
    %v2616 = vpop.f32.mrf.mxu0
    %v2617 = vpop.f32.mrf.mxu0
    %v2618 = vadd.f32 0.0, %v2617
    %v2619 = vpop.f32.mrf.mxu0
    %2620 = vmatprep.mubr.bf16.mxu0 0
    %2621 = vmatmul.mubr.bf16.gmra.mxu0 %v328
    %v2622 = vpop.f32.mrf.mxu0
    %v2623 = vadd.f32 0.0, %v2622
    %v2624 = vpop.f32.mrf.mxu0
    %v2625 = vpop.f32.mrf.mxu0
    %v2626 = vadd.f32 0.0, %v2625
    %v2627 = vpop.f32.mrf.mxu0
    %2628 = vmatprep.mubr.bf16.mxu0 0
    %2629 = vmatmul.mubr.bf16.gmra.mxu0 %v329
    %v2630 = vpop.f32.mrf.mxu0
    %v2631 = vadd.f32 0.0, %v2630
    %v2632 = vpop.f32.mrf.mxu0
    %v2633 = vpop.f32.mrf.mxu0
    %v2634 = vadd.f32 0.0, %v2633
    %v2635 = vpop.f32.mrf.mxu0
    %2636 = vmatprep.mubr.bf16.mxu0 0
    %2637 = vmatmul.mubr.bf16.gmra.mxu0 %v330
    %v2638 = vpop.f32.mrf.mxu0
    %v2639 = vadd.f32 0.0, %v2638
    %v2640 = vpop.f32.mrf.mxu0
    %v2641 = vpop.f32.mrf.mxu0
    %v2642 = vadd.f32 0.0, %v2641
    %v2643 = vpop.f32.mrf.mxu0
    %2644 = vmatprep.mubr.bf16.mxu0 0
    %2645 = vmatmul.mubr.bf16.gmra.mxu0 %v331
    %v2646 = vpop.f32.mrf.mxu0
    %v2647 = vadd.f32 0.0, %v2646
    %v2648 = vpop.f32.mrf.mxu0
    %v2649 = vpop.f32.mrf.mxu0
    %v2650 = vadd.f32 0.0, %v2649
    %v2651 = vpop.f32.mrf.mxu0
    %2652 = vdwg.mxu0
    %2653 = vmatprep.subr.bf16.mxu0 0
    %2654 = vmatpush1.bf16.msra.mxu0 %v2547
    %2655 = vmatprep.subr.bf16.mxu0 0
    %2656 = vmatpush1.bf16.msra.mxu0 %v2546
    %2657 = vmatprep.subr.bf16.mxu0 0
    %2658 = vmatpush1.bf16.msra.mxu0 %v2545
    %2659 = vmatprep.subr.bf16.mxu0 0
    %2660 = vmatpush1.bf16.msra.mxu0 %v2544
    %2661 = vmatprep.subr.bf16.mxu0 0
    %2662 = vmatpush1.bf16.msra.mxu0 %v2543
    %2663 = vmatprep.subr.bf16.mxu0 0
    %2664 = vmatpush1.bf16.msra.mxu0 %v2542
    %2665 = vmatprep.subr.bf16.mxu0 0
    %2666 = vmatpush1.bf16.msra.mxu0 %v2541
    %2667 = vmatprep.subr.bf16.mxu0 0
    %2668 = vmatpush1.bf16.msra.mxu0 %v2540
    %2669 = vmatprep.subr.bf16.mxu0 0
    %2670 = vmatpush2.bf16.msra.mxu0 0
    %2671 = vmatprep.subr.bf16.mxu0 0
    %2672 = vmatpush2.bf16.msra.mxu0 0
    %2673 = vmatprep.subr.bf16.mxu0 0
    %2674 = vmatpush2.bf16.msra.mxu0 0
    %2675 = vmatprep.subr.bf16.mxu0 0
    %2676 = vmatpush2.bf16.msra.mxu0 0
    %2677 = vmatprep.subr.bf16.mxu0 0
    %2678 = vmatpush2.bf16.msra.mxu0 0
    %2679 = vmatprep.subr.bf16.mxu0 0
    %2680 = vmatpush2.bf16.msra.mxu0 0
    %2681 = vmatprep.subr.bf16.mxu0 0
    %2682 = vmatpush2.bf16.msra.mxu0 0
    %2683 = vmatprep.subr.bf16.mxu0 0
    %2684 = vmatpush2.bf16.msra.mxu0 0
    %2685 = vmatprep.mubr.bf16.mxu0 0
    %2686 = vmatmul.mubr.bf16.gmra.mxu0 %v204
    %v2687 = vpop.f32.mrf.mxu0
    %v2688 = vadd.f32 %v2591, %v2687
    %v2689 = vpop.f32.mrf.mxu0
    %v2690 = vpop.f32.mrf.mxu0
    %v2691 = vadd.f32 %v2594, %v2690
    %v2692 = vpop.f32.mrf.mxu0
    %2693 = vmatprep.mubr.bf16.mxu0 0
    %2694 = vmatmul.mubr.bf16.gmra.mxu0 %v205
    %v2695 = vpop.f32.mrf.mxu0
    %v2696 = vadd.f32 %v2599, %v2695
    %v2697 = vpop.f32.mrf.mxu0
    %v2698 = vpop.f32.mrf.mxu0
    %v2699 = vadd.f32 %v2602, %v2698
    %v2700 = vpop.f32.mrf.mxu0
    %2701 = vmatprep.mubr.bf16.mxu0 0
    %2702 = vmatmul.mubr.bf16.gmra.mxu0 %v206
    %v2703 = vpop.f32.mrf.mxu0
    %v2704 = vadd.f32 %v2607, %v2703
    %v2705 = vpop.f32.mrf.mxu0
    %v2706 = vpop.f32.mrf.mxu0
    %v2707 = vadd.f32 %v2610, %v2706
    %v2708 = vpop.f32.mrf.mxu0
    %2709 = vmatprep.mubr.bf16.mxu0 0
    %2710 = vmatmul.mubr.bf16.gmra.mxu0 %v207
    %v2711 = vpop.f32.mrf.mxu0
    %v2712 = vadd.f32 %v2615, %v2711
    %v2713 = vpop.f32.mrf.mxu0
    %v2714 = vpop.f32.mrf.mxu0
    %v2715 = vadd.f32 %v2618, %v2714
    %v2716 = vpop.f32.mrf.mxu0
    %2717 = vmatprep.mubr.bf16.mxu0 0
    %2718 = vmatmul.mubr.bf16.gmra.mxu0 %v208
    %v2719 = vpop.f32.mrf.mxu0
    %v2720 = vadd.f32 %v2623, %v2719
    %v2721 = vpop.f32.mrf.mxu0
    %v2722 = vpop.f32.mrf.mxu0
    %v2723 = vadd.f32 %v2626, %v2722
    %v2724 = vpop.f32.mrf.mxu0
    %2725 = vmatprep.mubr.bf16.mxu0 0
    %2726 = vmatmul.mubr.bf16.gmra.mxu0 %v209
    %v2727 = vpop.f32.mrf.mxu0
    %v2728 = vadd.f32 %v2631, %v2727
    %v2729 = vpop.f32.mrf.mxu0
    %v2730 = vpop.f32.mrf.mxu0
    %v2731 = vadd.f32 %v2634, %v2730
    %v2732 = vpop.f32.mrf.mxu0
    %2733 = vmatprep.mubr.bf16.mxu0 0
    %2734 = vmatmul.mubr.bf16.gmra.mxu0 %v210
    %v2735 = vpop.f32.mrf.mxu0
    %v2736 = vadd.f32 %v2639, %v2735
    %v2737 = vpop.f32.mrf.mxu0
    %v2738 = vpop.f32.mrf.mxu0
    %v2739 = vadd.f32 %v2642, %v2738
    %v2740 = vpop.f32.mrf.mxu0
    %2741 = vmatprep.mubr.bf16.mxu0 0
    %2742 = vmatmul.mubr.bf16.gmra.mxu0 %v211
    %v2743 = vpop.f32.mrf.mxu0
    %v2744 = vadd.f32 %v2647, %v2743
    %v2745 = vpop.f32.mrf.mxu0
    %v2746 = vpop.f32.mrf.mxu0
    %v2747 = vadd.f32 %v2650, %v2746
    %v2748 = vpop.f32.mrf.mxu0
    %2749 = vdwg.mxu0
    %v2766 = vunpack.c.l.b16 %v2190
    %v2767 = vunpack.c.l.b16 %v2191
    %v2768 = vunpack.c.l.b16 %v2192
    %v2769 = vunpack.c.l.b16 %v2193
    %v2770 = vunpack.c.l.b16 %v2194
    %v2771 = vunpack.c.l.b16 %v2195
    %v2772 = vunpack.c.l.b16 %v2196
    %v2773 = vunpack.c.l.b16 %v2197
    %v2774 = vunpack.c.l.b16 %v2198
    %v2775 = vunpack.c.l.b16 %v2199
    %v2776 = vunpack.c.l.b16 %v2200
    %v2777 = vunpack.c.l.b16 %v2201
    %v2778 = vunpack.c.l.b16 %v2202
    %v2779 = vunpack.c.l.b16 %v2203
    %v2780 = vunpack.c.l.b16 %v2204
    %v2781 = vunpack.c.l.b16 %v2205
    %v2782 = vpack.c.b16 %v2767, %v2766
    %v2783 = vpack.c.b16 %v2769, %v2768
    %v2784 = vpack.c.b16 %v2771, %v2770
    %v2785 = vpack.c.b16 %v2773, %v2772
    %v2786 = vpack.c.b16 %v2775, %v2774
    %v2787 = vpack.c.b16 %v2777, %v2776
    %v2788 = vpack.c.b16 %v2779, %v2778
    %v2789 = vpack.c.b16 %v2781, %v2780
    %2798 = vmatprep.subr.bf16.mxu0 0
    %2799 = vmatpush1.bf16.msra.mxu0 %v2789
    %2800 = vmatprep.subr.bf16.mxu0 0
    %2801 = vmatpush1.bf16.msra.mxu0 %v2788
    %2802 = vmatprep.subr.bf16.mxu0 0
    %2803 = vmatpush1.bf16.msra.mxu0 %v2787
    %2804 = vmatprep.subr.bf16.mxu0 0
    %2805 = vmatpush1.bf16.msra.mxu0 %v2786
    %2806 = vmatprep.subr.bf16.mxu0 0
    %2807 = vmatpush1.bf16.msra.mxu0 %v2785
    %2808 = vmatprep.subr.bf16.mxu0 0
    %2809 = vmatpush1.bf16.msra.mxu0 %v2784
    %2810 = vmatprep.subr.bf16.mxu0 0
    %2811 = vmatpush1.bf16.msra.mxu0 %v2783
    %2812 = vmatprep.subr.bf16.mxu0 0
    %2813 = vmatpush1.bf16.msra.mxu0 %v2782
    %2814 = vmatprep.subr.bf16.mxu0 0
    %2815 = vmatpush2.bf16.msra.mxu0 0
    %2816 = vmatprep.subr.bf16.mxu0 0
    %2817 = vmatpush2.bf16.msra.mxu0 0
    %2818 = vmatprep.subr.bf16.mxu0 0
    %2819 = vmatpush2.bf16.msra.mxu0 0
    %2820 = vmatprep.subr.bf16.mxu0 0
    %2821 = vmatpush2.bf16.msra.mxu0 0
    %2822 = vmatprep.subr.bf16.mxu0 0
    %2823 = vmatpush2.bf16.msra.mxu0 0
    %2824 = vmatprep.subr.bf16.mxu0 0
    %2825 = vmatpush2.bf16.msra.mxu0 0
    %2826 = vmatprep.subr.bf16.mxu0 0
    %2827 = vmatpush2.bf16.msra.mxu0 0
    %2828 = vmatprep.subr.bf16.mxu0 0
    %2829 = vmatpush2.bf16.msra.mxu0 0
    %2830 = vmatprep.mubr.bf16.mxu0 0
    %2831 = vmatmul.mubr.bf16.gmra.mxu0 %v2207
    %v2832 = vpop.f32.mrf.mxu0
    %v2833 = vadd.f32 0.0, %v2832
    %v2834 = vpop.f32.mrf.mxu0
    %v2835 = vpop.f32.mrf.mxu0
    %v2836 = vadd.f32 0.0, %v2835
    %v2837 = vpop.f32.mrf.mxu0
    %2838 = vmatprep.mubr.bf16.mxu0 0
    %2839 = vmatmul.mubr.bf16.gmra.mxu0 %v2208
    %v2840 = vpop.f32.mrf.mxu0
    %v2841 = vadd.f32 0.0, %v2840
    %v2842 = vpop.f32.mrf.mxu0
    %v2843 = vpop.f32.mrf.mxu0
    %v2844 = vadd.f32 0.0, %v2843
    %v2845 = vpop.f32.mrf.mxu0
    %2846 = vmatprep.mubr.bf16.mxu0 0
    %2847 = vmatmul.mubr.bf16.gmra.mxu0 %v2209
    %v2848 = vpop.f32.mrf.mxu0
    %v2849 = vadd.f32 0.0, %v2848
    %v2850 = vpop.f32.mrf.mxu0
    %v2851 = vpop.f32.mrf.mxu0
    %v2852 = vadd.f32 0.0, %v2851
    %v2853 = vpop.f32.mrf.mxu0
    %2854 = vmatprep.mubr.bf16.mxu0 0
    %2855 = vmatmul.mubr.bf16.gmra.mxu0 %v2210
    %v2856 = vpop.f32.mrf.mxu0
    %v2857 = vadd.f32 0.0, %v2856
    %v2858 = vpop.f32.mrf.mxu0
    %v2859 = vpop.f32.mrf.mxu0
    %v2860 = vadd.f32 0.0, %v2859
    %v2861 = vpop.f32.mrf.mxu0
    %2862 = vmatprep.mubr.bf16.mxu0 0
    %2863 = vmatmul.mubr.bf16.gmra.mxu0 %v2211
    %v2864 = vpop.f32.mrf.mxu0
    %v2865 = vadd.f32 0.0, %v2864
    %v2866 = vpop.f32.mrf.mxu0
    %v2867 = vpop.f32.mrf.mxu0
    %v2868 = vadd.f32 0.0, %v2867
    %v2869 = vpop.f32.mrf.mxu0
    %2870 = vmatprep.mubr.bf16.mxu0 0
    %2871 = vmatmul.mubr.bf16.gmra.mxu0 %v2212
    %v2872 = vpop.f32.mrf.mxu0
    %v2873 = vadd.f32 0.0, %v2872
    %v2874 = vpop.f32.mrf.mxu0
    %v2875 = vpop.f32.mrf.mxu0
    %v2876 = vadd.f32 0.0, %v2875
    %v2877 = vpop.f32.mrf.mxu0
    %2878 = vmatprep.mubr.bf16.mxu0 0
    %2879 = vmatmul.mubr.bf16.gmra.mxu0 %v2213
    %v2880 = vpop.f32.mrf.mxu0
    %v2881 = vadd.f32 0.0, %v2880
    %v2882 = vpop.f32.mrf.mxu0
    %v2883 = vpop.f32.mrf.mxu0
    %v2884 = vadd.f32 0.0, %v2883
    %v2885 = vpop.f32.mrf.mxu0
    %2886 = vmatprep.mubr.bf16.mxu0 0
    %2887 = vmatmul.mubr.bf16.gmra.mxu0 %v2214
    %v2888 = vpop.f32.mrf.mxu0
    %v2889 = vadd.f32 0.0, %v2888
    %v2890 = vpop.f32.mrf.mxu0
    %v2891 = vpop.f32.mrf.mxu0
    %v2892 = vadd.f32 0.0, %v2891
    %v2893 = vpop.f32.mrf.mxu0
    %2894 = vdwg.mxu0
    %v2895 = vadd.f32 %v2688, %v2833
    %v2896 = vadd.f32 %v2691, %v2836
    %v2897 = vadd.f32 %v2696, %v2841
    %v2898 = vadd.f32 %v2699, %v2844
    %v2899 = vadd.f32 %v2704, %v2849
    %v2900 = vadd.f32 %v2707, %v2852
    %v2901 = vadd.f32 %v2712, %v2857
    %v2902 = vadd.f32 %v2715, %v2860
    %v2903 = vadd.f32 %v2720, %v2865
    %v2904 = vadd.f32 %v2723, %v2868
    %v2905 = vadd.f32 %v2728, %v2873
    %v2906 = vadd.f32 %v2731, %v2876
    %v2907 = vadd.f32 %v2736, %v2881
    %v2908 = vadd.f32 %v2739, %v2884
    %v2909 = vadd.f32 %v2744, %v2889
    %v2910 = vadd.f32 %v2747, %v2892
    %v2912 = vlaneseq
    %v2913 = vshrl.u32 %v2912, 7
    %v2914 = vsub.s32 0, %v2913
    %v2915 = vrot.slane %v2206, %v2914
    %v2917 = vadd.f32 %v2895, %v2915
    %v2918 = vadd.f32 %v2896, %v2915
    %v2919 = vadd.f32 %v2897, %v2915
    %v2920 = vadd.f32 %v2898, %v2915
    %v2921 = vadd.f32 %v2899, %v2915
    %v2922 = vadd.f32 %v2900, %v2915
    %v2923 = vadd.f32 %v2901, %v2915
    %v2924 = vadd.f32 %v2902, %v2915
    %v2925 = vadd.f32 %v2903, %v2915
    %v2926 = vadd.f32 %v2904, %v2915
    %v2927 = vadd.f32 %v2905, %v2915
    %v2928 = vadd.f32 %v2906, %v2915
    %v2929 = vadd.f32 %v2907, %v2915
    %v2930 = vadd.f32 %v2908, %v2915
    %v2931 = vadd.f32 %v2909, %v2915
    %v2932 = vadd.f32 %v2910, %v2915
    %v2933 = vmax.f32 %v2917, 0.0
    %v2934 = vmax.f32 %v2918, 0.0
    %v2935 = vmax.f32 %v2919, 0.0
    %v2936 = vmax.f32 %v2920, 0.0
    %v2937 = vmax.f32 %v2921, 0.0
    %v2938 = vmax.f32 %v2922, 0.0
    %v2939 = vmax.f32 %v2923, 0.0
    %v2940 = vmax.f32 %v2924, 0.0
    %v2941 = vmax.f32 %v2925, 0.0
    %v2942 = vmax.f32 %v2926, 0.0
    %v2943 = vmax.f32 %v2927, 0.0
    %v2944 = vmax.f32 %v2928, 0.0
    %v2945 = vmax.f32 %v2929, 0.0
    %v2946 = vmax.f32 %v2930, 0.0
    %v2947 = vmax.f32 %v2931, 0.0
    %v2948 = vmax.f32 %v2932, 0.0
    %2949 = vst [vmem:[#allocation7] sm:$0xff] %v2933
    %2950 = vst [vmem:[#allocation7 + $0x8] sm:$0xff] %v2934
    %2951 = vst [vmem:[#allocation7 + $0x10] sm:$0xff] %v2935
    %2952 = vst [vmem:[#allocation7 + $0x18] sm:$0xff] %v2936
    %2953 = vst [vmem:[#allocation7 + $0x20] sm:$0xff] %v2937
    %2954 = vst [vmem:[#allocation7 + $0x28] sm:$0xff] %v2938
    %2955 = vst [vmem:[#allocation7 + $0x30] sm:$0xff] %v2939
    %2956 = vst [vmem:[#allocation7 + $0x38] sm:$0xff] %v2940
    %2957 = vst [vmem:[#allocation7 + $0x40] sm:$0xff] %v2941
    %2958 = vst [vmem:[#allocation7 + $0x48] sm:$0xff] %v2942
    %2959 = vst [vmem:[#allocation7 + $0x50] sm:$0xff] %v2943
    %2960 = vst [vmem:[#allocation7 + $0x58] sm:$0xff] %v2944
    %2961 = vst [vmem:[#allocation7 + $0x60] sm:$0xff] %v2945
    %2962 = vst [vmem:[#allocation7 + $0x68] sm:$0xff] %v2946
    %2963 = vst [vmem:[#allocation7 + $0x70] sm:$0xff] %v2947
    %2964 = vst [vmem:[#allocation7 + $0x78] sm:$0xff] %v2948
    %v2965 = vpack.c.bf16 %v2934, %v2933
    %v2966 = vpack.c.bf16 %v2936, %v2935
    %v2967 = vpack.c.bf16 %v2938, %v2937
    %v2968 = vpack.c.bf16 %v2940, %v2939
    %v2969 = vpack.c.bf16 %v2942, %v2941
    %v2970 = vpack.c.bf16 %v2944, %v2943
    %v2971 = vpack.c.bf16 %v2946, %v2945
    %v2972 = vpack.c.bf16 %v2948, %v2947
    %2973 = vmatprep.subr.bf16.mxu0 0
    %2974 = vmatpush1.bf16.msra.mxu0 %v2972
    %2975 = vmatprep.subr.bf16.mxu0 0
    %2976 = vmatpush1.bf16.msra.mxu0 %v2971
    %2977 = vmatprep.subr.bf16.mxu0 0
    %2978 = vmatpush1.bf16.msra.mxu0 %v2970
    %2979 = vmatprep.subr.bf16.mxu0 0
    %2980 = vmatpush1.bf16.msra.mxu0 %v2969
    %2981 = vmatprep.subr.bf16.mxu0 0
    %2982 = vmatpush1.bf16.msra.mxu0 %v2968
    %2983 = vmatprep.subr.bf16.mxu0 0
    %2984 = vmatpush1.bf16.msra.mxu0 %v2967
    %2985 = vmatprep.subr.bf16.mxu0 0
    %2986 = vmatpush1.bf16.msra.mxu0 %v2966
    %2987 = vmatprep.subr.bf16.mxu0 0
    %2988 = vmatpush1.bf16.msra.mxu0 %v2965
    %2989 = vmatprep.subr.bf16.mxu0 0
    %2990 = vmatpush2.bf16.msra.mxu0 0
    %2991 = vmatprep.subr.bf16.mxu0 0
    %2992 = vmatpush2.bf16.msra.mxu0 0
    %2993 = vmatprep.subr.bf16.mxu0 0
    %2994 = vmatpush2.bf16.msra.mxu0 0
    %2995 = vmatprep.subr.bf16.mxu0 0
    %2996 = vmatpush2.bf16.msra.mxu0 0
    %2997 = vmatprep.subr.bf16.mxu0 0
    %2998 = vmatpush2.bf16.msra.mxu0 0
    %2999 = vmatprep.subr.bf16.mxu0 0
    %3000 = vmatpush2.bf16.msra.mxu0 0
    %3001 = vmatprep.subr.bf16.mxu0 0
    %3002 = vmatpush2.bf16.msra.mxu0 0
    %3003 = vmatprep.subr.bf16.mxu0 0
    %3004 = vmatpush2.bf16.msra.mxu0 0
    %3005 = vmatprep.mubr.bf16.mxu0 0
    %3006 = vmatmul.mubr.bf16.gmra.mxu0 %v419
    %v3007 = vpop.f32.mrf.mxu0
    %v3008 = vadd.f32 0.0, %v3007
    %v3009 = vpop.f32.mrf.mxu0
    %v3010 = vpop.f32.mrf.mxu0
    %v3011 = vadd.f32 0.0, %v3010
    %v3012 = vpop.f32.mrf.mxu0
    %3013 = vmatprep.mubr.bf16.mxu0 0
    %3014 = vmatmul.mubr.bf16.gmra.mxu0 %v420
    %v3015 = vpop.f32.mrf.mxu0
    %v3016 = vadd.f32 0.0, %v3015
    %v3017 = vpop.f32.mrf.mxu0
    %v3018 = vpop.f32.mrf.mxu0
    %v3019 = vadd.f32 0.0, %v3018
    %v3020 = vpop.f32.mrf.mxu0
    %3021 = vmatprep.mubr.bf16.mxu0 0
    %3022 = vmatmul.mubr.bf16.gmra.mxu0 %v421
    %v3023 = vpop.f32.mrf.mxu0
    %v3024 = vadd.f32 0.0, %v3023
    %v3025 = vpop.f32.mrf.mxu0
    %v3026 = vpop.f32.mrf.mxu0
    %v3027 = vadd.f32 0.0, %v3026
    %v3028 = vpop.f32.mrf.mxu0
    %3029 = vmatprep.mubr.bf16.mxu0 0
    %3030 = vmatmul.mubr.bf16.gmra.mxu0 %v422
    %v3031 = vpop.f32.mrf.mxu0
    %v3032 = vadd.f32 0.0, %v3031
    %v3033 = vpop.f32.mrf.mxu0
    %v3034 = vpop.f32.mrf.mxu0
    %v3035 = vadd.f32 0.0, %v3034
    %v3036 = vpop.f32.mrf.mxu0
    %3037 = vmatprep.mubr.bf16.mxu0 0
    %3038 = vmatmul.mubr.bf16.gmra.mxu0 %v423
    %v3039 = vpop.f32.mrf.mxu0
    %v3040 = vadd.f32 0.0, %v3039
    %v3041 = vpop.f32.mrf.mxu0
    %v3042 = vpop.f32.mrf.mxu0
    %v3043 = vadd.f32 0.0, %v3042
    %v3044 = vpop.f32.mrf.mxu0
    %3045 = vmatprep.mubr.bf16.mxu0 0
    %3046 = vmatmul.mubr.bf16.gmra.mxu0 %v424
    %v3047 = vpop.f32.mrf.mxu0
    %v3048 = vadd.f32 0.0, %v3047
    %v3049 = vpop.f32.mrf.mxu0
    %v3050 = vpop.f32.mrf.mxu0
    %v3051 = vadd.f32 0.0, %v3050
    %v3052 = vpop.f32.mrf.mxu0
    %3053 = vmatprep.mubr.bf16.mxu0 0
    %3054 = vmatmul.mubr.bf16.gmra.mxu0 %v425
    %v3055 = vpop.f32.mrf.mxu0
    %v3056 = vadd.f32 0.0, %v3055
    %v3057 = vpop.f32.mrf.mxu0
    %v3058 = vpop.f32.mrf.mxu0
    %v3059 = vadd.f32 0.0, %v3058
    %v3060 = vpop.f32.mrf.mxu0
    %3061 = vmatprep.mubr.bf16.mxu0 0
    %3062 = vmatmul.mubr.bf16.gmra.mxu0 %v426
    %v3063 = vpop.f32.mrf.mxu0
    %v3064 = vadd.f32 0.0, %v3063
    %v3065 = vpop.f32.mrf.mxu0
    %v3066 = vpop.f32.mrf.mxu0
    %v3067 = vadd.f32 0.0, %v3066
    %v3068 = vpop.f32.mrf.mxu0
    %3069 = vdwg.mxu0
    %v3070 = vmul.f32 %v3008, %v617
    %v3071 = vmul.f32 %v3011, %v622
    %v3072 = vmul.f32 %v3016, %v627
    %v3073 = vmul.f32 %v3019, %v632
    %v3074 = vmul.f32 %v3024, %v637
    %v3075 = vmul.f32 %v3027, %v642
    %v3076 = vmul.f32 %v3032, %v647
    %v3077 = vmul.f32 %v3035, %v652
    %v3078 = vmul.f32 %v3040, %v657
    %v3079 = vmul.f32 %v3043, %v662
    %v3080 = vmul.f32 %v3048, %v667
    %v3081 = vmul.f32 %v3051, %v672
    %v3082 = vmul.f32 %v3056, %v677
    %v3083 = vmul.f32 %v3059, %v682
    %v3084 = vmul.f32 %v3064, %v687
    %v3085 = vmul.f32 %v3067, %v692
    %3086 = vst [vmem:[#allocation8] sm:$0xff] %v3070
    %3087 = vst [vmem:[#allocation8 + $0x8] sm:$0xff] %v3071
    %3088 = vst [vmem:[#allocation8 + $0x10] sm:$0xff] %v3072
    %3089 = vst [vmem:[#allocation8 + $0x18] sm:$0xff] %v3073
    %3090 = vst [vmem:[#allocation8 + $0x20] sm:$0xff] %v3074
    %3091 = vst [vmem:[#allocation8 + $0x28] sm:$0xff] %v3075
    %3092 = vst [vmem:[#allocation8 + $0x30] sm:$0xff] %v3076
    %3093 = vst [vmem:[#allocation8 + $0x38] sm:$0xff] %v3077
    %3094 = vst [vmem:[#allocation8 + $0x40] sm:$0xff] %v3078
    %3095 = vst [vmem:[#allocation8 + $0x48] sm:$0xff] %v3079
    %3096 = vst [vmem:[#allocation8 + $0x50] sm:$0xff] %v3080
    %3097 = vst [vmem:[#allocation8 + $0x58] sm:$0xff] %v3081
    %3098 = vst [vmem:[#allocation8 + $0x60] sm:$0xff] %v3082
    %3099 = vst [vmem:[#allocation8 + $0x68] sm:$0xff] %v3083
    %3100 = vst [vmem:[#allocation8 + $0x70] sm:$0xff] %v3084
    %3101 = vst [vmem:[#allocation8 + $0x78] sm:$0xff] %v3085
    %v3102 = vld [vmem:[%s7] sm:$0xff]
    %v3103 = vld [vmem:[%s7 + $0x8] sm:$0xff]
    %v3104 = vld [vmem:[%s7 + $0x10] sm:$0xff]
    %v3105 = vld [vmem:[%s7 + $0x18] sm:$0xff]
    %v3106 = vld [vmem:[%s7 + $0x20] sm:$0xff]
    %v3107 = vld [vmem:[%s7 + $0x28] sm:$0xff]
    %v3108 = vld [vmem:[%s7 + $0x30] sm:$0xff]
    %v3109 = vld [vmem:[%s7 + $0x38] sm:$0xff]
    %v3110 = vld [vmem:[%s7 + $0x40] sm:$0xff]
    %v3111 = vld [vmem:[%s7 + $0x48] sm:$0xff]
    %v3112 = vld [vmem:[%s7 + $0x50] sm:$0xff]
    %v3113 = vld [vmem:[%s7 + $0x58] sm:$0xff]
    %v3114 = vld [vmem:[%s7 + $0x60] sm:$0xff]
    %v3115 = vld [vmem:[%s7 + $0x68] sm:$0xff]
    %v3116 = vld [vmem:[%s7 + $0x70] sm:$0xff]
    %v3117 = vld [vmem:[%s7 + $0x78] sm:$0xff]
    %vm3118 = vcmp.eq.s32.totalorder %v3102, 0
    %vm3119 = vcmp.eq.s32.totalorder %v3103, 0
    %vm3120 = vcmp.eq.s32.totalorder %v3104, 0
    %vm3121 = vcmp.eq.s32.totalorder %v3105, 0
    %vm3122 = vcmp.eq.s32.totalorder %v3106, 0
    %vm3123 = vcmp.eq.s32.totalorder %v3107, 0
    %vm3124 = vcmp.eq.s32.totalorder %v3108, 0
    %vm3125 = vcmp.eq.s32.totalorder %v3109, 0
    %vm3126 = vcmp.eq.s32.totalorder %v3110, 0
    %vm3127 = vcmp.eq.s32.totalorder %v3111, 0
    %vm3128 = vcmp.eq.s32.totalorder %v3112, 0
    %vm3129 = vcmp.eq.s32.totalorder %v3113, 0
    %vm3130 = vcmp.eq.s32.totalorder %v3114, 0
    %vm3131 = vcmp.eq.s32.totalorder %v3115, 0
    %vm3132 = vcmp.eq.s32.totalorder %v3116, 0
    %vm3133 = vcmp.eq.s32.totalorder %v3117, 0
    %v3134 = vsel %vm3118, 1, 0
    %v3135 = vsel %vm3119, 1, 0
    %v3136 = vsel %vm3120, 1, 0
    %v3137 = vsel %vm3121, 1, 0
    %v3138 = vsel %vm3122, 1, 0
    %v3139 = vsel %vm3123, 1, 0
    %v3140 = vsel %vm3124, 1, 0
    %v3141 = vsel %vm3125, 1, 0
    %v3142 = vsel %vm3126, 1, 0
    %v3143 = vsel %vm3127, 1, 0
    %v3144 = vsel %vm3128, 1, 0
    %v3145 = vsel %vm3129, 1, 0
    %v3146 = vsel %vm3130, 1, 0
    %v3147 = vsel %vm3131, 1, 0
    %v3148 = vsel %vm3132, 1, 0
    %v3149 = vsel %vm3133, 1, 0
    %3150 = vset.pattern.permute.xlu0 0
    %3151 = vperm.xlu0 %3150, %v3134
    %v3152 = vpop.permute.xlu0 %3151
    %3153 = vset.pattern.permute.xlu0 0
    %3154 = vperm.xlu0 %3153, %v3135
    %v3155 = vpop.permute.xlu0 %3154
    %3156 = vset.pattern.permute.xlu0 0
    %3157 = vperm.xlu0 %3156, %v3136
    %v3158 = vpop.permute.xlu0 %3157
    %3159 = vset.pattern.permute.xlu0 0
    %3160 = vperm.xlu0 %3159, %v3137
    %v3161 = vpop.permute.xlu0 %3160
    %3162 = vset.pattern.permute.xlu0 0
    %3163 = vperm.xlu0 %3162, %v3138
    %v3164 = vpop.permute.xlu0 %3163
    %3165 = vset.pattern.permute.xlu0 0
    %3166 = vperm.xlu0 %3165, %v3139
    %v3167 = vpop.permute.xlu0 %3166
    %3168 = vset.pattern.permute.xlu0 0
    %3169 = vperm.xlu0 %3168, %v3140
    %v3170 = vpop.permute.xlu0 %3169
    %3171 = vset.pattern.permute.xlu0 0
    %3172 = vperm.xlu0 %3171, %v3141
    %v3173 = vpop.permute.xlu0 %3172
    %3174 = vset.pattern.permute.xlu0 0
    %3175 = vperm.xlu0 %3174, %v3142
    %v3176 = vpop.permute.xlu0 %3175
    %3177 = vset.pattern.permute.xlu0 0
    %3178 = vperm.xlu0 %3177, %v3143
    %v3179 = vpop.permute.xlu0 %3178
    %3180 = vset.pattern.permute.xlu0 0
    %3181 = vperm.xlu0 %3180, %v3144
    %v3182 = vpop.permute.xlu0 %3181
    %3183 = vset.pattern.permute.xlu0 0
    %3184 = vperm.xlu0 %3183, %v3145
    %v3185 = vpop.permute.xlu0 %3184
    %3186 = vset.pattern.permute.xlu0 0
    %3187 = vperm.xlu0 %3186, %v3146
    %v3188 = vpop.permute.xlu0 %3187
    %3189 = vset.pattern.permute.xlu0 0
    %3190 = vperm.xlu0 %3189, %v3147
    %v3191 = vpop.permute.xlu0 %3190
    %3192 = vset.pattern.permute.xlu0 0
    %3193 = vperm.xlu0 %3192, %v3148
    %v3194 = vpop.permute.xlu0 %3193
    %3195 = vset.pattern.permute.xlu0 0
    %3196 = vperm.xlu0 %3195, %v3149
    %v3197 = vpop.permute.xlu0 %3196
    %vm3198 = vcmp.eq.s32.totalorder %v3152, 1
    %vm3199 = vcmp.eq.s32.totalorder %v3155, 1
    %vm3200 = vcmp.eq.s32.totalorder %v3158, 1
    %vm3201 = vcmp.eq.s32.totalorder %v3161, 1
    %vm3202 = vcmp.eq.s32.totalorder %v3164, 1
    %vm3203 = vcmp.eq.s32.totalorder %v3167, 1
    %vm3204 = vcmp.eq.s32.totalorder %v3170, 1
    %vm3205 = vcmp.eq.s32.totalorder %v3173, 1
    %vm3206 = vcmp.eq.s32.totalorder %v3176, 1
    %vm3207 = vcmp.eq.s32.totalorder %v3179, 1
    %vm3208 = vcmp.eq.s32.totalorder %v3182, 1
    %vm3209 = vcmp.eq.s32.totalorder %v3185, 1
    %vm3210 = vcmp.eq.s32.totalorder %v3188, 1
    %vm3211 = vcmp.eq.s32.totalorder %v3191, 1
    %vm3212 = vcmp.eq.s32.totalorder %v3194, 1
    %vm3213 = vcmp.eq.s32.totalorder %v3197, 1
    %v3214 = vsel %vm3198, %v3070, -inf
    %v3215 = vsel %vm3199, %v3071, -inf
    %v3216 = vsel %vm3200, %v3072, -inf
    %v3217 = vsel %vm3201, %v3073, -inf
    %v3218 = vsel %vm3202, %v3074, -inf
    %v3219 = vsel %vm3203, %v3075, -inf
    %v3220 = vsel %vm3204, %v3076, -inf
    %v3221 = vsel %vm3205, %v3077, -inf
    %v3222 = vsel %vm3206, %v3078, -inf
    %v3223 = vsel %vm3207, %v3079, -inf
    %v3224 = vsel %vm3208, %v3080, -inf
    %v3225 = vsel %vm3209, %v3081, -inf
    %v3226 = vsel %vm3210, %v3082, -inf
    %v3227 = vsel %vm3211, %v3083, -inf
    %v3228 = vsel %vm3212, %v3084, -inf
    %v3229 = vsel %vm3213, %v3085, -inf
    %v3230 = vmax.f32 %v3214, %v3218
    %v3231 = vmax.f32 %v3215, %v3219
    %v3232 = vmax.f32 %v3216, %v3220
    %v3233 = vmax.f32 %v3217, %v3221
    %v3234 = vmax.f32 %v3230, %v3222
    %v3235 = vmax.f32 %v3231, %v3223
    %v3236 = vmax.f32 %v3232, %v3224
    %v3237 = vmax.f32 %v3233, %v3225
    %v3238 = vmax.f32 %v3234, %v3226
    %v3239 = vmax.f32 %v3235, %v3227
    %v3240 = vmax.f32 %v3236, %v3228
    %v3241 = vmax.f32 %v3237, %v3229
    %v3242 = vmax.f32 %v3238, %v3239
    %v3243 = vmax.f32 %v3240, %v3241
    %v3244 = vmax.f32 %v3242, %v3243
    %v3245 = vrot.slane %v3244, 4
    %v3246 = vmax.f32 %v3244, %v3245
    %v3247 = vrot.slane %v3246, 2
    %v3248 = vmax.f32 %v3246, %v3247
    %v3249 = vrot.slane %v3248, 1
    %v3250 = vmax.f32 %v3248, %v3249
    %vm3251 = vcmp.eq.s32.totalorder %v3102, 1
    %vm3252 = vcmp.eq.s32.totalorder %v3103, 1
    %vm3253 = vcmp.eq.s32.totalorder %v3104, 1
    %vm3254 = vcmp.eq.s32.totalorder %v3105, 1
    %vm3255 = vcmp.eq.s32.totalorder %v3106, 1
    %vm3256 = vcmp.eq.s32.totalorder %v3107, 1
    %vm3257 = vcmp.eq.s32.totalorder %v3108, 1
    %vm3258 = vcmp.eq.s32.totalorder %v3109, 1
    %vm3259 = vcmp.eq.s32.totalorder %v3110, 1
    %vm3260 = vcmp.eq.s32.totalorder %v3111, 1
    %vm3261 = vcmp.eq.s32.totalorder %v3112, 1
    %vm3262 = vcmp.eq.s32.totalorder %v3113, 1
    %vm3263 = vcmp.eq.s32.totalorder %v3114, 1
    %vm3264 = vcmp.eq.s32.totalorder %v3115, 1
    %vm3265 = vcmp.eq.s32.totalorder %v3116, 1
    %vm3266 = vcmp.eq.s32.totalorder %v3117, 1
    %v3267 = vsel %vm3251, 1, 0
    %v3268 = vsel %vm3252, 1, 0
    %v3269 = vsel %vm3253, 1, 0
    %v3270 = vsel %vm3254, 1, 0
    %v3271 = vsel %vm3255, 1, 0
    %v3272 = vsel %vm3256, 1, 0
    %v3273 = vsel %vm3257, 1, 0
    %v3274 = vsel %vm3258, 1, 0
    %v3275 = vsel %vm3259, 1, 0
    %v3276 = vsel %vm3260, 1, 0
    %v3277 = vsel %vm3261, 1, 0
    %v3278 = vsel %vm3262, 1, 0
    %v3279 = vsel %vm3263, 1, 0
    %v3280 = vsel %vm3264, 1, 0
    %v3281 = vsel %vm3265, 1, 0
    %v3282 = vsel %vm3266, 1, 0
    %3283 = vset.pattern.permute.xlu0 0
    %3284 = vperm.xlu0 %3283, %v3267
    %v3285 = vpop.permute.xlu0 %3284
    %3286 = vset.pattern.permute.xlu0 0
    %3287 = vperm.xlu0 %3286, %v3268
    %v3288 = vpop.permute.xlu0 %3287
    %3289 = vset.pattern.permute.xlu0 0
    %3290 = vperm.xlu0 %3289, %v3269
    %v3291 = vpop.permute.xlu0 %3290
    %3292 = vset.pattern.permute.xlu0 0
    %3293 = vperm.xlu0 %3292, %v3270
    %v3294 = vpop.permute.xlu0 %3293
    %3295 = vset.pattern.permute.xlu0 0
    %3296 = vperm.xlu0 %3295, %v3271
    %v3297 = vpop.permute.xlu0 %3296
    %3298 = vset.pattern.permute.xlu0 0
    %3299 = vperm.xlu0 %3298, %v3272
    %v3300 = vpop.permute.xlu0 %3299
    %3301 = vset.pattern.permute.xlu0 0
    %3302 = vperm.xlu0 %3301, %v3273
    %v3303 = vpop.permute.xlu0 %3302
    %3304 = vset.pattern.permute.xlu0 0
    %3305 = vperm.xlu0 %3304, %v3274
    %v3306 = vpop.permute.xlu0 %3305
    %3307 = vset.pattern.permute.xlu0 0
    %3308 = vperm.xlu0 %3307, %v3275
    %v3309 = vpop.permute.xlu0 %3308
    %3310 = vset.pattern.permute.xlu0 0
    %3311 = vperm.xlu0 %3310, %v3276
    %v3312 = vpop.permute.xlu0 %3311
    %3313 = vset.pattern.permute.xlu0 0
    %3314 = vperm.xlu0 %3313, %v3277
    %v3315 = vpop.permute.xlu0 %3314
    %3316 = vset.pattern.permute.xlu0 0
    %3317 = vperm.xlu0 %3316, %v3278
    %v3318 = vpop.permute.xlu0 %3317
    %3319 = vset.pattern.permute.xlu0 0
    %3320 = vperm.xlu0 %3319, %v3279
    %v3321 = vpop.permute.xlu0 %3320
    %3322 = vset.pattern.permute.xlu0 0
    %3323 = vperm.xlu0 %3322, %v3280
    %v3324 = vpop.permute.xlu0 %3323
    %3325 = vset.pattern.permute.xlu0 0
    %3326 = vperm.xlu0 %3325, %v3281
    %v3327 = vpop.permute.xlu0 %3326
    %3328 = vset.pattern.permute.xlu0 0
    %3329 = vperm.xlu0 %3328, %v3282
    %v3330 = vpop.permute.xlu0 %3329
    %vm3331 = vcmp.eq.s32.totalorder %v3285, 1
    %vm3332 = vcmp.eq.s32.totalorder %v3288, 1
    %vm3333 = vcmp.eq.s32.totalorder %v3291, 1
    %vm3334 = vcmp.eq.s32.totalorder %v3294, 1
    %vm3335 = vcmp.eq.s32.totalorder %v3297, 1
    %vm3336 = vcmp.eq.s32.totalorder %v3300, 1
    %vm3337 = vcmp.eq.s32.totalorder %v3303, 1
    %vm3338 = vcmp.eq.s32.totalorder %v3306, 1
    %vm3339 = vcmp.eq.s32.totalorder %v3309, 1
    %vm3340 = vcmp.eq.s32.totalorder %v3312, 1
    %vm3341 = vcmp.eq.s32.totalorder %v3315, 1
    %vm3342 = vcmp.eq.s32.totalorder %v3318, 1
    %vm3343 = vcmp.eq.s32.totalorder %v3321, 1
    %vm3344 = vcmp.eq.s32.totalorder %v3324, 1
    %vm3345 = vcmp.eq.s32.totalorder %v3327, 1
    %vm3346 = vcmp.eq.s32.totalorder %v3330, 1
    %v3347 = vsel %vm3331, %v3070, -inf
    %v3348 = vsel %vm3332, %v3071, -inf
    %v3349 = vsel %vm3333, %v3072, -inf
    %v3350 = vsel %vm3334, %v3073, -inf
    %v3351 = vsel %vm3335, %v3074, -inf
    %v3352 = vsel %vm3336, %v3075, -inf
    %v3353 = vsel %vm3337, %v3076, -inf
    %v3354 = vsel %vm3338, %v3077, -inf
    %v3355 = vsel %vm3339, %v3078, -inf
    %v3356 = vsel %vm3340, %v3079, -inf
    %v3357 = vsel %vm3341, %v3080, -inf
    %v3358 = vsel %vm3342, %v3081, -inf
    %v3359 = vsel %vm3343, %v3082, -inf
    %v3360 = vsel %vm3344, %v3083, -inf
    %v3361 = vsel %vm3345, %v3084, -inf
    %v3362 = vsel %vm3346, %v3085, -inf
    %v3363 = vmax.f32 %v3347, %v3351
    %v3364 = vmax.f32 %v3348, %v3352
    %v3365 = vmax.f32 %v3349, %v3353
    %v3366 = vmax.f32 %v3350, %v3354
    %v3367 = vmax.f32 %v3363, %v3355
    %v3368 = vmax.f32 %v3364, %v3356
    %v3369 = vmax.f32 %v3365, %v3357
    %v3370 = vmax.f32 %v3366, %v3358
    %v3371 = vmax.f32 %v3367, %v3359
    %v3372 = vmax.f32 %v3368, %v3360
    %v3373 = vmax.f32 %v3369, %v3361
    %v3374 = vmax.f32 %v3370, %v3362
    %v3375 = vmax.f32 %v3371, %v3372
    %v3376 = vmax.f32 %v3373, %v3374
    %v3377 = vmax.f32 %v3375, %v3376
    %v3378 = vrot.slane %v3377, 4
    %v3379 = vmax.f32 %v3377, %v3378
    %v3380 = vrot.slane %v3379, 2
    %v3381 = vmax.f32 %v3379, %v3380
    %v3382 = vrot.slane %v3381, 1
    %v3383 = vmax.f32 %v3381, %v3382
    %vm3384 = vcmask 1040384
    %v3385 = vsel %vm3384, %v3250, %v3383
    %3386 = vst [vmem:[#allocation10] sm:$0x3] %v3385
    // Predicated region
    $region78: #{tpu_custom_call.1} parent=1 // pred_check
      _
    $region79: #{tpu_custom_call.1} parent=1 // pred_check_branch
      %3388 = sbr.rel (0) target = $region81
    $region80: #{tpu_custom_call.1} parent=1 // pred_region
      %s3390 = ssub.s32 2048, 2048
      %3391 = vsyncadd [#allocation4], %s3390
      %s3392 = sshll.u32 [#allocation7], 4
      %s3393 = int_to_ptr.vmem [resolvable:$true] %s3392
      %3398 = dma.vmem_to_hbm [thread:$0]  %s3393, 2048, %s17, [#allocation4], 128, 128, 8
    $region81: #{tpu_custom_call.1} parent=1 // pred_fallthru
      _
    // Predicated region
    $region82: #{tpu_custom_call.1} parent=1 // pred_check
      _
    $region83: #{tpu_custom_call.1} parent=1 // pred_check_branch
      %3400 = sbr.rel (0) target = $region85
    $region84: #{tpu_custom_call.1} parent=1 // pred_region
      %s3402 = ssub.s32 2048, 2048
      %3403 = vsyncadd [#allocation9], %s3402
      %s3404 = sshll.u32 [#allocation8], 4
      %s3405 = int_to_ptr.vmem [resolvable:$true] %s3404
      %3410 = dma.vmem_to_hbm [thread:$0]  %s3405, 2048, %s18, [#allocation9], 128, 128, 8
    $region85: #{tpu_custom_call.1} parent=1 // pred_fallthru
      _
    // Predicated region
    $region86: #{tpu_custom_call.1} parent=1 // pred_check
      _
    $region87: #{tpu_custom_call.1} parent=1 // pred_check_branch
      %3412 = sbr.rel (0) target = $region89
    $region88: #{tpu_custom_call.1} parent=1 // pred_region
      %s3414 = ssub.s32 32, 32
      %3415 = vsyncadd [#allocation9], %s3414
      %s3417 = sshll.u32 [#allocation10], 4
      %s3418 = int_to_ptr.vmem [resolvable:$true] %s3417
      %3420 = dma.vmem_to_hbm [thread:$0]  %s3418, 32, %s19, [#allocation9]
    $region89: #{tpu_custom_call.1} parent=1 // pred_fallthru
      _
    // Predicated region
    $region90: #{tpu_custom_call.1} parent=1 // pred_check
      _
    $region91: #{tpu_custom_call.1} parent=1 // pred_check_branch
      %3422 = sbr.rel (0) target = $region93
    $region92: #{tpu_custom_call.1} parent=1 // pred_region
      %3423 = dma.done [#allocation4], 2048
    $region93: #{tpu_custom_call.1} parent=1 // pred_fallthru
      _
    // Predicated region
    $region94: #{tpu_custom_call.1} parent=1 // pred_check
      _
    $region95: #{tpu_custom_call.1} parent=1 // pred_check_branch
      %3425 = sbr.rel (0) target = $region97
    $region96: #{tpu_custom_call.1} parent=1 // pred_region
      %3426 = dma.done [#allocation9], 2048
    $region97: #{tpu_custom_call.1} parent=1 // pred_fallthru
      _
    // Predicated region
    $region98: #{tpu_custom_call.1} parent=1 // pred_check
      _
    $region99: #{tpu_custom_call.1} parent=1 // pred_check_branch
      %3428 = sbr.rel (0) target = $region101
    $region100: #{tpu_custom_call.1} parent=1 // pred_region
      %3429 = dma.done [#allocation9], 32
    $region101: #{tpu_custom_call.1} parent=1 // pred_fallthru
      _
    %3430 = vsyncpa [#allocation3], 1
    %3431 = vsyncpa [#allocation6], 1
    %3432 = vsyncpa [#allocation4], 1
    %3433 = vsyncpa [#allocation9], 1

</llo_original>
